<compile_context>
chip_gen: v7x
topology: tpu7x:2x2x1
jax: 0.10.0
libtpu: 0.0.40
codegen_flags: <defaults>
</compile_context>

<pallas_src>
import functools
import math

import jax
import jax.numpy as jnp
from jax.experimental import pallas as pl
from jax.experimental.pallas import tpu as pltpu


def _round_up(v, m):
    return (v + m - 1) // m * m


def _tpu_hw_defaults():
    """Best-effort hardware introspection: (vmem_capacity_bytes, tm_cap)."""
    vmem_cap = 128 << 20
    tm_cap = 128
    try:
        info = pltpu.get_tpu_info()
        vmem_cap = int(getattr(info, "vmem_capacity_bytes", vmem_cap))
    except Exception:
        pass
    try:
        kind = jax.devices()[0].device_kind.lower()
        # v6e / v7x MXUs are 256x256 -> fill M=256 per step; v5e (and older) 128x128.
        if not any(g in kind for g in ("v2", "v3", "v4", "v5")):
            tm_cap = 256
    except Exception:
        pass
    return vmem_cap, tm_cap


# ---------------------------------------------------------------------------
# Fused autoencoder kernel: one batch tile per grid step, all weights resident
# in VMEM, bf16 matmuls with f32 accumulation, activations fused in-register.
# ---------------------------------------------------------------------------
def _fused_ae_kernel(x_ref,
                     w1_ref, b1_ref, w2_ref, b2_ref,
                     w3_ref, b3_ref, w4_ref, b4_ref,
                     o_ref):
    cdt = w1_ref.dtype                       # MXU compute dtype (bfloat16)
    x = x_ref[...].astype(cdt)

    # encoder: Linear -> ReLU -> Linear
    h = jnp.dot(x, w1_ref[...], preferred_element_type=jnp.float32)
    h = jnp.maximum(h + b1_ref[...], 0.0)
    enc = jnp.dot(h.astype(cdt), w2_ref[...], preferred_element_type=jnp.float32)
    enc = enc + b2_ref[...]

    # decoder: Linear -> ReLU -> Linear -> Sigmoid
    h = jnp.dot(enc.astype(cdt), w3_ref[...], preferred_element_type=jnp.float32)
    h = jnp.maximum(h + b3_ref[...], 0.0)
    dec = jnp.dot(h.astype(cdt), w4_ref[...], preferred_element_type=jnp.float32)
    dec = dec + b4_ref[...]

    o_ref[...] = jax.nn.sigmoid(dec).astype(o_ref.dtype)


# ---------------------------------------------------------------------------
# One-time parameter pack: pad feature dims to multiples of 128 and cast the
# weights to the MXU compute dtype.  Hoisted out of the per-forward hot path.
# ---------------------------------------------------------------------------
def prepare_params(params, compute_dtype=jnp.bfloat16):
    w1, b1 = params["enc1"]
    w2, b2 = params["enc2"]
    w3, b3 = params["dec1"]
    w4, b4 = params["dec2"]
    D, H1 = w1.shape
    H2 = w2.shape[1]
    Dp, H1p, H2p = (_round_up(v, 128) for v in (D, H1, H2))

    def pad_w(w, rp, cp):
        r, c = w.shape
        return jnp.pad(w, ((0, rp - r), (0, cp - c))).astype(compute_dtype)

    def pad_b(b, cp):
        return jnp.pad(b, (0, cp - b.shape[0])).reshape(1, cp).astype(jnp.float32)

    return {
        "w1": pad_w(w1, Dp, H1p), "b1": pad_b(b1, H1p),
        "w2": pad_w(w2, H1p, H2p), "b2": pad_b(b2, H2p),
        "w3": pad_w(w3, H2p, H1p), "b3": pad_b(b3, H1p),
        "w4": pad_w(w4, H1p, Dp), "b4": pad_b(b4, Dp),
    }


# ---------------------------------------------------------------------------
# Forward: decoded = dec(enc(x)); x:[B, D] float32, packed = prepare_params().
# ---------------------------------------------------------------------------
def autoencoder_forward_pallas(packed, x, *, tm_cap=None, weight_buffers=1):
    M, D = x.shape
    w1, w2, w3, w4 = packed["w1"], packed["w2"], packed["w3"], packed["w4"]
    b1, b2, b3, b4 = packed["b1"], packed["b2"], packed["b3"], packed["b4"]
    Dp, H1p = w1.shape
    H2p = w2.shape[1]

    vmem_cap, hw_tm_cap = _tpu_hw_defaults()
    if tm_cap is None:
        tm_cap = hw_tm_cap

    # Batch tiling: rows padded to a multiple of 16 (full bf16 sublane packing),
    # no divisibility requirement on M (pad with zero rows, sliced off below).
    tm = min(tm_cap, _round_up(M, 16))
    if tm == _round_up(M, 16) and M >= 64:
        # Guarantee >=2 batch tiles so the 'parallel' axis can shard across
        # TensorCores (v7x megacore) when the batch is large enough.
        tm = _round_up((M + 1) // 2, 16)
    Mp = _round_up(M, tm)
    xp = jnp.pad(x, ((0, Mp - M), (0, Dp - D)))

    grid = (Mp // tm,)
    row = lambda i: (i, 0)       # batch tiles
    full = lambda i: (0, 0)      # resident weights/biases: same block every step

    def wspec(shape):
        # Grid-invariant blocks: single-buffer them (default double-buffering
        # would just hold a redundant second copy of every weight in VMEM).
        if weight_buffers is None:
            return pl.BlockSpec(shape, full)
        return pl.BlockSpec(shape, full,
                            pipeline_mode=pl.Buffered(int(weight_buffers)))

    # VMEM budget: resident weights (wb buffers) + pipelined x/out tiles + f32
    # intermediate headroom; clamp generation-aware (leave headroom on v7x's
    # 64 MiB physical VMEM; allow up to 100 MiB on v5e/v6e's 128 MiB).
    wb = 2 if weight_buffers is None else max(1, int(weight_buffers))
    cbytes = jnp.dtype(w1.dtype).itemsize
    w_elems = Dp * H1p + H1p * H2p + H2p * H1p + H1p * Dp
    b_elems = 2 * H1p + H2p + Dp
    est = (wb * (cbytes * w_elems + 4 * b_elems)   # resident weights + biases
           + 2 * 4 * tm * Dp * 2                   # x / out tiles, double-buffered
           + 8 * 4 * tm * max(H1p, H2p, Dp)        # f32 intermediates headroom
           + (4 << 20))
    vmem_clamp = min(int(0.85 * vmem_cap), 100 << 20)
    vmem_limit = int(min(vmem_clamp, max(32 << 20, est)))

    cost = pl.CostEstimate(
        flops=2 * Mp * w_elems,
        transcendentals=Mp * Dp,                   # sigmoid
        bytes_accessed=cbytes * w_elems + 4 * b_elems + 4 * Mp * Dp * 2,
    )

    out = pl.pallas_call(
        _fused_ae_kernel,
        out_shape=jax.ShapeDtypeStruct((Mp, Dp), x.dtype),
        grid_spec=pltpu.PrefetchScalarGridSpec(
            num_scalar_prefetch=0,
            grid=grid,
            in_specs=[
                pl.BlockSpec((tm, Dp), row),   # x batch tile
                wspec((Dp, H1p)),              # enc1 W  (resident)
                wspec((1, H1p)),               # enc1 b
                wspec((H1p, H2p)),             # enc2 W
                wspec((1, H2p)),               # enc2 b
                wspec((H2p, H1p)),             # dec1 W
                wspec((1, H1p)),               # dec1 b
                wspec((H1p, Dp)),              # dec2 W
                wspec((1, Dp)),                # dec2 b
            ],
            out_specs=pl.BlockSpec((tm, Dp), row),   # lane-dense output tile
        ),
        compiler_params=pltpu.CompilerParams(
            dimension_semantics=("parallel",),
            vmem_limit_bytes=vmem_limit,
        ),
        cost_estimate=cost,
    )(xp, w1, b1, w2, b2, w3, b3, w4, b4)

    return out[:M, :D]


autoencoder_forward = jax.jit(autoencoder_forward_pallas,
                              static_argnames=("tm_cap", "weight_buffers"))


# ---------------------------------------------------------------------------
# Parameter init (PyTorch nn.Linear default) + pure-JAX references.
# ---------------------------------------------------------------------------
def _torch_linear_init(key, in_features, out_features, dtype=jnp.float32):
    """PyTorch nn.Linear default init: U(-1/sqrt(in), 1/sqrt(in))."""
    kw, kb = jax.random.split(key)
    bound = 1.0 / math.sqrt(in_features)
    # stored pre-transposed as [in, out] so the kernel computes x @ W + b
    w = jax.random.uniform(kw, (in_features, out_features), dtype,
                           minval=-bound, maxval=bound)
    b = jax.random.uniform(kb, (out_features,), dtype,
                           minval=-bound, maxval=bound)
    return w, b


def init_autoencoder_params(key, d_in, h1, h2):
    k1, k2, k3, k4 = jax.random.split(key, 4)
    return {
        "enc1": _torch_linear_init(k1, d_in, h1),
        "enc2": _torch_linear_init(k2, h1, h2),
        "dec1": _torch_linear_init(k3, h2, h1),
        "dec2": _torch_linear_init(k4, h1, d_in),
    }


def autoencoder_reference_bf16(params, x, compute_dtype=jnp.bfloat16):
    """Plain-JAX reference mirroring the kernel's bf16/f32 compute pattern."""
    def lin(h, wb):
        w, b = wb
        return jnp.dot(h.astype(compute_dtype), w.astype(compute_dtype),
                       preferred_element_type=jnp.float32) + b.astype(jnp.float32)
    h = jnp.maximum(lin(x, params["enc1"]), 0.0)
    enc = lin(h, params["enc2"])
    h = jnp.maximum(lin(enc, params["dec1"]), 0.0)
    return jax.nn.sigmoid(lin(h, params["dec2"]))


def autoencoder_reference_f32(params, x):
    """Full-f32 reference (matches the PyTorch module numerics)."""
    def lin(h, wb):
        w, b = wb
        return h @ w + b
    h = jnp.maximum(lin(x, params["enc1"]), 0.0)
    enc = lin(h, params["enc2"])
    h = jnp.maximum(lin(enc, params["dec1"]), 0.0)
    return jax.nn.sigmoid(lin(h, params["dec2"]))


if __name__ == "__main__":
    # Small shapes consistent with the module (scaled-down 4096/2048 hiddens).
    B, D_IN, H1, H2 = 16, 128, 512, 256

    key = jax.random.PRNGKey(0)
    kx, kp = jax.random.split(key)

    # inputs mimic normalize(data): values in [0, 1]
    x = jax.random.uniform(kx, (B, D_IN), jnp.float32)
    params = init_autoencoder_params(kp, D_IN, H1, H2)

    # One-time pack outside the hot path (pad + bf16 cast of all weights).
    packed = jax.block_until_ready(prepare_params(params))

    try:
        out = jax.block_until_ready(autoencoder_forward(packed, x))
    except Exception:
        # Fallback: default (double) buffering for grid-invariant weight blocks
        # if this JAX version rejects pipeline_mode=pl.Buffered(1).
        out = jax.block_until_ready(
            autoencoder_forward(packed, x, weight_buffers=None))

    ref_bf16 = autoencoder_reference_bf16(params, x)
    ref_f32 = autoencoder_reference_f32(params, x)

    assert out.shape == (B, D_IN)
    assert jnp.allclose(out, ref_bf16, atol=2e-3, rtol=2e-3), float(
        jnp.max(jnp.abs(out - ref_bf16)))
    # Looser check against the true f32 (PyTorch-equivalent) numerics.
    assert jnp.allclose(out, ref_f32, atol=5e-2, rtol=5e-2), float(
        jnp.max(jnp.abs(out - ref_f32)))

    print("KERNEL_OK")
</pallas_src>

<mosaic_0001>
module attributes {stable_mosaic.version = 11 : i64} {
  func.func @_fused_ae_kernel(%arg0: i32, %arg1: memref<16x128xf32, #tpu.memory_space<vmem>>, %arg2: memref<128x512xbf16, #tpu.memory_space<vmem>>, %arg3: memref<1x512xf32, #tpu.memory_space<vmem>>, %arg4: memref<512x256xbf16, #tpu.memory_space<vmem>>, %arg5: memref<1x256xf32, #tpu.memory_space<vmem>>, %arg6: memref<256x512xbf16, #tpu.memory_space<vmem>>, %arg7: memref<1x512xf32, #tpu.memory_space<vmem>>, %arg8: memref<512x128xbf16, #tpu.memory_space<vmem>>, %arg9: memref<1x128xf32, #tpu.memory_space<vmem>>, %arg10: memref<16x128xf32, #tpu.memory_space<vmem>>) attributes {dimension_semantics = [#tpu.dimension_semantics<parallel>], iteration_bounds = array<i64: 1>, scalar_prefetch = 0 : i64, scratch_operands = 0 : i64, tpu.core_type = #tpu.core_type<tc>, window_params = [{transform_indices = @transform_0, window_bounds = array<i64: 16, 128>}, {pipeline_mode = #tpu.pipeline_mode<synchronous>, transform_indices = @transform_1, window_bounds = array<i64: 128, 512>}, {pipeline_mode = #tpu.pipeline_mode<synchronous>, transform_indices = @transform_2, window_bounds = array<i64: 1, 512>}, {pipeline_mode = #tpu.pipeline_mode<synchronous>, transform_indices = @transform_3, window_bounds = array<i64: 512, 256>}, {pipeline_mode = #tpu.pipeline_mode<synchronous>, transform_indices = @transform_4, window_bounds = array<i64: 1, 256>}, {pipeline_mode = #tpu.pipeline_mode<synchronous>, transform_indices = @transform_5, window_bounds = array<i64: 256, 512>}, {pipeline_mode = #tpu.pipeline_mode<synchronous>, transform_indices = @transform_6, window_bounds = array<i64: 1, 512>}, {pipeline_mode = #tpu.pipeline_mode<synchronous>, transform_indices = @transform_7, window_bounds = array<i64: 512, 128>}, {pipeline_mode = #tpu.pipeline_mode<synchronous>, transform_indices = @transform_8, window_bounds = array<i64: 1, 128>}, {transform_indices = @transform_9, window_bounds = array<i64: 16, 128>}]} {
    %c0 = arith.constant 0 : index
    %c0_0 = arith.constant 0 : index
    %0 = vector.load %arg1[%c0, %c0_0] : memref<16x128xf32, #tpu.memory_space<vmem>>, vector<16x128xf32>
    %1 = arith.truncf %0 : vector<16x128xf32> to vector<16x128xbf16>
    %c0_1 = arith.constant 0 : index
    %c0_2 = arith.constant 0 : index
    %2 = vector.load %arg2[%c0_1, %c0_2] : memref<128x512xbf16, #tpu.memory_space<vmem>>, vector<128x512xbf16>
    %cst = arith.constant dense<0.000000e+00> : vector<16x512xf32>
    %3 = tpu.matmul %1, %2, %cst {dimension_numbers = #tpu.dot_dimension_numbers<[1], [0], [0], [1], [0, 0, 1, 1], [], []>} : vector<16x128xbf16>, vector<128x512xbf16>, vector<16x512xf32> -> vector<16x512xf32>
    %c0_3 = arith.constant 0 : index
    %c0_4 = arith.constant 0 : index
    %4 = vector.load %arg3[%c0_3, %c0_4] : memref<1x512xf32, #tpu.memory_space<vmem>>, vector<1x512xf32>
    %5 = vector.broadcast %4 : vector<1x512xf32> to vector<16x512xf32>
    %6 = arith.addf %3, %5 : vector<16x512xf32>
    %cst_5 = arith.constant 0.000000e+00 : f32
    %7 = vector.broadcast %cst_5 : f32 to vector<16x512xf32>
    %8 = arith.maximumf %6, %7 : vector<16x512xf32>
    %9 = arith.truncf %8 : vector<16x512xf32> to vector<16x512xbf16>
    %c0_6 = arith.constant 0 : index
    %c0_7 = arith.constant 0 : index
    %10 = vector.load %arg4[%c0_6, %c0_7] : memref<512x256xbf16, #tpu.memory_space<vmem>>, vector<512x256xbf16>
    %cst_8 = arith.constant dense<0.000000e+00> : vector<16x256xf32>
    %11 = tpu.matmul %9, %10, %cst_8 {dimension_numbers = #tpu.dot_dimension_numbers<[1], [0], [0], [1], [0, 0, 1, 1], [], []>} : vector<16x512xbf16>, vector<512x256xbf16>, vector<16x256xf32> -> vector<16x256xf32>
    %c0_9 = arith.constant 0 : index
    %c0_10 = arith.constant 0 : index
    %12 = vector.load %arg5[%c0_9, %c0_10] : memref<1x256xf32, #tpu.memory_space<vmem>>, vector<1x256xf32>
    %13 = vector.broadcast %12 : vector<1x256xf32> to vector<16x256xf32>
    %14 = arith.addf %11, %13 : vector<16x256xf32>
    %15 = arith.truncf %14 : vector<16x256xf32> to vector<16x256xbf16>
    %c0_11 = arith.constant 0 : index
    %c0_12 = arith.constant 0 : index
    %16 = vector.load %arg6[%c0_11, %c0_12] : memref<256x512xbf16, #tpu.memory_space<vmem>>, vector<256x512xbf16>
    %cst_13 = arith.constant dense<0.000000e+00> : vector<16x512xf32>
    %17 = tpu.matmul %15, %16, %cst_13 {dimension_numbers = #tpu.dot_dimension_numbers<[1], [0], [0], [1], [0, 0, 1, 1], [], []>} : vector<16x256xbf16>, vector<256x512xbf16>, vector<16x512xf32> -> vector<16x512xf32>
    %c0_14 = arith.constant 0 : index
    %c0_15 = arith.constant 0 : index
    %18 = vector.load %arg7[%c0_14, %c0_15] : memref<1x512xf32, #tpu.memory_space<vmem>>, vector<1x512xf32>
    %19 = vector.broadcast %18 : vector<1x512xf32> to vector<16x512xf32>
    %20 = arith.addf %17, %19 : vector<16x512xf32>
    %cst_16 = arith.constant 0.000000e+00 : f32
    %21 = vector.broadcast %cst_16 : f32 to vector<16x512xf32>
    %22 = arith.maximumf %20, %21 : vector<16x512xf32>
    %23 = arith.truncf %22 : vector<16x512xf32> to vector<16x512xbf16>
    %c0_17 = arith.constant 0 : index
    %c0_18 = arith.constant 0 : index
    %24 = vector.load %arg8[%c0_17, %c0_18] : memref<512x128xbf16, #tpu.memory_space<vmem>>, vector<512x128xbf16>
    %cst_19 = arith.constant dense<0.000000e+00> : vector<16x128xf32>
    %25 = tpu.matmul %23, %24, %cst_19 {dimension_numbers = #tpu.dot_dimension_numbers<[1], [0], [0], [1], [0, 0, 1, 1], [], []>} : vector<16x512xbf16>, vector<512x128xbf16>, vector<16x128xf32> -> vector<16x128xf32>
    %c0_20 = arith.constant 0 : index
    %c0_21 = arith.constant 0 : index
    %26 = vector.load %arg9[%c0_20, %c0_21] : memref<1x128xf32, #tpu.memory_space<vmem>>, vector<1x128xf32>
    %27 = vector.broadcast %26 : vector<1x128xf32> to vector<16x128xf32>
    %28 = arith.addf %25, %27 : vector<16x128xf32>
    %29 = arith.negf %28 : vector<16x128xf32>
    %30 = math.exp %29 : vector<16x128xf32>
    %cst_22 = arith.constant 1.000000e+00 : f32
    %31 = vector.broadcast %cst_22 : f32 to vector<16x128xf32>
    %32 = arith.addf %31, %30 : vector<16x128xf32>
    %33 = arith.divf %31, %32 : vector<16x128xf32>
    %c0_23 = arith.constant 0 : index
    %c0_24 = arith.constant 0 : index
    %34 = vector.load %arg10[%c0_23, %c0_24] : memref<16x128xf32, #tpu.memory_space<vmem>>, vector<16x128xf32>
    tpu.vector_store %arg10[%c0_23, %c0_24], %33 {strides = array<i32>} : memref<16x128xf32, #tpu.memory_space<vmem>>, vector<16x128xf32>,
    return
  }
  func.func @transform_0(%arg0: i32) -> (i32, i32) {
    %c0_i32 = arith.constant 0 : i32
    %c0_i32_0 = arith.constant 0 : i32
    return %arg0, %c0_i32 : i32, i32
  }
  func.func @transform_1(%arg0: i32) -> (i32, i32) {
    %c0_i32 = arith.constant 0 : i32
    %c0_i32_0 = arith.constant 0 : i32
    %c0_i32_1 = arith.constant 0 : i32
    return %c0_i32, %c0_i32_0 : i32, i32
  }
  func.func @transform_2(%arg0: i32) -> (i32, i32) {
    %c0_i32 = arith.constant 0 : i32
    %c0_i32_0 = arith.constant 0 : i32
    %c0_i32_1 = arith.constant 0 : i32
    return %c0_i32, %c0_i32_0 : i32, i32
  }
  func.func @transform_3(%arg0: i32) -> (i32, i32) {
    %c0_i32 = arith.constant 0 : i32
    %c0_i32_0 = arith.constant 0 : i32
    %c0_i32_1 = arith.constant 0 : i32
    return %c0_i32, %c0_i32_0 : i32, i32
  }
  func.func @transform_4(%arg0: i32) -> (i32, i32) {
    %c0_i32 = arith.constant 0 : i32
    %c0_i32_0 = arith.constant 0 : i32
    %c0_i32_1 = arith.constant 0 : i32
    return %c0_i32, %c0_i32_0 : i32, i32
  }
  func.func @transform_5(%arg0: i32) -> (i32, i32) {
    %c0_i32 = arith.constant 0 : i32
    %c0_i32_0 = arith.constant 0 : i32
    %c0_i32_1 = arith.constant 0 : i32
    return %c0_i32, %c0_i32_0 : i32, i32
  }
  func.func @transform_6(%arg0: i32) -> (i32, i32) {
    %c0_i32 = arith.constant 0 : i32
    %c0_i32_0 = arith.constant 0 : i32
    %c0_i32_1 = arith.constant 0 : i32
    return %c0_i32, %c0_i32_0 : i32, i32
  }
  func.func @transform_7(%arg0: i32) -> (i32, i32) {
    %c0_i32 = arith.constant 0 : i32
    %c0_i32_0 = arith.constant 0 : i32
    %c0_i32_1 = arith.constant 0 : i32
    return %c0_i32, %c0_i32_0 : i32, i32
  }
  func.func @transform_8(%arg0: i32) -> (i32, i32) {
    %c0_i32 = arith.constant 0 : i32
    %c0_i32_0 = arith.constant 0 : i32
    %c0_i32_1 = arith.constant 0 : i32
    return %c0_i32, %c0_i32_0 : i32, i32
  }
  func.func @transform_9(%arg0: i32) -> (i32, i32) {
    %c0_i32 = arith.constant 0 : i32
    %c0_i32_0 = arith.constant 0 : i32
    return %arg0, %c0_i32 : i32, i32
  }
}

module attributes {stable_mosaic.version = 11 : i64} {
  func.func @_fused_ae_kernel(%arg0: i32, %arg1: memref<16x128xf32, #tpu.memory_space<vmem>>, %arg2: memref<128x512xbf16, #tpu.memory_space<vmem>>, %arg3: memref<1x512xf32, #tpu.memory_space<vmem>>, %arg4: memref<512x256xbf16, #tpu.memory_space<vmem>>, %arg5: memref<1x256xf32, #tpu.memory_space<vmem>>, %arg6: memref<256x512xbf16, #tpu.memory_space<vmem>>, %arg7: memref<1x512xf32, #tpu.memory_space<vmem>>, %arg8: memref<512x128xbf16, #tpu.memory_space<vmem>>, %arg9: memref<1x128xf32, #tpu.memory_space<vmem>>, %arg10: memref<16x128xf32, #tpu.memory_space<vmem>>) attributes {dimension_semantics = [#tpu.dimension_semantics<parallel>], iteration_bounds = array<i64: 1>, scalar_prefetch = 0 : i64, scratch_operands = 0 : i64, tpu.core_type = #tpu.core_type<tc>, window_params = [{transform_indices = @transform_0, window_bounds = array<i64: 16, 128>}, {pipeline_mode = #tpu.pipeline_mode<synchronous>, transform_indices = @transform_1, window_bounds = array<i64: 128, 512>}, {pipeline_mode = #tpu.pipeline_mode<synchronous>, transform_indices = @transform_2, window_bounds = array<i64: 1, 512>}, {pipeline_mode = #tpu.pipeline_mode<synchronous>, transform_indices = @transform_3, window_bounds = array<i64: 512, 256>}, {pipeline_mode = #tpu.pipeline_mode<synchronous>, transform_indices = @transform_4, window_bounds = array<i64: 1, 256>}, {pipeline_mode = #tpu.pipeline_mode<synchronous>, transform_indices = @transform_5, window_bounds = array<i64: 256, 512>}, {pipeline_mode = #tpu.pipeline_mode<synchronous>, transform_indices = @transform_6, window_bounds = array<i64: 1, 512>}, {pipeline_mode = #tpu.pipeline_mode<synchronous>, transform_indices = @transform_7, window_bounds = array<i64: 512, 128>}, {pipeline_mode = #tpu.pipeline_mode<synchronous>, transform_indices = @transform_8, window_bounds = array<i64: 1, 128>}, {transform_indices = @transform_9, window_bounds = array<i64: 16, 128>}]} {
    %c0 = arith.constant 0 : index
    %c0_0 = arith.constant 0 : index
    %0 = vector.load %arg1[%c0, %c0_0] : memref<16x128xf32, #tpu.memory_space<vmem>>, vector<16x128xf32>
    %1 = arith.truncf %0 : vector<16x128xf32> to vector<16x128xbf16>
    %c0_1 = arith.constant 0 : index
    %c0_2 = arith.constant 0 : index
    %2 = vector.load %arg2[%c0_1, %c0_2] : memref<128x512xbf16, #tpu.memory_space<vmem>>, vector<128x512xbf16>
    %cst = arith.constant dense<0.000000e+00> : vector<16x512xf32>
    %3 = tpu.matmul %1, %2, %cst {dimension_numbers = #tpu.dot_dimension_numbers<[1], [0], [0], [1], [0, 0, 1, 1], [], []>} : vector<16x128xbf16>, vector<128x512xbf16>, vector<16x512xf32> -> vector<16x512xf32>
    %c0_3 = arith.constant 0 : index
    %c0_4 = arith.constant 0 : index
    %4 = vector.load %arg3[%c0_3, %c0_4] : memref<1x512xf32, #tpu.memory_space<vmem>>, vector<1x512xf32>
    %5 = vector.broadcast %4 : vector<1x512xf32> to vector<16x512xf32>
    %6 = arith.addf %3, %5 : vector<16x512xf32>
    %cst_5 = arith.constant 0.000000e+00 : f32
    %7 = vector.broadcast %cst_5 : f32 to vector<16x512xf32>
    %8 = arith.maximumf %6, %7 : vector<16x512xf32>
    %9 = arith.truncf %8 : vector<16x512xf32> to vector<16x512xbf16>
    %c0_6 = arith.constant 0 : index
    %c0_7 = arith.constant 0 : index
    %10 = vector.load %arg4[%c0_6, %c0_7] : memref<512x256xbf16, #tpu.memory_space<vmem>>, vector<512x256xbf16>
    %cst_8 = arith.constant dense<0.000000e+00> : vector<16x256xf32>
    %11 = tpu.matmul %9, %10, %cst_8 {dimension_numbers = #tpu.dot_dimension_numbers<[1], [0], [0], [1], [0, 0, 1, 1], [], []>} : vector<16x512xbf16>, vector<512x256xbf16>, vector<16x256xf32> -> vector<16x256xf32>
    %c0_9 = arith.constant 0 : index
    %c0_10 = arith.constant 0 : index
    %12 = vector.load %arg5[%c0_9, %c0_10] : memref<1x256xf32, #tpu.memory_space<vmem>>, vector<1x256xf32>
    %13 = vector.broadcast %12 : vector<1x256xf32> to vector<16x256xf32>
    %14 = arith.addf %11, %13 : vector<16x256xf32>
    %15 = arith.truncf %14 : vector<16x256xf32> to vector<16x256xbf16>
    %c0_11 = arith.constant 0 : index
    %c0_12 = arith.constant 0 : index
    %16 = vector.load %arg6[%c0_11, %c0_12] : memref<256x512xbf16, #tpu.memory_space<vmem>>, vector<256x512xbf16>
    %cst_13 = arith.constant dense<0.000000e+00> : vector<16x512xf32>
    %17 = tpu.matmul %15, %16, %cst_13 {dimension_numbers = #tpu.dot_dimension_numbers<[1], [0], [0], [1], [0, 0, 1, 1], [], []>} : vector<16x256xbf16>, vector<256x512xbf16>, vector<16x512xf32> -> vector<16x512xf32>
    %c0_14 = arith.constant 0 : index
    %c0_15 = arith.constant 0 : index
    %18 = vector.load %arg7[%c0_14, %c0_15] : memref<1x512xf32, #tpu.memory_space<vmem>>, vector<1x512xf32>
    %19 = vector.broadcast %18 : vector<1x512xf32> to vector<16x512xf32>
    %20 = arith.addf %17, %19 : vector<16x512xf32>
    %cst_16 = arith.constant 0.000000e+00 : f32
    %21 = vector.broadcast %cst_16 : f32 to vector<16x512xf32>
    %22 = arith.maximumf %20, %21 : vector<16x512xf32>
    %23 = arith.truncf %22 : vector<16x512xf32> to vector<16x512xbf16>
    %c0_17 = arith.constant 0 : index
    %c0_18 = arith.constant 0 : index
    %24 = vector.load %arg8[%c0_17, %c0_18] : memref<512x128xbf16, #tpu.memory_space<vmem>>, vector<512x128xbf16>
    %cst_19 = arith.constant dense<0.000000e+00> : vector<16x128xf32>
    %25 = tpu.matmul %23, %24, %cst_19 {dimension_numbers = #tpu.dot_dimension_numbers<[1], [0], [0], [1], [0, 0, 1, 1], [], []>} : vector<16x512xbf16>, vector<512x128xbf16>, vector<16x128xf32> -> vector<16x128xf32>
    %c0_20 = arith.constant 0 : index
    %c0_21 = arith.constant 0 : index
    %26 = vector.load %arg9[%c0_20, %c0_21] : memref<1x128xf32, #tpu.memory_space<vmem>>, vector<1x128xf32>
    %27 = vector.broadcast %26 : vector<1x128xf32> to vector<16x128xf32>
    %28 = arith.addf %25, %27 : vector<16x128xf32>
    %29 = arith.negf %28 : vector<16x128xf32>
    %30 = math.exp %29 : vector<16x128xf32>
    %cst_22 = arith.constant 1.000000e+00 : f32
    %31 = vector.broadcast %cst_22 : f32 to vector<16x128xf32>
    %32 = arith.addf %31, %30 : vector<16x128xf32>
    %33 = arith.divf %31, %32 : vector<16x128xf32>
    %c0_23 = arith.constant 0 : index
    %c0_24 = arith.constant 0 : index
    %34 = vector.load %arg10[%c0_23, %c0_24] : memref<16x128xf32, #tpu.memory_space<vmem>>, vector<16x128xf32>
    tpu.vector_store %arg10[%c0_23, %c0_24], %33 {strides = array<i32>} : memref<16x128xf32, #tpu.memory_space<vmem>>, vector<16x128xf32>,
    return
  }
  func.func @transform_0(%arg0: i32) -> (i32, i32) {
    %c0_i32 = arith.constant 0 : i32
    %c0_i32_0 = arith.constant 0 : i32
    return %arg0, %c0_i32 : i32, i32
  }
  func.func @transform_1(%arg0: i32) -> (i32, i32) {
    %c0_i32 = arith.constant 0 : i32
    %c0_i32_0 = arith.constant 0 : i32
    %c0_i32_1 = arith.constant 0 : i32
    return %c0_i32, %c0_i32_0 : i32, i32
  }
  func.func @transform_2(%arg0: i32) -> (i32, i32) {
    %c0_i32 = arith.constant 0 : i32
    %c0_i32_0 = arith.constant 0 : i32
    %c0_i32_1 = arith.constant 0 : i32
    return %c0_i32, %c0_i32_0 : i32, i32
  }
  func.func @transform_3(%arg0: i32) -> (i32, i32) {
    %c0_i32 = arith.constant 0 : i32
    %c0_i32_0 = arith.constant 0 : i32
    %c0_i32_1 = arith.constant 0 : i32
    return %c0_i32, %c0_i32_0 : i32, i32
  }
  func.func @transform_4(%arg0: i32) -> (i32, i32) {
    %c0_i32 = arith.constant 0 : i32
    %c0_i32_0 = arith.constant 0 : i32
    %c0_i32_1 = arith.constant 0 : i32
    return %c0_i32, %c0_i32_0 : i32, i32
  }
  func.func @transform_5(%arg0: i32) -> (i32, i32) {
    %c0_i32 = arith.constant 0 : i32
    %c0_i32_0 = arith.constant 0 : i32
    %c0_i32_1 = arith.constant 0 : i32
    return %c0_i32, %c0_i32_0 : i32, i32
  }
  func.func @transform_6(%arg0: i32) -> (i32, i32) {
    %c0_i32 = arith.constant 0 : i32
    %c0_i32_0 = arith.constant 0 : i32
    %c0_i32_1 = arith.constant 0 : i32
    return %c0_i32, %c0_i32_0 : i32, i32
  }
  func.func @transform_7(%arg0: i32) -> (i32, i32) {
    %c0_i32 = arith.constant 0 : i32
    %c0_i32_0 = arith.constant 0 : i32
    %c0_i32_1 = arith.constant 0 : i32
    return %c0_i32, %c0_i32_0 : i32, i32
  }
  func.func @transform_8(%arg0: i32) -> (i32, i32) {
    %c0_i32 = arith.constant 0 : i32
    %c0_i32_0 = arith.constant 0 : i32
    %c0_i32_1 = arith.constant 0 : i32
    return %c0_i32, %c0_i32_0 : i32, i32
  }
  func.func @transform_9(%arg0: i32) -> (i32, i32) {
    %c0_i32 = arith.constant 0 : i32
    %c0_i32_0 = arith.constant 0 : i32
    return %arg0, %c0_i32 : i32, i32
  }
}

</mosaic_0001>

<llo_original>
// kernel: autoencoder_forward_pallas.1
$region0: #{autoencoder_forward_pallas.1}
  #allocation0 [shape = 'u32[]', space=smem, size = 0x4, offset = 0x4, fixed_abs, tag = 'smem constant byte address 0x4 - core index']
  #allocation1 [shape = 'u32[144,128]{1,0:T(1,128)}', space=vmem, size = 0x12000, scoped, tag = 'internal scratch']
  %s0 = inlined_call_operand.vmem [shape: f32[16,128], index: 0, kind: input, shape index: {}]
  %s1 = inlined_call_operand.hbm [shape: bf16[128,512], index: 1, kind: input, shape index: {}]
  %s2 = inlined_call_operand.hbm [shape: f32[1,512], index: 2, kind: input, shape index: {}]
  %s3 = inlined_call_operand.hbm [shape: bf16[512,256], index: 3, kind: input, shape index: {}]
  %s4 = inlined_call_operand.vmem [shape: f32[1,256], index: 4, kind: input, shape index: {}]
  %s5 = inlined_call_operand.hbm [shape: bf16[256,512], index: 5, kind: input, shape index: {}]
  %s6 = inlined_call_operand.vmem [shape: f32[1,512], index: 6, kind: input, shape index: {}]
  %s7 = inlined_call_operand.hbm [shape: bf16[512,128], index: 7, kind: input, shape index: {}]
  %s8 = inlined_call_operand.vmem [shape: f32[1,128], index: 8, kind: input, shape index: {}]
  %s9 = inlined_call_operand.hbm [shape: f32[16,128], index: 9, kind: output, shape index: {}]
  %s10 = sld [smem:[#allocation0]]
  $region66: #{autoencoder_forward_pallas.1} parent=0
    _
  %s12 = ssub.s32 1, %s10
  %s13 = scalar_select 0, %s12, %s10
  $region1: #{autoencoder_forward_pallas.1} parent=0
    #allocation2 [shape = 'u8[131072]{0}', space=vmem, size = 0x20000, scoped, tag = 'input window, operand 1, single buffered']
    #allocation3 [shape = 's32[1]{0}', space=sflag, size = 0x4, scoped, tag = 'scoped memory for autoencoder_forward_pallas.1']
    #allocation4 [shape = 's32[1]{0}', space=sflag, size = 0x4, scoped, tag = 'scoped memory for autoencoder_forward_pallas.1']
    #allocation5 [shape = 'u8[2048]{0}', space=vmem, size = 0x800, scoped, tag = 'input window, operand 2, single buffered']
    #allocation6 [shape = 's32[1]{0}', space=sflag, size = 0x4, scoped, tag = 'scoped memory for autoencoder_forward_pallas.1']
    #allocation7 [shape = 'u8[262144]{0}', space=vmem, size = 0x40000, scoped, tag = 'input window, operand 3, single buffered']
    #allocation8 [shape = 'u8[262144]{0}', space=vmem, size = 0x40000, scoped, tag = 'input window, operand 5, single buffered']
    #allocation9 [shape = 's32[1]{0}', space=sflag, size = 0x4, scoped, tag = 'scoped memory for autoencoder_forward_pallas.1']
    #allocation10 [shape = 'u8[131072]{0}', space=vmem, size = 0x20000, scoped, tag = 'input window, operand 7, single buffered']
    #allocation11 [shape = 'u8[8192]{0}', space=vmem, size = 0x2000, scoped, tag = 'output window, operand 0, single buffered']
    %14 = vsyncpa [#allocation3], 0
    %15 = vsyncpa [#allocation6], 0
    %16 = vsyncpa [#allocation9], 0
    %17 = vsyncpa [#allocation4], 0
    // Predicated region
    $region2: #{autoencoder_forward_pallas.1} parent=1 // pred_check
      _
    $region3: #{autoencoder_forward_pallas.1} parent=1 // pred_check_branch
      %19 = sbr.rel (0) target = $region5
    $region4: #{autoencoder_forward_pallas.1} parent=1 // pred_region
      _
    $region5: #{autoencoder_forward_pallas.1} parent=1 // pred_fallthru
      _
    // Predicated region
    $region6: #{autoencoder_forward_pallas.1} parent=1 // pred_check
      _
    $region7: #{autoencoder_forward_pallas.1} parent=1 // pred_check_branch
      %21 = sbr.rel (0) target = $region9
    $region8: #{autoencoder_forward_pallas.1} parent=1 // pred_region
      %s23 = ssub.s32 4096, 4096
      %24 = vsyncadd [#allocation3], %s23
      %s25 = sshll.u32 [#allocation2], 4
      %s26 = int_to_ptr.vmem [resolvable:$true] %s25
      %31 = dma.hbm_to_vmem [thread:$0]  %s1, 4096, %s26, [#allocation3], 256, 256, 16
    $region9: #{autoencoder_forward_pallas.1} parent=1 // pred_fallthru
      _
    // Predicated region
    $region10: #{autoencoder_forward_pallas.1} parent=1 // pred_check
      _
    $region11: #{autoencoder_forward_pallas.1} parent=1 // pred_check_branch
      %33 = sbr.rel (0) target = $region13
    $region12: #{autoencoder_forward_pallas.1} parent=1 // pred_region
      %s35 = ssub.s32 64, 64
      %36 = vsyncadd [#allocation6], %s35
      %s38 = sshll.u32 [#allocation5], 4
      %s39 = int_to_ptr.vmem [resolvable:$true] %s38
      %41 = dma.hbm_to_vmem [thread:$0]  %s2, 64, %s39, [#allocation6]
    $region13: #{autoencoder_forward_pallas.1} parent=1 // pred_fallthru
      _
    // Predicated region
    $region14: #{autoencoder_forward_pallas.1} parent=1 // pred_check
      _
    $region15: #{autoencoder_forward_pallas.1} parent=1 // pred_check_branch
      %43 = sbr.rel (0) target = $region17
    $region16: #{autoencoder_forward_pallas.1} parent=1 // pred_region
      %s45 = ssub.s32 8192, 8192
      %46 = vsyncadd [#allocation6], %s45
      %s47 = sshll.u32 [#allocation7], 4
      %s48 = int_to_ptr.vmem [resolvable:$true] %s47
      %53 = dma.hbm_to_vmem [thread:$0]  %s3, 8192, %s48, [#allocation6], 128, 128, 8
    $region17: #{autoencoder_forward_pallas.1} parent=1 // pred_fallthru
      _
    // Predicated region
    $region18: #{autoencoder_forward_pallas.1} parent=1 // pred_check
      _
    $region19: #{autoencoder_forward_pallas.1} parent=1 // pred_check_branch
      %55 = sbr.rel (0) target = $region21
    $region20: #{autoencoder_forward_pallas.1} parent=1 // pred_region
      _
    $region21: #{autoencoder_forward_pallas.1} parent=1 // pred_fallthru
      _
    // Predicated region
    $region22: #{autoencoder_forward_pallas.1} parent=1 // pred_check
      _
    $region23: #{autoencoder_forward_pallas.1} parent=1 // pred_check_branch
      %57 = sbr.rel (0) target = $region25
    $region24: #{autoencoder_forward_pallas.1} parent=1 // pred_region
      %s59 = ssub.s32 8192, 8192
      %60 = vsyncadd [#allocation9], %s59
      %s61 = sshll.u32 [#allocation8], 4
      %s62 = int_to_ptr.vmem [resolvable:$true] %s61
      %67 = dma.hbm_to_vmem [thread:$0]  %s5, 8192, %s62, [#allocation9], 256, 256, 16
    $region25: #{autoencoder_forward_pallas.1} parent=1 // pred_fallthru
      _
    // Predicated region
    $region26: #{autoencoder_forward_pallas.1} parent=1 // pred_check
      _
    $region27: #{autoencoder_forward_pallas.1} parent=1 // pred_check_branch
      %69 = sbr.rel (0) target = $region29
    $region28: #{autoencoder_forward_pallas.1} parent=1 // pred_region
      _
    $region29: #{autoencoder_forward_pallas.1} parent=1 // pred_fallthru
      _
    // Predicated region
    $region30: #{autoencoder_forward_pallas.1} parent=1 // pred_check
      _
    $region31: #{autoencoder_forward_pallas.1} parent=1 // pred_check_branch
      %71 = sbr.rel (0) target = $region33
    $region32: #{autoencoder_forward_pallas.1} parent=1 // pred_region
      %s73 = ssub.s32 4096, 4096
      %74 = vsyncadd [#allocation9], %s73
      %s75 = sshll.u32 [#allocation10], 4
      %s76 = int_to_ptr.vmem [resolvable:$true] %s75
      %81 = dma.hbm_to_vmem [thread:$0]  %s7, 4096, %s76, [#allocation9], 64, 64, 4
    $region33: #{autoencoder_forward_pallas.1} parent=1 // pred_fallthru
      _
    // Predicated region
    $region34: #{autoencoder_forward_pallas.1} parent=1 // pred_check
      _
    $region35: #{autoencoder_forward_pallas.1} parent=1 // pred_check_branch
      %83 = sbr.rel (0) target = $region37
    $region36: #{autoencoder_forward_pallas.1} parent=1 // pred_region
      _
    $region37: #{autoencoder_forward_pallas.1} parent=1 // pred_fallthru
      _
    // Predicated region
    $region38: #{autoencoder_forward_pallas.1} parent=1 // pred_check
      _
    $region39: #{autoencoder_forward_pallas.1} parent=1 // pred_check_branch
      %85 = sbr.rel (0) target = $region41
    $region40: #{autoencoder_forward_pallas.1} parent=1 // pred_region
      %86 = dma.done [#allocation3], 4096
    $region41: #{autoencoder_forward_pallas.1} parent=1 // pred_fallthru
      _
    // Predicated region
    $region42: #{autoencoder_forward_pallas.1} parent=1 // pred_check
      _
    $region43: #{autoencoder_forward_pallas.1} parent=1 // pred_check_branch
      %88 = sbr.rel (0) target = $region45
    $region44: #{autoencoder_forward_pallas.1} parent=1 // pred_region
      %89 = dma.done [#allocation6], 64
    $region45: #{autoencoder_forward_pallas.1} parent=1 // pred_fallthru
      _
    // Predicated region
    $region46: #{autoencoder_forward_pallas.1} parent=1 // pred_check
      _
    $region47: #{autoencoder_forward_pallas.1} parent=1 // pred_check_branch
      %91 = sbr.rel (0) target = $region49
    $region48: #{autoencoder_forward_pallas.1} parent=1 // pred_region
      %92 = dma.done [#allocation6], 8192
    $region49: #{autoencoder_forward_pallas.1} parent=1 // pred_fallthru
      _
    // Predicated region
    $region50: #{autoencoder_forward_pallas.1} parent=1 // pred_check
      _
    $region51: #{autoencoder_forward_pallas.1} parent=1 // pred_check_branch
      %94 = sbr.rel (0) target = $region53
    $region52: #{autoencoder_forward_pallas.1} parent=1 // pred_region
      %95 = dma.done [#allocation9], 8192
    $region53: #{autoencoder_forward_pallas.1} parent=1 // pred_fallthru
      _
    // Predicated region
    $region54: #{autoencoder_forward_pallas.1} parent=1 // pred_check
      _
    $region55: #{autoencoder_forward_pallas.1} parent=1 // pred_check_branch
      %97 = sbr.rel (0) target = $region57
    $region56: #{autoencoder_forward_pallas.1} parent=1 // pred_region
      %98 = dma.done [#allocation9], 4096
    $region57: #{autoencoder_forward_pallas.1} parent=1 // pred_fallthru
      _
    %v100 = vld [vmem:[%s0] sm:$0xff]
    %v101 = vld [vmem:[%s0 + $0x8] sm:$0xff]
    %v102 = vpack.c.bf16 %v101, %v100
    %v103 = vld [vmem:[#allocation2] sm:$0xff]
    %v104 = vld [vmem:[#allocation2 + $0x8] sm:$0xff]
    %v105 = vld [vmem:[#allocation2 + $0x10] sm:$0xff]
    %v106 = vld [vmem:[#allocation2 + $0x18] sm:$0xff]
    %v107 = vld [vmem:[#allocation2 + $0x20] sm:$0xff]
    %v108 = vld [vmem:[#allocation2 + $0x28] sm:$0xff]
    %v109 = vld [vmem:[#allocation2 + $0x30] sm:$0xff]
    %v110 = vld [vmem:[#allocation2 + $0x38] sm:$0xff]
    %v111 = vld [vmem:[#allocation2 + $0x40] sm:$0xff]
    %v112 = vld [vmem:[#allocation2 + $0x48] sm:$0xff]
    %v113 = vld [vmem:[#allocation2 + $0x50] sm:$0xff]
    %v114 = vld [vmem:[#allocation2 + $0x58] sm:$0xff]
    %v115 = vld [vmem:[#allocation2 + $0x60] sm:$0xff]
    %v116 = vld [vmem:[#allocation2 + $0x68] sm:$0xff]
    %v117 = vld [vmem:[#allocation2 + $0x70] sm:$0xff]
    %v118 = vld [vmem:[#allocation2 + $0x78] sm:$0xff]
    %v119 = vld [vmem:[#allocation2 + $0x80] sm:$0xff]
    %v120 = vld [vmem:[#allocation2 + $0x88] sm:$0xff]
    %v121 = vld [vmem:[#allocation2 + $0x90] sm:$0xff]
    %v122 = vld [vmem:[#allocation2 + $0x98] sm:$0xff]
    %v123 = vld [vmem:[#allocation2 + $0xa0] sm:$0xff]
    %v124 = vld [vmem:[#allocation2 + $0xa8] sm:$0xff]
    %v125 = vld [vmem:[#allocation2 + $0xb0] sm:$0xff]
    %v126 = vld [vmem:[#allocation2 + $0xb8] sm:$0xff]
    %v127 = vld [vmem:[#allocation2 + $0xc0] sm:$0xff]
    %v128 = vld [vmem:[#allocation2 + $0xc8] sm:$0xff]
    %v129 = vld [vmem:[#allocation2 + $0xd0] sm:$0xff]
    %v130 = vld [vmem:[#allocation2 + $0xd8] sm:$0xff]
    %v131 = vld [vmem:[#allocation2 + $0xe0] sm:$0xff]
    %v132 = vld [vmem:[#allocation2 + $0xe8] sm:$0xff]
    %v133 = vld [vmem:[#allocation2 + $0xf0] sm:$0xff]
    %v134 = vld [vmem:[#allocation2 + $0xf8] sm:$0xff]
    %v135 = vld [vmem:[#allocation5] sm:$0xf]
    %v137 = vlaneseq
    %v138 = vshrl.u32 %v137, 7
    %v139 = vsub.s32 0, %v138
    %v140 = vrot.slane %v135, %v139
    %v141 = vlaneseq
    %v142 = vshrl.u32 %v141, 7
    %v143 = vsub.s32 1, %v142
    %v144 = vrot.slane %v135, %v143
    %v145 = vlaneseq
    %v146 = vshrl.u32 %v145, 7
    %v147 = vsub.s32 2, %v146
    %v148 = vrot.slane %v135, %v147
    %v149 = vlaneseq
    %v150 = vshrl.u32 %v149, 7
    %v151 = vsub.s32 3, %v150
    %v152 = vrot.slane %v135, %v151
    %v189 = vunpack.c.l.b16 %v103
    %v190 = vunpack.c.h.b16 %v103
    %v191 = vunpack.c.l.b16 %v104
    %v192 = vunpack.c.h.b16 %v104
    %v193 = vunpack.c.l.b16 %v105
    %v194 = vunpack.c.h.b16 %v105
    %v195 = vunpack.c.l.b16 %v106
    %v196 = vunpack.c.h.b16 %v106
    %v197 = vunpack.c.l.b16 %v107
    %v198 = vunpack.c.h.b16 %v107
    %v199 = vunpack.c.l.b16 %v108
    %v200 = vunpack.c.h.b16 %v108
    %v201 = vunpack.c.l.b16 %v109
    %v202 = vunpack.c.h.b16 %v109
    %v203 = vunpack.c.l.b16 %v110
    %v204 = vunpack.c.h.b16 %v110
    %v205 = vunpack.c.l.b16 %v111
    %v206 = vunpack.c.h.b16 %v111
    %v207 = vunpack.c.l.b16 %v112
    %v208 = vunpack.c.h.b16 %v112
    %v209 = vunpack.c.l.b16 %v113
    %v210 = vunpack.c.h.b16 %v113
    %v211 = vunpack.c.l.b16 %v114
    %v212 = vunpack.c.h.b16 %v114
    %v213 = vunpack.c.l.b16 %v115
    %v214 = vunpack.c.h.b16 %v115
    %v215 = vunpack.c.l.b16 %v116
    %v216 = vunpack.c.h.b16 %v116
    %v217 = vunpack.c.l.b16 %v117
    %v218 = vunpack.c.h.b16 %v117
    %v219 = vunpack.c.l.b16 %v118
    %v220 = vunpack.c.h.b16 %v118
    %v221 = vunpack.c.l.b16 %v119
    %v222 = vunpack.c.h.b16 %v119
    %v223 = vunpack.c.l.b16 %v120
    %v224 = vunpack.c.h.b16 %v120
    %v225 = vunpack.c.l.b16 %v121
    %v226 = vunpack.c.h.b16 %v121
    %v227 = vunpack.c.l.b16 %v122
    %v228 = vunpack.c.h.b16 %v122
    %v229 = vunpack.c.l.b16 %v123
    %v230 = vunpack.c.h.b16 %v123
    %v231 = vunpack.c.l.b16 %v124
    %v232 = vunpack.c.h.b16 %v124
    %v233 = vunpack.c.l.b16 %v125
    %v234 = vunpack.c.h.b16 %v125
    %v235 = vunpack.c.l.b16 %v126
    %v236 = vunpack.c.h.b16 %v126
    %v237 = vunpack.c.l.b16 %v127
    %v238 = vunpack.c.h.b16 %v127
    %v239 = vunpack.c.l.b16 %v128
    %v240 = vunpack.c.h.b16 %v128
    %v241 = vunpack.c.l.b16 %v129
    %v242 = vunpack.c.h.b16 %v129
    %v243 = vunpack.c.l.b16 %v130
    %v244 = vunpack.c.h.b16 %v130
    %v245 = vunpack.c.l.b16 %v131
    %v246 = vunpack.c.h.b16 %v131
    %v247 = vunpack.c.l.b16 %v132
    %v248 = vunpack.c.h.b16 %v132
    %v249 = vunpack.c.l.b16 %v133
    %v250 = vunpack.c.h.b16 %v133
    %v251 = vunpack.c.l.b16 %v134
    %v252 = vunpack.c.h.b16 %v134
    %v253 = vpack.c.b16 %v193, %v189
    %v254 = vpack.c.b16 %v194, %v190
    %v255 = vpack.c.b16 %v195, %v191
    %v256 = vpack.c.b16 %v196, %v192
    %v257 = vpack.c.b16 %v201, %v197
    %v258 = vpack.c.b16 %v202, %v198
    %v259 = vpack.c.b16 %v203, %v199
    %v260 = vpack.c.b16 %v204, %v200
    %v261 = vpack.c.b16 %v209, %v205
    %v262 = vpack.c.b16 %v210, %v206
    %v263 = vpack.c.b16 %v211, %v207
    %v264 = vpack.c.b16 %v212, %v208
    %v265 = vpack.c.b16 %v217, %v213
    %v266 = vpack.c.b16 %v218, %v214
    %v267 = vpack.c.b16 %v219, %v215
    %v268 = vpack.c.b16 %v220, %v216
    %v269 = vpack.c.b16 %v225, %v221
    %v270 = vpack.c.b16 %v226, %v222
    %v271 = vpack.c.b16 %v227, %v223
    %v272 = vpack.c.b16 %v228, %v224
    %v273 = vpack.c.b16 %v233, %v229
    %v274 = vpack.c.b16 %v234, %v230
    %v275 = vpack.c.b16 %v235, %v231
    %v276 = vpack.c.b16 %v236, %v232
    %v277 = vpack.c.b16 %v241, %v237
    %v278 = vpack.c.b16 %v242, %v238
    %v279 = vpack.c.b16 %v243, %v239
    %v280 = vpack.c.b16 %v244, %v240
    %v281 = vpack.c.b16 %v249, %v245
    %v282 = vpack.c.b16 %v250, %v246
    %v283 = vpack.c.b16 %v251, %v247
    %v284 = vpack.c.b16 %v252, %v248
    %317 = vmatprep.subr.bf16.mxu0 %v254
    %318 = vmatpush1.bf16.msra.mxu0 %v253
    %319 = vmatprep.subr.bf16.mxu0 %v258
    %320 = vmatpush1.bf16.msra.mxu0 %v257
    %321 = vmatprep.subr.bf16.mxu0 %v262
    %322 = vmatpush1.bf16.msra.mxu0 %v261
    %323 = vmatprep.subr.bf16.mxu0 %v266
    %324 = vmatpush1.bf16.msra.mxu0 %v265
    %325 = vmatprep.subr.bf16.mxu0 %v270
    %326 = vmatpush1.bf16.msra.mxu0 %v269
    %327 = vmatprep.subr.bf16.mxu0 %v274
    %328 = vmatpush1.bf16.msra.mxu0 %v273
    %329 = vmatprep.subr.bf16.mxu0 %v278
    %330 = vmatpush1.bf16.msra.mxu0 %v277
    %331 = vmatprep.subr.bf16.mxu0 %v282
    %332 = vmatpush1.bf16.msra.mxu0 %v281
    %333 = vmatprep.subr.bf16.mxu0 0
    %334 = vmatpush1.bf16.msra.mxu0 0
    %335 = vmatprep.subr.bf16.mxu0 0
    %336 = vmatpush1.bf16.msra.mxu0 0
    %337 = vmatprep.subr.bf16.mxu0 0
    %338 = vmatpush1.bf16.msra.mxu0 0
    %339 = vmatprep.subr.bf16.mxu0 0
    %340 = vmatpush1.bf16.msra.mxu0 0
    %341 = vmatprep.subr.bf16.mxu0 0
    %342 = vmatpush1.bf16.msra.mxu0 0
    %343 = vmatprep.subr.bf16.mxu0 0
    %344 = vmatpush1.bf16.msra.mxu0 0
    %345 = vmatprep.subr.bf16.mxu0 0
    %346 = vmatpush1.bf16.msra.mxu0 0
    %347 = vmatprep.subr.bf16.mxu0 0
    %348 = vmatpush1.bf16.msra.mxu0 0
    %349 = vmatprep.mubr.bf16.mxu0 0
    %350 = vmatmul.mubr.bf16.gmra.mrb[0].mxu0 %v102
    %v351 = vpop.f32.mrb[0].mxu0
    %v352 = vadd.f32 %v140, %v351
    %v353 = vpop.f32.mrb[0].mxu0
    %v354 = vadd.f32 %v144, %v353
    %v355 = vpop.f32.mrb[0].mxu0
    %v356 = vadd.f32 %v140, %v355
    %v357 = vpop.f32.mrb[0].mxu0
    %v358 = vadd.f32 %v144, %v357
    %359 = vdwg.mxu0
    %360 = vmatprep.subr.bf16.mxu0 %v256
    %361 = vmatpush1.bf16.msra.mxu0 %v255
    %362 = vmatprep.subr.bf16.mxu0 %v260
    %363 = vmatpush1.bf16.msra.mxu0 %v259
    %364 = vmatprep.subr.bf16.mxu0 %v264
    %365 = vmatpush1.bf16.msra.mxu0 %v263
    %366 = vmatprep.subr.bf16.mxu0 %v268
    %367 = vmatpush1.bf16.msra.mxu0 %v267
    %368 = vmatprep.subr.bf16.mxu0 %v272
    %369 = vmatpush1.bf16.msra.mxu0 %v271
    %370 = vmatprep.subr.bf16.mxu0 %v276
    %371 = vmatpush1.bf16.msra.mxu0 %v275
    %372 = vmatprep.subr.bf16.mxu0 %v280
    %373 = vmatpush1.bf16.msra.mxu0 %v279
    %374 = vmatprep.subr.bf16.mxu0 %v284
    %375 = vmatpush1.bf16.msra.mxu0 %v283
    %376 = vmatprep.subr.bf16.mxu0 0
    %377 = vmatpush1.bf16.msra.mxu0 0
    %378 = vmatprep.subr.bf16.mxu0 0
    %379 = vmatpush1.bf16.msra.mxu0 0
    %380 = vmatprep.subr.bf16.mxu0 0
    %381 = vmatpush1.bf16.msra.mxu0 0
    %382 = vmatprep.subr.bf16.mxu0 0
    %383 = vmatpush1.bf16.msra.mxu0 0
    %384 = vmatprep.subr.bf16.mxu0 0
    %385 = vmatpush1.bf16.msra.mxu0 0
    %386 = vmatprep.subr.bf16.mxu0 0
    %387 = vmatpush1.bf16.msra.mxu0 0
    %388 = vmatprep.subr.bf16.mxu0 0
    %389 = vmatpush1.bf16.msra.mxu0 0
    %390 = vmatprep.subr.bf16.mxu0 0
    %391 = vmatpush1.bf16.msra.mxu0 0
    %392 = vmatprep.mubr.bf16.mxu0 0
    %393 = vmatmul.mubr.bf16.gmra.mrb[0].mxu0 %v102
    %v394 = vpop.f32.mrb[0].mxu0
    %v395 = vadd.f32 %v148, %v394
    %v396 = vpop.f32.mrb[0].mxu0
    %v397 = vadd.f32 %v152, %v396
    %v398 = vpop.f32.mrb[0].mxu0
    %v399 = vadd.f32 %v148, %v398
    %v400 = vpop.f32.mrb[0].mxu0
    %v401 = vadd.f32 %v152, %v400
    %402 = vdwg.mxu0
    %v403 = vmax.f32 %v352, 0.0
    %v404 = vmax.f32 %v354, 0.0
    %v405 = vmax.f32 %v395, 0.0
    %v406 = vmax.f32 %v397, 0.0
    %v407 = vmax.f32 %v356, 0.0
    %v408 = vmax.f32 %v358, 0.0
    %v409 = vmax.f32 %v399, 0.0
    %v410 = vmax.f32 %v401, 0.0
    %v411 = vpack.c.bf16 %v407, %v403
    %v412 = vpack.c.bf16 %v408, %v404
    %v413 = vpack.c.bf16 %v409, %v405
    %v414 = vpack.c.bf16 %v410, %v406
    %v415 = vld [vmem:[#allocation7] sm:$0xff]
    %v416 = vld [vmem:[#allocation7 + $0x8] sm:$0xff]
    %v417 = vld [vmem:[#allocation7 + $0x10] sm:$0xff]
    %v418 = vld [vmem:[#allocation7 + $0x18] sm:$0xff]
    %v419 = vld [vmem:[#allocation7 + $0x20] sm:$0xff]
    %v420 = vld [vmem:[#allocation7 + $0x28] sm:$0xff]
    %v421 = vld [vmem:[#allocation7 + $0x30] sm:$0xff]
    %v422 = vld [vmem:[#allocation7 + $0x38] sm:$0xff]
    %v423 = vld [vmem:[#allocation7 + $0x40] sm:$0xff]
    %v424 = vld [vmem:[#allocation7 + $0x48] sm:$0xff]
    %v425 = vld [vmem:[#allocation7 + $0x50] sm:$0xff]
    %v426 = vld [vmem:[#allocation7 + $0x58] sm:$0xff]
    %v427 = vld [vmem:[#allocation7 + $0x60] sm:$0xff]
    %v428 = vld [vmem:[#allocation7 + $0x68] sm:$0xff]
    %v429 = vld [vmem:[#allocation7 + $0x70] sm:$0xff]
    %v430 = vld [vmem:[#allocation7 + $0x78] sm:$0xff]
    %v431 = vld [vmem:[#allocation7 + $0x80] sm:$0xff]
    %v432 = vld [vmem:[#allocation7 + $0x88] sm:$0xff]
    %v433 = vld [vmem:[#allocation7 + $0x90] sm:$0xff]
    %v434 = vld [vmem:[#allocation7 + $0x98] sm:$0xff]
    %v435 = vld [vmem:[#allocation7 + $0xa0] sm:$0xff]
    %v436 = vld [vmem:[#allocation7 + $0xa8] sm:$0xff]
    %v437 = vld [vmem:[#allocation7 + $0xb0] sm:$0xff]
    %v438 = vld [vmem:[#allocation7 + $0xb8] sm:$0xff]
    %v439 = vld [vmem:[#allocation7 + $0xc0] sm:$0xff]
    %v440 = vld [vmem:[#allocation7 + $0xc8] sm:$0xff]
    %v441 = vld [vmem:[#allocation7 + $0xd0] sm:$0xff]
    %v442 = vld [vmem:[#allocation7 + $0xd8] sm:$0xff]
    %v443 = vld [vmem:[#allocation7 + $0xe0] sm:$0xff]
    %v444 = vld [vmem:[#allocation7 + $0xe8] sm:$0xff]
    %v445 = vld [vmem:[#allocation7 + $0xf0] sm:$0xff]
    %v446 = vld [vmem:[#allocation7 + $0xf8] sm:$0xff]
    %v447 = vld [vmem:[#allocation7 + $0x100] sm:$0xff]
    %v448 = vld [vmem:[#allocation7 + $0x108] sm:$0xff]
    %v449 = vld [vmem:[#allocation7 + $0x110] sm:$0xff]
    %v450 = vld [vmem:[#allocation7 + $0x118] sm:$0xff]
    %v451 = vld [vmem:[#allocation7 + $0x120] sm:$0xff]
    %v452 = vld [vmem:[#allocation7 + $0x128] sm:$0xff]
    %v453 = vld [vmem:[#allocation7 + $0x130] sm:$0xff]
    %v454 = vld [vmem:[#allocation7 + $0x138] sm:$0xff]
    %v455 = vld [vmem:[#allocation7 + $0x140] sm:$0xff]
    %v456 = vld [vmem:[#allocation7 + $0x148] sm:$0xff]
    %v457 = vld [vmem:[#allocation7 + $0x150] sm:$0xff]
    %v458 = vld [vmem:[#allocation7 + $0x158] sm:$0xff]
    %v459 = vld [vmem:[#allocation7 + $0x160] sm:$0xff]
    %v460 = vld [vmem:[#allocation7 + $0x168] sm:$0xff]
    %v461 = vld [vmem:[#allocation7 + $0x170] sm:$0xff]
    %v462 = vld [vmem:[#allocation7 + $0x178] sm:$0xff]
    %v463 = vld [vmem:[#allocation7 + $0x180] sm:$0xff]
    %v464 = vld [vmem:[#allocation7 + $0x188] sm:$0xff]
    %v465 = vld [vmem:[#allocation7 + $0x190] sm:$0xff]
    %v466 = vld [vmem:[#allocation7 + $0x198] sm:$0xff]
    %v467 = vld [vmem:[#allocation7 + $0x1a0] sm:$0xff]
    %v468 = vld [vmem:[#allocation7 + $0x1a8] sm:$0xff]
    %v469 = vld [vmem:[#allocation7 + $0x1b0] sm:$0xff]
    %v470 = vld [vmem:[#allocation7 + $0x1b8] sm:$0xff]
    %v471 = vld [vmem:[#allocation7 + $0x1c0] sm:$0xff]
    %v472 = vld [vmem:[#allocation7 + $0x1c8] sm:$0xff]
    %v473 = vld [vmem:[#allocation7 + $0x1d0] sm:$0xff]
    %v474 = vld [vmem:[#allocation7 + $0x1d8] sm:$0xff]
    %v475 = vld [vmem:[#allocation7 + $0x1e0] sm:$0xff]
    %v476 = vld [vmem:[#allocation7 + $0x1e8] sm:$0xff]
    %v477 = vld [vmem:[#allocation7 + $0x1f0] sm:$0xff]
    %v478 = vld [vmem:[#allocation7 + $0x1f8] sm:$0xff]
    %v479 = vld [vmem:[%s4] sm:$0x3]
    %v481 = vlaneseq
    %v482 = vshrl.u32 %v481, 7
    %v483 = vsub.s32 0, %v482
    %v484 = vrot.slane %v479, %v483
    %v485 = vlaneseq
    %v486 = vshrl.u32 %v485, 7
    %v487 = vsub.s32 1, %v486
    %v488 = vrot.slane %v479, %v487
    %v555 = vunpack.c.l.b16 %v415
    %v556 = vunpack.c.h.b16 %v415
    %v557 = vunpack.c.l.b16 %v416
    %v558 = vunpack.c.h.b16 %v416
    %v559 = vunpack.c.l.b16 %v417
    %v560 = vunpack.c.h.b16 %v417
    %v561 = vunpack.c.l.b16 %v418
    %v562 = vunpack.c.h.b16 %v418
    %v563 = vunpack.c.l.b16 %v419
    %v564 = vunpack.c.h.b16 %v419
    %v565 = vunpack.c.l.b16 %v420
    %v566 = vunpack.c.h.b16 %v420
    %v567 = vunpack.c.l.b16 %v421
    %v568 = vunpack.c.h.b16 %v421
    %v569 = vunpack.c.l.b16 %v422
    %v570 = vunpack.c.h.b16 %v422
    %v571 = vunpack.c.l.b16 %v423
    %v572 = vunpack.c.h.b16 %v423
    %v573 = vunpack.c.l.b16 %v424
    %v574 = vunpack.c.h.b16 %v424
    %v575 = vunpack.c.l.b16 %v425
    %v576 = vunpack.c.h.b16 %v425
    %v577 = vunpack.c.l.b16 %v426
    %v578 = vunpack.c.h.b16 %v426
    %v579 = vunpack.c.l.b16 %v427
    %v580 = vunpack.c.h.b16 %v427
    %v581 = vunpack.c.l.b16 %v428
    %v582 = vunpack.c.h.b16 %v428
    %v583 = vunpack.c.l.b16 %v429
    %v584 = vunpack.c.h.b16 %v429
    %v585 = vunpack.c.l.b16 %v430
    %v586 = vunpack.c.h.b16 %v430
    %v587 = vunpack.c.l.b16 %v431
    %v588 = vunpack.c.h.b16 %v431
    %v589 = vunpack.c.l.b16 %v432
    %v590 = vunpack.c.h.b16 %v432
    %v591 = vunpack.c.l.b16 %v433
    %v592 = vunpack.c.h.b16 %v433
    %v593 = vunpack.c.l.b16 %v434
    %v594 = vunpack.c.h.b16 %v434
    %v595 = vunpack.c.l.b16 %v435
    %v596 = vunpack.c.h.b16 %v435
    %v597 = vunpack.c.l.b16 %v436
    %v598 = vunpack.c.h.b16 %v436
    %v599 = vunpack.c.l.b16 %v437
    %v600 = vunpack.c.h.b16 %v437
    %v601 = vunpack.c.l.b16 %v438
    %v602 = vunpack.c.h.b16 %v438
    %v603 = vunpack.c.l.b16 %v439
    %v604 = vunpack.c.h.b16 %v439
    %v605 = vunpack.c.l.b16 %v440
    %v606 = vunpack.c.h.b16 %v440
    %v607 = vunpack.c.l.b16 %v441
    %v608 = vunpack.c.h.b16 %v441
    %v609 = vunpack.c.l.b16 %v442
    %v610 = vunpack.c.h.b16 %v442
    %v611 = vunpack.c.l.b16 %v443
    %v612 = vunpack.c.h.b16 %v443
    %v613 = vunpack.c.l.b16 %v444
    %v614 = vunpack.c.h.b16 %v444
    %v615 = vunpack.c.l.b16 %v445
    %v616 = vunpack.c.h.b16 %v445
    %v617 = vunpack.c.l.b16 %v446
    %v618 = vunpack.c.h.b16 %v446
    %v619 = vunpack.c.l.b16 %v447
    %v620 = vunpack.c.h.b16 %v447
    %v621 = vunpack.c.l.b16 %v448
    %v622 = vunpack.c.h.b16 %v448
    %v623 = vunpack.c.l.b16 %v449
    %v624 = vunpack.c.h.b16 %v449
    %v625 = vunpack.c.l.b16 %v450
    %v626 = vunpack.c.h.b16 %v450
    %v627 = vunpack.c.l.b16 %v451
    %v628 = vunpack.c.h.b16 %v451
    %v629 = vunpack.c.l.b16 %v452
    %v630 = vunpack.c.h.b16 %v452
    %v631 = vunpack.c.l.b16 %v453
    %v632 = vunpack.c.h.b16 %v453
    %v633 = vunpack.c.l.b16 %v454
    %v634 = vunpack.c.h.b16 %v454
    %v635 = vunpack.c.l.b16 %v455
    %v636 = vunpack.c.h.b16 %v455
    %v637 = vunpack.c.l.b16 %v456
    %v638 = vunpack.c.h.b16 %v456
    %v639 = vunpack.c.l.b16 %v457
    %v640 = vunpack.c.h.b16 %v457
    %v641 = vunpack.c.l.b16 %v458
    %v642 = vunpack.c.h.b16 %v458
    %v643 = vunpack.c.l.b16 %v459
    %v644 = vunpack.c.h.b16 %v459
    %v645 = vunpack.c.l.b16 %v460
    %v646 = vunpack.c.h.b16 %v460
    %v647 = vunpack.c.l.b16 %v461
    %v648 = vunpack.c.h.b16 %v461
    %v649 = vunpack.c.l.b16 %v462
    %v650 = vunpack.c.h.b16 %v462
    %v651 = vunpack.c.l.b16 %v463
    %v652 = vunpack.c.h.b16 %v463
    %v653 = vunpack.c.l.b16 %v464
    %v654 = vunpack.c.h.b16 %v464
    %v655 = vunpack.c.l.b16 %v465
    %v656 = vunpack.c.h.b16 %v465
    %v657 = vunpack.c.l.b16 %v466
    %v658 = vunpack.c.h.b16 %v466
    %v659 = vunpack.c.l.b16 %v467
    %v660 = vunpack.c.h.b16 %v467
    %v661 = vunpack.c.l.b16 %v468
    %v662 = vunpack.c.h.b16 %v468
    %v663 = vunpack.c.l.b16 %v469
    %v664 = vunpack.c.h.b16 %v469
    %v665 = vunpack.c.l.b16 %v470
    %v666 = vunpack.c.h.b16 %v470
    %v667 = vunpack.c.l.b16 %v471
    %v668 = vunpack.c.h.b16 %v471
    %v669 = vunpack.c.l.b16 %v472
    %v670 = vunpack.c.h.b16 %v472
    %v671 = vunpack.c.l.b16 %v473
    %v672 = vunpack.c.h.b16 %v473
    %v673 = vunpack.c.l.b16 %v474
    %v674 = vunpack.c.h.b16 %v474
    %v675 = vunpack.c.l.b16 %v475
    %v676 = vunpack.c.h.b16 %v475
    %v677 = vunpack.c.l.b16 %v476
    %v678 = vunpack.c.h.b16 %v476
    %v679 = vunpack.c.l.b16 %v477
    %v680 = vunpack.c.h.b16 %v477
    %v681 = vunpack.c.l.b16 %v478
    %v682 = vunpack.c.h.b16 %v478
    %v683 = vpack.c.b16 %v557, %v555
    %v684 = vpack.c.b16 %v558, %v556
    %v685 = vpack.c.b16 %v561, %v559
    %v686 = vpack.c.b16 %v562, %v560
    %v687 = vpack.c.b16 %v565, %v563
    %v688 = vpack.c.b16 %v566, %v564
    %v689 = vpack.c.b16 %v569, %v567
    %v690 = vpack.c.b16 %v570, %v568
    %v691 = vpack.c.b16 %v573, %v571
    %v692 = vpack.c.b16 %v574, %v572
    %v693 = vpack.c.b16 %v577, %v575
    %v694 = vpack.c.b16 %v578, %v576
    %v695 = vpack.c.b16 %v581, %v579
    %v696 = vpack.c.b16 %v582, %v580
    %v697 = vpack.c.b16 %v585, %v583
    %v698 = vpack.c.b16 %v586, %v584
    %v699 = vpack.c.b16 %v589, %v587
    %v700 = vpack.c.b16 %v590, %v588
    %v701 = vpack.c.b16 %v593, %v591
    %v702 = vpack.c.b16 %v594, %v592
    %v703 = vpack.c.b16 %v597, %v595
    %v704 = vpack.c.b16 %v598, %v596
    %v705 = vpack.c.b16 %v601, %v599
    %v706 = vpack.c.b16 %v602, %v600
    %v707 = vpack.c.b16 %v605, %v603
    %v708 = vpack.c.b16 %v606, %v604
    %v709 = vpack.c.b16 %v609, %v607
    %v710 = vpack.c.b16 %v610, %v608
    %v711 = vpack.c.b16 %v613, %v611
    %v712 = vpack.c.b16 %v614, %v612
    %v713 = vpack.c.b16 %v617, %v615
    %v714 = vpack.c.b16 %v618, %v616
    %v715 = vpack.c.b16 %v621, %v619
    %v716 = vpack.c.b16 %v622, %v620
    %v717 = vpack.c.b16 %v625, %v623
    %v718 = vpack.c.b16 %v626, %v624
    %v719 = vpack.c.b16 %v629, %v627
    %v720 = vpack.c.b16 %v630, %v628
    %v721 = vpack.c.b16 %v633, %v631
    %v722 = vpack.c.b16 %v634, %v632
    %v723 = vpack.c.b16 %v637, %v635
    %v724 = vpack.c.b16 %v638, %v636
    %v725 = vpack.c.b16 %v641, %v639
    %v726 = vpack.c.b16 %v642, %v640
    %v727 = vpack.c.b16 %v645, %v643
    %v728 = vpack.c.b16 %v646, %v644
    %v729 = vpack.c.b16 %v649, %v647
    %v730 = vpack.c.b16 %v650, %v648
    %v731 = vpack.c.b16 %v653, %v651
    %v732 = vpack.c.b16 %v654, %v652
    %v733 = vpack.c.b16 %v657, %v655
    %v734 = vpack.c.b16 %v658, %v656
    %v735 = vpack.c.b16 %v661, %v659
    %v736 = vpack.c.b16 %v662, %v660
    %v737 = vpack.c.b16 %v665, %v663
    %v738 = vpack.c.b16 %v666, %v664
    %v739 = vpack.c.b16 %v669, %v667
    %v740 = vpack.c.b16 %v670, %v668
    %v741 = vpack.c.b16 %v673, %v671
    %v742 = vpack.c.b16 %v674, %v672
    %v743 = vpack.c.b16 %v677, %v675
    %v744 = vpack.c.b16 %v678, %v676
    %v745 = vpack.c.b16 %v681, %v679
    %v746 = vpack.c.b16 %v682, %v680
    %811 = vmatprep.subr.bf16.mxu0 %v684
    %812 = vmatpush1.bf16.msra.mxu0 %v683
    %813 = vmatprep.subr.bf16.mxu0 %v686
    %814 = vmatpush1.bf16.msra.mxu0 %v685
    %815 = vmatprep.subr.bf16.mxu0 %v688
    %816 = vmatpush1.bf16.msra.mxu0 %v687
    %817 = vmatprep.subr.bf16.mxu0 %v690
    %818 = vmatpush1.bf16.msra.mxu0 %v689
    %819 = vmatprep.subr.bf16.mxu0 %v692
    %820 = vmatpush1.bf16.msra.mxu0 %v691
    %821 = vmatprep.subr.bf16.mxu0 %v694
    %822 = vmatpush1.bf16.msra.mxu0 %v693
    %823 = vmatprep.subr.bf16.mxu0 %v696
    %824 = vmatpush1.bf16.msra.mxu0 %v695
    %825 = vmatprep.subr.bf16.mxu0 %v698
    %826 = vmatpush1.bf16.msra.mxu0 %v697
    %827 = vmatprep.subr.bf16.mxu0 %v700
    %828 = vmatpush1.bf16.msra.mxu0 %v699
    %829 = vmatprep.subr.bf16.mxu0 %v702
    %830 = vmatpush1.bf16.msra.mxu0 %v701
    %831 = vmatprep.subr.bf16.mxu0 %v704
    %832 = vmatpush1.bf16.msra.mxu0 %v703
    %833 = vmatprep.subr.bf16.mxu0 %v706
    %834 = vmatpush1.bf16.msra.mxu0 %v705
    %835 = vmatprep.subr.bf16.mxu0 %v708
    %836 = vmatpush1.bf16.msra.mxu0 %v707
    %837 = vmatprep.subr.bf16.mxu0 %v710
    %838 = vmatpush1.bf16.msra.mxu0 %v709
    %839 = vmatprep.subr.bf16.mxu0 %v712
    %840 = vmatpush1.bf16.msra.mxu0 %v711
    %841 = vmatprep.subr.bf16.mxu0 %v714
    %842 = vmatpush1.bf16.msra.mxu0 %v713
    %843 = vmatprep.mubr.bf16.mxu0 %v412
    %844 = vmatmul.mubr.bf16.gmra.mrb[0].mxu0 %v411
    %v845 = vpop.f32.mrb[0].mxu0
    %v846 = vadd.f32 %v484, %v845
    %v847 = vpop.f32.mrb[0].mxu0
    %v848 = vadd.f32 %v488, %v847
    %v849 = vpop.f32.mrb[0].mxu0
    %v850 = vadd.f32 %v484, %v849
    %v851 = vpop.f32.mrb[0].mxu0
    %v852 = vadd.f32 %v488, %v851
    %853 = vdwg.mxu0
    %854 = vmatprep.subr.bf16.mxu0 %v716
    %855 = vmatpush1.bf16.msra.mxu0 %v715
    %856 = vmatprep.subr.bf16.mxu0 %v718
    %857 = vmatpush1.bf16.msra.mxu0 %v717
    %858 = vmatprep.subr.bf16.mxu0 %v720
    %859 = vmatpush1.bf16.msra.mxu0 %v719
    %860 = vmatprep.subr.bf16.mxu0 %v722
    %861 = vmatpush1.bf16.msra.mxu0 %v721
    %862 = vmatprep.subr.bf16.mxu0 %v724
    %863 = vmatpush1.bf16.msra.mxu0 %v723
    %864 = vmatprep.subr.bf16.mxu0 %v726
    %865 = vmatpush1.bf16.msra.mxu0 %v725
    %866 = vmatprep.subr.bf16.mxu0 %v728
    %867 = vmatpush1.bf16.msra.mxu0 %v727
    %868 = vmatprep.subr.bf16.mxu0 %v730
    %869 = vmatpush1.bf16.msra.mxu0 %v729
    %870 = vmatprep.subr.bf16.mxu0 %v732
    %871 = vmatpush1.bf16.msra.mxu0 %v731
    %872 = vmatprep.subr.bf16.mxu0 %v734
    %873 = vmatpush1.bf16.msra.mxu0 %v733
    %874 = vmatprep.subr.bf16.mxu0 %v736
    %875 = vmatpush1.bf16.msra.mxu0 %v735
    %876 = vmatprep.subr.bf16.mxu0 %v738
    %877 = vmatpush1.bf16.msra.mxu0 %v737
    %878 = vmatprep.subr.bf16.mxu0 %v740
    %879 = vmatpush1.bf16.msra.mxu0 %v739
    %880 = vmatprep.subr.bf16.mxu0 %v742
    %881 = vmatpush1.bf16.msra.mxu0 %v741
    %882 = vmatprep.subr.bf16.mxu0 %v744
    %883 = vmatpush1.bf16.msra.mxu0 %v743
    %884 = vmatprep.subr.bf16.mxu0 %v746
    %885 = vmatpush1.bf16.msra.mxu0 %v745
    %886 = vmatprep.mubr.bf16.mxu0 %v414
    %887 = vmatmul.mubr.bf16.gmra.mrb[0].mxu0 %v413
    %v888 = vpop.f32.mrb[0].mxu0
    %v889 = vadd.f32 %v846, %v888
    %v890 = vpop.f32.mrb[0].mxu0
    %v891 = vadd.f32 %v848, %v890
    %v892 = vpop.f32.mrb[0].mxu0
    %v893 = vadd.f32 %v850, %v892
    %v894 = vpop.f32.mrb[0].mxu0
    %v895 = vadd.f32 %v852, %v894
    %896 = vdwg.mxu0
    %v897 = vpack.c.bf16 %v893, %v889
    %v898 = vpack.c.bf16 %v895, %v891
    %v899 = vld [vmem:[#allocation8] sm:$0xff]
    %v900 = vld [vmem:[#allocation8 + $0x8] sm:$0xff]
    %v901 = vld [vmem:[#allocation8 + $0x10] sm:$0xff]
    %v902 = vld [vmem:[#allocation8 + $0x18] sm:$0xff]
    %v903 = vld [vmem:[#allocation8 + $0x20] sm:$0xff]
    %v904 = vld [vmem:[#allocation8 + $0x28] sm:$0xff]
    %v905 = vld [vmem:[#allocation8 + $0x30] sm:$0xff]
    %v906 = vld [vmem:[#allocation8 + $0x38] sm:$0xff]
    %v907 = vld [vmem:[#allocation8 + $0x40] sm:$0xff]
    %v908 = vld [vmem:[#allocation8 + $0x48] sm:$0xff]
    %v909 = vld [vmem:[#allocation8 + $0x50] sm:$0xff]
    %v910 = vld [vmem:[#allocation8 + $0x58] sm:$0xff]
    %v911 = vld [vmem:[#allocation8 + $0x60] sm:$0xff]
    %v912 = vld [vmem:[#allocation8 + $0x68] sm:$0xff]
    %v913 = vld [vmem:[#allocation8 + $0x70] sm:$0xff]
    %v914 = vld [vmem:[#allocation8 + $0x78] sm:$0xff]
    %v915 = vld [vmem:[#allocation8 + $0x80] sm:$0xff]
    %v916 = vld [vmem:[#allocation8 + $0x88] sm:$0xff]
    %v917 = vld [vmem:[#allocation8 + $0x90] sm:$0xff]
    %v918 = vld [vmem:[#allocation8 + $0x98] sm:$0xff]
    %v919 = vld [vmem:[#allocation8 + $0xa0] sm:$0xff]
    %v920 = vld [vmem:[#allocation8 + $0xa8] sm:$0xff]
    %v921 = vld [vmem:[#allocation8 + $0xb0] sm:$0xff]
    %v922 = vld [vmem:[#allocation8 + $0xb8] sm:$0xff]
    %v923 = vld [vmem:[#allocation8 + $0xc0] sm:$0xff]
    %v924 = vld [vmem:[#allocation8 + $0xc8] sm:$0xff]
    %v925 = vld [vmem:[#allocation8 + $0xd0] sm:$0xff]
    %v926 = vld [vmem:[#allocation8 + $0xd8] sm:$0xff]
    %v927 = vld [vmem:[#allocation8 + $0xe0] sm:$0xff]
    %v928 = vld [vmem:[#allocation8 + $0xe8] sm:$0xff]
    %v929 = vld [vmem:[#allocation8 + $0xf0] sm:$0xff]
    %v930 = vld [vmem:[#allocation8 + $0xf8] sm:$0xff]
    %v931 = vld [vmem:[#allocation8 + $0x100] sm:$0xff]
    %v932 = vld [vmem:[#allocation8 + $0x108] sm:$0xff]
    %v933 = vld [vmem:[#allocation8 + $0x110] sm:$0xff]
    %v934 = vld [vmem:[#allocation8 + $0x118] sm:$0xff]
    %v935 = vld [vmem:[#allocation8 + $0x120] sm:$0xff]
    %v936 = vld [vmem:[#allocation8 + $0x128] sm:$0xff]
    %v937 = vld [vmem:[#allocation8 + $0x130] sm:$0xff]
    %v938 = vld [vmem:[#allocation8 + $0x138] sm:$0xff]
    %v939 = vld [vmem:[#allocation8 + $0x140] sm:$0xff]
    %v940 = vld [vmem:[#allocation8 + $0x148] sm:$0xff]
    %v941 = vld [vmem:[#allocation8 + $0x150] sm:$0xff]
    %v942 = vld [vmem:[#allocation8 + $0x158] sm:$0xff]
    %v943 = vld [vmem:[#allocation8 + $0x160] sm:$0xff]
    %v944 = vld [vmem:[#allocation8 + $0x168] sm:$0xff]
    %v945 = vld [vmem:[#allocation8 + $0x170] sm:$0xff]
    %v946 = vld [vmem:[#allocation8 + $0x178] sm:$0xff]
    %v947 = vld [vmem:[#allocation8 + $0x180] sm:$0xff]
    %v948 = vld [vmem:[#allocation8 + $0x188] sm:$0xff]
    %v949 = vld [vmem:[#allocation8 + $0x190] sm:$0xff]
    %v950 = vld [vmem:[#allocation8 + $0x198] sm:$0xff]
    %v951 = vld [vmem:[#allocation8 + $0x1a0] sm:$0xff]
    %v952 = vld [vmem:[#allocation8 + $0x1a8] sm:$0xff]
    %v953 = vld [vmem:[#allocation8 + $0x1b0] sm:$0xff]
    %v954 = vld [vmem:[#allocation8 + $0x1b8] sm:$0xff]
    %v955 = vld [vmem:[#allocation8 + $0x1c0] sm:$0xff]
    %v956 = vld [vmem:[#allocation8 + $0x1c8] sm:$0xff]
    %v957 = vld [vmem:[#allocation8 + $0x1d0] sm:$0xff]
    %v958 = vld [vmem:[#allocation8 + $0x1d8] sm:$0xff]
    %v959 = vld [vmem:[#allocation8 + $0x1e0] sm:$0xff]
    %v960 = vld [vmem:[#allocation8 + $0x1e8] sm:$0xff]
    %v961 = vld [vmem:[#allocation8 + $0x1f0] sm:$0xff]
    %v962 = vld [vmem:[#allocation8 + $0x1f8] sm:$0xff]
    %v963 = vld [vmem:[%s6] sm:$0xf]
    %v965 = vlaneseq
    %v966 = vshrl.u32 %v965, 7
    %v967 = vsub.s32 0, %v966
    %v968 = vrot.slane %v963, %v967
    %v969 = vlaneseq
    %v970 = vshrl.u32 %v969, 7
    %v971 = vsub.s32 1, %v970
    %v972 = vrot.slane %v963, %v971
    %v973 = vlaneseq
    %v974 = vshrl.u32 %v973, 7
    %v975 = vsub.s32 2, %v974
    %v976 = vrot.slane %v963, %v975
    %v977 = vlaneseq
    %v978 = vshrl.u32 %v977, 7
    %v979 = vsub.s32 3, %v978
    %v980 = vrot.slane %v963, %v979
    %v1049 = vunpack.c.l.b16 %v899
    %v1050 = vunpack.c.h.b16 %v899
    %v1051 = vunpack.c.l.b16 %v900
    %v1052 = vunpack.c.h.b16 %v900
    %v1053 = vunpack.c.l.b16 %v901
    %v1054 = vunpack.c.h.b16 %v901
    %v1055 = vunpack.c.l.b16 %v902
    %v1056 = vunpack.c.h.b16 %v902
    %v1057 = vunpack.c.l.b16 %v903
    %v1058 = vunpack.c.h.b16 %v903
    %v1059 = vunpack.c.l.b16 %v904
    %v1060 = vunpack.c.h.b16 %v904
    %v1061 = vunpack.c.l.b16 %v905
    %v1062 = vunpack.c.h.b16 %v905
    %v1063 = vunpack.c.l.b16 %v906
    %v1064 = vunpack.c.h.b16 %v906
    %v1065 = vunpack.c.l.b16 %v907
    %v1066 = vunpack.c.h.b16 %v907
    %v1067 = vunpack.c.l.b16 %v908
    %v1068 = vunpack.c.h.b16 %v908
    %v1069 = vunpack.c.l.b16 %v909
    %v1070 = vunpack.c.h.b16 %v909
    %v1071 = vunpack.c.l.b16 %v910
    %v1072 = vunpack.c.h.b16 %v910
    %v1073 = vunpack.c.l.b16 %v911
    %v1074 = vunpack.c.h.b16 %v911
    %v1075 = vunpack.c.l.b16 %v912
    %v1076 = vunpack.c.h.b16 %v912
    %v1077 = vunpack.c.l.b16 %v913
    %v1078 = vunpack.c.h.b16 %v913
    %v1079 = vunpack.c.l.b16 %v914
    %v1080 = vunpack.c.h.b16 %v914
    %v1081 = vunpack.c.l.b16 %v915
    %v1082 = vunpack.c.h.b16 %v915
    %v1083 = vunpack.c.l.b16 %v916
    %v1084 = vunpack.c.h.b16 %v916
    %v1085 = vunpack.c.l.b16 %v917
    %v1086 = vunpack.c.h.b16 %v917
    %v1087 = vunpack.c.l.b16 %v918
    %v1088 = vunpack.c.h.b16 %v918
    %v1089 = vunpack.c.l.b16 %v919
    %v1090 = vunpack.c.h.b16 %v919
    %v1091 = vunpack.c.l.b16 %v920
    %v1092 = vunpack.c.h.b16 %v920
    %v1093 = vunpack.c.l.b16 %v921
    %v1094 = vunpack.c.h.b16 %v921
    %v1095 = vunpack.c.l.b16 %v922
    %v1096 = vunpack.c.h.b16 %v922
    %v1097 = vunpack.c.l.b16 %v923
    %v1098 = vunpack.c.h.b16 %v923
    %v1099 = vunpack.c.l.b16 %v924
    %v1100 = vunpack.c.h.b16 %v924
    %v1101 = vunpack.c.l.b16 %v925
    %v1102 = vunpack.c.h.b16 %v925
    %v1103 = vunpack.c.l.b16 %v926
    %v1104 = vunpack.c.h.b16 %v926
    %v1105 = vunpack.c.l.b16 %v927
    %v1106 = vunpack.c.h.b16 %v927
    %v1107 = vunpack.c.l.b16 %v928
    %v1108 = vunpack.c.h.b16 %v928
    %v1109 = vunpack.c.l.b16 %v929
    %v1110 = vunpack.c.h.b16 %v929
    %v1111 = vunpack.c.l.b16 %v930
    %v1112 = vunpack.c.h.b16 %v930
    %v1113 = vunpack.c.l.b16 %v931
    %v1114 = vunpack.c.h.b16 %v931
    %v1115 = vunpack.c.l.b16 %v932
    %v1116 = vunpack.c.h.b16 %v932
    %v1117 = vunpack.c.l.b16 %v933
    %v1118 = vunpack.c.h.b16 %v933
    %v1119 = vunpack.c.l.b16 %v934
    %v1120 = vunpack.c.h.b16 %v934
    %v1121 = vunpack.c.l.b16 %v935
    %v1122 = vunpack.c.h.b16 %v935
    %v1123 = vunpack.c.l.b16 %v936
    %v1124 = vunpack.c.h.b16 %v936
    %v1125 = vunpack.c.l.b16 %v937
    %v1126 = vunpack.c.h.b16 %v937
    %v1127 = vunpack.c.l.b16 %v938
    %v1128 = vunpack.c.h.b16 %v938
    %v1129 = vunpack.c.l.b16 %v939
    %v1130 = vunpack.c.h.b16 %v939
    %v1131 = vunpack.c.l.b16 %v940
    %v1132 = vunpack.c.h.b16 %v940
    %v1133 = vunpack.c.l.b16 %v941
    %v1134 = vunpack.c.h.b16 %v941
    %v1135 = vunpack.c.l.b16 %v942
    %v1136 = vunpack.c.h.b16 %v942
    %v1137 = vunpack.c.l.b16 %v943
    %v1138 = vunpack.c.h.b16 %v943
    %v1139 = vunpack.c.l.b16 %v944
    %v1140 = vunpack.c.h.b16 %v944
    %v1141 = vunpack.c.l.b16 %v945
    %v1142 = vunpack.c.h.b16 %v945
    %v1143 = vunpack.c.l.b16 %v946
    %v1144 = vunpack.c.h.b16 %v946
    %v1145 = vunpack.c.l.b16 %v947
    %v1146 = vunpack.c.h.b16 %v947
    %v1147 = vunpack.c.l.b16 %v948
    %v1148 = vunpack.c.h.b16 %v948
    %v1149 = vunpack.c.l.b16 %v949
    %v1150 = vunpack.c.h.b16 %v949
    %v1151 = vunpack.c.l.b16 %v950
    %v1152 = vunpack.c.h.b16 %v950
    %v1153 = vunpack.c.l.b16 %v951
    %v1154 = vunpack.c.h.b16 %v951
    %v1155 = vunpack.c.l.b16 %v952
    %v1156 = vunpack.c.h.b16 %v952
    %v1157 = vunpack.c.l.b16 %v953
    %v1158 = vunpack.c.h.b16 %v953
    %v1159 = vunpack.c.l.b16 %v954
    %v1160 = vunpack.c.h.b16 %v954
    %v1161 = vunpack.c.l.b16 %v955
    %v1162 = vunpack.c.h.b16 %v955
    %v1163 = vunpack.c.l.b16 %v956
    %v1164 = vunpack.c.h.b16 %v956
    %v1165 = vunpack.c.l.b16 %v957
    %v1166 = vunpack.c.h.b16 %v957
    %v1167 = vunpack.c.l.b16 %v958
    %v1168 = vunpack.c.h.b16 %v958
    %v1169 = vunpack.c.l.b16 %v959
    %v1170 = vunpack.c.h.b16 %v959
    %v1171 = vunpack.c.l.b16 %v960
    %v1172 = vunpack.c.h.b16 %v960
    %v1173 = vunpack.c.l.b16 %v961
    %v1174 = vunpack.c.h.b16 %v961
    %v1175 = vunpack.c.l.b16 %v962
    %v1176 = vunpack.c.h.b16 %v962
    %v1177 = vpack.c.b16 %v1053, %v1049
    %v1178 = vpack.c.b16 %v1054, %v1050
    %v1179 = vpack.c.b16 %v1055, %v1051
    %v1180 = vpack.c.b16 %v1056, %v1052
    %v1181 = vpack.c.b16 %v1061, %v1057
    %v1182 = vpack.c.b16 %v1062, %v1058
    %v1183 = vpack.c.b16 %v1063, %v1059
    %v1184 = vpack.c.b16 %v1064, %v1060
    %v1185 = vpack.c.b16 %v1069, %v1065
    %v1186 = vpack.c.b16 %v1070, %v1066
    %v1187 = vpack.c.b16 %v1071, %v1067
    %v1188 = vpack.c.b16 %v1072, %v1068
    %v1189 = vpack.c.b16 %v1077, %v1073
    %v1190 = vpack.c.b16 %v1078, %v1074
    %v1191 = vpack.c.b16 %v1079, %v1075
    %v1192 = vpack.c.b16 %v1080, %v1076
    %v1193 = vpack.c.b16 %v1085, %v1081
    %v1194 = vpack.c.b16 %v1086, %v1082
    %v1195 = vpack.c.b16 %v1087, %v1083
    %v1196 = vpack.c.b16 %v1088, %v1084
    %v1197 = vpack.c.b16 %v1093, %v1089
    %v1198 = vpack.c.b16 %v1094, %v1090
    %v1199 = vpack.c.b16 %v1095, %v1091
    %v1200 = vpack.c.b16 %v1096, %v1092
    %v1201 = vpack.c.b16 %v1101, %v1097
    %v1202 = vpack.c.b16 %v1102, %v1098
    %v1203 = vpack.c.b16 %v1103, %v1099
    %v1204 = vpack.c.b16 %v1104, %v1100
    %v1205 = vpack.c.b16 %v1109, %v1105
    %v1206 = vpack.c.b16 %v1110, %v1106
    %v1207 = vpack.c.b16 %v1111, %v1107
    %v1208 = vpack.c.b16 %v1112, %v1108
    %v1209 = vpack.c.b16 %v1117, %v1113
    %v1210 = vpack.c.b16 %v1118, %v1114
    %v1211 = vpack.c.b16 %v1119, %v1115
    %v1212 = vpack.c.b16 %v1120, %v1116
    %v1213 = vpack.c.b16 %v1125, %v1121
    %v1214 = vpack.c.b16 %v1126, %v1122
    %v1215 = vpack.c.b16 %v1127, %v1123
    %v1216 = vpack.c.b16 %v1128, %v1124
    %v1217 = vpack.c.b16 %v1133, %v1129
    %v1218 = vpack.c.b16 %v1134, %v1130
    %v1219 = vpack.c.b16 %v1135, %v1131
    %v1220 = vpack.c.b16 %v1136, %v1132
    %v1221 = vpack.c.b16 %v1141, %v1137
    %v1222 = vpack.c.b16 %v1142, %v1138
    %v1223 = vpack.c.b16 %v1143, %v1139
    %v1224 = vpack.c.b16 %v1144, %v1140
    %v1225 = vpack.c.b16 %v1149, %v1145
    %v1226 = vpack.c.b16 %v1150, %v1146
    %v1227 = vpack.c.b16 %v1151, %v1147
    %v1228 = vpack.c.b16 %v1152, %v1148
    %v1229 = vpack.c.b16 %v1157, %v1153
    %v1230 = vpack.c.b16 %v1158, %v1154
    %v1231 = vpack.c.b16 %v1159, %v1155
    %v1232 = vpack.c.b16 %v1160, %v1156
    %v1233 = vpack.c.b16 %v1165, %v1161
    %v1234 = vpack.c.b16 %v1166, %v1162
    %v1235 = vpack.c.b16 %v1167, %v1163
    %v1236 = vpack.c.b16 %v1168, %v1164
    %v1237 = vpack.c.b16 %v1173, %v1169
    %v1238 = vpack.c.b16 %v1174, %v1170
    %v1239 = vpack.c.b16 %v1175, %v1171
    %v1240 = vpack.c.b16 %v1176, %v1172
    %1305 = vmatprep.subr.bf16.mxu0 %v1178
    %1306 = vmatpush1.bf16.msra.mxu0 %v1177
    %1307 = vmatprep.subr.bf16.mxu0 %v1182
    %1308 = vmatpush1.bf16.msra.mxu0 %v1181
    %1309 = vmatprep.subr.bf16.mxu0 %v1186
    %1310 = vmatpush1.bf16.msra.mxu0 %v1185
    %1311 = vmatprep.subr.bf16.mxu0 %v1190
    %1312 = vmatpush1.bf16.msra.mxu0 %v1189
    %1313 = vmatprep.subr.bf16.mxu0 %v1194
    %1314 = vmatpush1.bf16.msra.mxu0 %v1193
    %1315 = vmatprep.subr.bf16.mxu0 %v1198
    %1316 = vmatpush1.bf16.msra.mxu0 %v1197
    %1317 = vmatprep.subr.bf16.mxu0 %v1202
    %1318 = vmatpush1.bf16.msra.mxu0 %v1201
    %1319 = vmatprep.subr.bf16.mxu0 %v1206
    %1320 = vmatpush1.bf16.msra.mxu0 %v1205
    %1321 = vmatprep.subr.bf16.mxu0 %v1210
    %1322 = vmatpush1.bf16.msra.mxu0 %v1209
    %1323 = vmatprep.subr.bf16.mxu0 %v1214
    %1324 = vmatpush1.bf16.msra.mxu0 %v1213
    %1325 = vmatprep.subr.bf16.mxu0 %v1218
    %1326 = vmatpush1.bf16.msra.mxu0 %v1217
    %1327 = vmatprep.subr.bf16.mxu0 %v1222
    %1328 = vmatpush1.bf16.msra.mxu0 %v1221
    %1329 = vmatprep.subr.bf16.mxu0 %v1226
    %1330 = vmatpush1.bf16.msra.mxu0 %v1225
    %1331 = vmatprep.subr.bf16.mxu0 %v1230
    %1332 = vmatpush1.bf16.msra.mxu0 %v1229
    %1333 = vmatprep.subr.bf16.mxu0 %v1234
    %1334 = vmatpush1.bf16.msra.mxu0 %v1233
    %1335 = vmatprep.subr.bf16.mxu0 %v1238
    %1336 = vmatpush1.bf16.msra.mxu0 %v1237
    %1337 = vmatprep.mubr.bf16.mxu0 %v898
    %1338 = vmatmul.mubr.bf16.gmra.mrb[0].mxu0 %v897
    %v1339 = vpop.f32.mrb[0].mxu0
    %v1340 = vadd.f32 %v968, %v1339
    %v1341 = vpop.f32.mrb[0].mxu0
    %v1342 = vadd.f32 %v972, %v1341
    %v1343 = vpop.f32.mrb[0].mxu0
    %v1344 = vadd.f32 %v968, %v1343
    %v1345 = vpop.f32.mrb[0].mxu0
    %v1346 = vadd.f32 %v972, %v1345
    %1347 = vdwg.mxu0
    %1348 = vmatprep.subr.bf16.mxu0 %v1180
    %1349 = vmatpush1.bf16.msra.mxu0 %v1179
    %1350 = vmatprep.subr.bf16.mxu0 %v1184
    %1351 = vmatpush1.bf16.msra.mxu0 %v1183
    %1352 = vmatprep.subr.bf16.mxu0 %v1188
    %1353 = vmatpush1.bf16.msra.mxu0 %v1187
    %1354 = vmatprep.subr.bf16.mxu0 %v1192
    %1355 = vmatpush1.bf16.msra.mxu0 %v1191
    %1356 = vmatprep.subr.bf16.mxu0 %v1196
    %1357 = vmatpush1.bf16.msra.mxu0 %v1195
    %1358 = vmatprep.subr.bf16.mxu0 %v1200
    %1359 = vmatpush1.bf16.msra.mxu0 %v1199
    %1360 = vmatprep.subr.bf16.mxu0 %v1204
    %1361 = vmatpush1.bf16.msra.mxu0 %v1203
    %1362 = vmatprep.subr.bf16.mxu0 %v1208
    %1363 = vmatpush1.bf16.msra.mxu0 %v1207
    %1364 = vmatprep.subr.bf16.mxu0 %v1212
    %1365 = vmatpush1.bf16.msra.mxu0 %v1211
    %1366 = vmatprep.subr.bf16.mxu0 %v1216
    %1367 = vmatpush1.bf16.msra.mxu0 %v1215
    %1368 = vmatprep.subr.bf16.mxu0 %v1220
    %1369 = vmatpush1.bf16.msra.mxu0 %v1219
    %1370 = vmatprep.subr.bf16.mxu0 %v1224
    %1371 = vmatpush1.bf16.msra.mxu0 %v1223
    %1372 = vmatprep.subr.bf16.mxu0 %v1228
    %1373 = vmatpush1.bf16.msra.mxu0 %v1227
    %1374 = vmatprep.subr.bf16.mxu0 %v1232
    %1375 = vmatpush1.bf16.msra.mxu0 %v1231
    %1376 = vmatprep.subr.bf16.mxu0 %v1236
    %1377 = vmatpush1.bf16.msra.mxu0 %v1235
    %1378 = vmatprep.subr.bf16.mxu0 %v1240
    %1379 = vmatpush1.bf16.msra.mxu0 %v1239
    %1380 = vmatprep.mubr.bf16.mxu0 %v898
    %1381 = vmatmul.mubr.bf16.gmra.mrb[0].mxu0 %v897
    %v1382 = vpop.f32.mrb[0].mxu0
    %v1383 = vadd.f32 %v976, %v1382
    %v1384 = vpop.f32.mrb[0].mxu0
    %v1385 = vadd.f32 %v980, %v1384
    %v1386 = vpop.f32.mrb[0].mxu0
    %v1387 = vadd.f32 %v976, %v1386
    %v1388 = vpop.f32.mrb[0].mxu0
    %v1389 = vadd.f32 %v980, %v1388
    %1390 = vdwg.mxu0
    %v1391 = vmax.f32 %v1340, 0.0
    %v1392 = vmax.f32 %v1342, 0.0
    %v1393 = vmax.f32 %v1383, 0.0
    %v1394 = vmax.f32 %v1385, 0.0
    %v1395 = vmax.f32 %v1344, 0.0
    %v1396 = vmax.f32 %v1346, 0.0
    %v1397 = vmax.f32 %v1387, 0.0
    %v1398 = vmax.f32 %v1389, 0.0
    %v1399 = vpack.c.bf16 %v1395, %v1391
    %v1400 = vpack.c.bf16 %v1396, %v1392
    %v1401 = vpack.c.bf16 %v1397, %v1393
    %v1402 = vpack.c.bf16 %v1398, %v1394
    %v1403 = vld [vmem:[#allocation10] sm:$0xf]
    %v1404 = vld [vmem:[#allocation10 + $0x4] sm:$0xf]
    %v1405 = vld [vmem:[#allocation10 + $0x8] sm:$0xf]
    %v1406 = vld [vmem:[#allocation10 + $0xc] sm:$0xf]
    %v1407 = vld [vmem:[#allocation10 + $0x10] sm:$0xf]
    %v1408 = vld [vmem:[#allocation10 + $0x14] sm:$0xf]
    %v1409 = vld [vmem:[#allocation10 + $0x18] sm:$0xf]
    %v1410 = vld [vmem:[#allocation10 + $0x1c] sm:$0xf]
    %v1411 = vld [vmem:[#allocation10 + $0x20] sm:$0xf]
    %v1412 = vld [vmem:[#allocation10 + $0x24] sm:$0xf]
    %v1413 = vld [vmem:[#allocation10 + $0x28] sm:$0xf]
    %v1414 = vld [vmem:[#allocation10 + $0x2c] sm:$0xf]
    %v1415 = vld [vmem:[#allocation10 + $0x30] sm:$0xf]
    %v1416 = vld [vmem:[#allocation10 + $0x34] sm:$0xf]
    %v1417 = vld [vmem:[#allocation10 + $0x38] sm:$0xf]
    %v1418 = vld [vmem:[#allocation10 + $0x3c] sm:$0xf]
    %v1419 = vld [vmem:[#allocation10 + $0x40] sm:$0xf]
    %v1420 = vld [vmem:[#allocation10 + $0x44] sm:$0xf]
    %v1421 = vld [vmem:[#allocation10 + $0x48] sm:$0xf]
    %v1422 = vld [vmem:[#allocation10 + $0x4c] sm:$0xf]
    %v1423 = vld [vmem:[#allocation10 + $0x50] sm:$0xf]
    %v1424 = vld [vmem:[#allocation10 + $0x54] sm:$0xf]
    %v1425 = vld [vmem:[#allocation10 + $0x58] sm:$0xf]
    %v1426 = vld [vmem:[#allocation10 + $0x5c] sm:$0xf]
    %v1427 = vld [vmem:[#allocation10 + $0x60] sm:$0xf]
    %v1428 = vld [vmem:[#allocation10 + $0x64] sm:$0xf]
    %v1429 = vld [vmem:[#allocation10 + $0x68] sm:$0xf]
    %v1430 = vld [vmem:[#allocation10 + $0x6c] sm:$0xf]
    %v1431 = vld [vmem:[#allocation10 + $0x70] sm:$0xf]
    %v1432 = vld [vmem:[#allocation10 + $0x74] sm:$0xf]
    %v1433 = vld [vmem:[#allocation10 + $0x78] sm:$0xf]
    %v1434 = vld [vmem:[#allocation10 + $0x7c] sm:$0xf]
    %v1435 = vld [vmem:[#allocation10 + $0x80] sm:$0xf]
    %v1436 = vld [vmem:[#allocation10 + $0x84] sm:$0xf]
    %v1437 = vld [vmem:[#allocation10 + $0x88] sm:$0xf]
    %v1438 = vld [vmem:[#allocation10 + $0x8c] sm:$0xf]
    %v1439 = vld [vmem:[#allocation10 + $0x90] sm:$0xf]
    %v1440 = vld [vmem:[#allocation10 + $0x94] sm:$0xf]
    %v1441 = vld [vmem:[#allocation10 + $0x98] sm:$0xf]
    %v1442 = vld [vmem:[#allocation10 + $0x9c] sm:$0xf]
    %v1443 = vld [vmem:[#allocation10 + $0xa0] sm:$0xf]
    %v1444 = vld [vmem:[#allocation10 + $0xa4] sm:$0xf]
    %v1445 = vld [vmem:[#allocation10 + $0xa8] sm:$0xf]
    %v1446 = vld [vmem:[#allocation10 + $0xac] sm:$0xf]
    %v1447 = vld [vmem:[#allocation10 + $0xb0] sm:$0xf]
    %v1448 = vld [vmem:[#allocation10 + $0xb4] sm:$0xf]
    %v1449 = vld [vmem:[#allocation10 + $0xb8] sm:$0xf]
    %v1450 = vld [vmem:[#allocation10 + $0xbc] sm:$0xf]
    %v1451 = vld [vmem:[#allocation10 + $0xc0] sm:$0xf]
    %v1452 = vld [vmem:[#allocation10 + $0xc4] sm:$0xf]
    %v1453 = vld [vmem:[#allocation10 + $0xc8] sm:$0xf]
    %v1454 = vld [vmem:[#allocation10 + $0xcc] sm:$0xf]
    %v1455 = vld [vmem:[#allocation10 + $0xd0] sm:$0xf]
    %v1456 = vld [vmem:[#allocation10 + $0xd4] sm:$0xf]
    %v1457 = vld [vmem:[#allocation10 + $0xd8] sm:$0xf]
    %v1458 = vld [vmem:[#allocation10 + $0xdc] sm:$0xf]
    %v1459 = vld [vmem:[#allocation10 + $0xe0] sm:$0xf]
    %v1460 = vld [vmem:[#allocation10 + $0xe4] sm:$0xf]
    %v1461 = vld [vmem:[#allocation10 + $0xe8] sm:$0xf]
    %v1462 = vld [vmem:[#allocation10 + $0xec] sm:$0xf]
    %v1463 = vld [vmem:[#allocation10 + $0xf0] sm:$0xf]
    %v1464 = vld [vmem:[#allocation10 + $0xf4] sm:$0xf]
    %v1465 = vld [vmem:[#allocation10 + $0xf8] sm:$0xf]
    %v1466 = vld [vmem:[#allocation10 + $0xfc] sm:$0xf]
    %v1467 = vld [vmem:[%s8] sm:$0x1]
    %v1469 = vlaneseq
    %v1470 = vshrl.u32 %v1469, 7
    %v1471 = vsub.s32 0, %v1470
    %v1472 = vrot.slane %v1467, %v1471
    %v1538 = vunpack.c.l.b16 %v1403
    %v1539 = vunpack.c.l.b16 %v1404
    %v1540 = vunpack.c.l.b16 %v1405
    %v1541 = vunpack.c.l.b16 %v1406
    %v1542 = vunpack.c.l.b16 %v1407
    %v1543 = vunpack.c.l.b16 %v1408
    %v1544 = vunpack.c.l.b16 %v1409
    %v1545 = vunpack.c.l.b16 %v1410
    %v1546 = vunpack.c.l.b16 %v1411
    %v1547 = vunpack.c.l.b16 %v1412
    %v1548 = vunpack.c.l.b16 %v1413
    %v1549 = vunpack.c.l.b16 %v1414
    %v1550 = vunpack.c.l.b16 %v1415
    %v1551 = vunpack.c.l.b16 %v1416
    %v1552 = vunpack.c.l.b16 %v1417
    %v1553 = vunpack.c.l.b16 %v1418
    %v1554 = vunpack.c.l.b16 %v1419
    %v1555 = vunpack.c.l.b16 %v1420
    %v1556 = vunpack.c.l.b16 %v1421
    %v1557 = vunpack.c.l.b16 %v1422
    %v1558 = vunpack.c.l.b16 %v1423
    %v1559 = vunpack.c.l.b16 %v1424
    %v1560 = vunpack.c.l.b16 %v1425
    %v1561 = vunpack.c.l.b16 %v1426
    %v1562 = vunpack.c.l.b16 %v1427
    %v1563 = vunpack.c.l.b16 %v1428
    %v1564 = vunpack.c.l.b16 %v1429
    %v1565 = vunpack.c.l.b16 %v1430
    %v1566 = vunpack.c.l.b16 %v1431
    %v1567 = vunpack.c.l.b16 %v1432
    %v1568 = vunpack.c.l.b16 %v1433
    %v1569 = vunpack.c.l.b16 %v1434
    %v1570 = vunpack.c.l.b16 %v1435
    %v1571 = vunpack.c.l.b16 %v1436
    %v1572 = vunpack.c.l.b16 %v1437
    %v1573 = vunpack.c.l.b16 %v1438
    %v1574 = vunpack.c.l.b16 %v1439
    %v1575 = vunpack.c.l.b16 %v1440
    %v1576 = vunpack.c.l.b16 %v1441
    %v1577 = vunpack.c.l.b16 %v1442
    %v1578 = vunpack.c.l.b16 %v1443
    %v1579 = vunpack.c.l.b16 %v1444
    %v1580 = vunpack.c.l.b16 %v1445
    %v1581 = vunpack.c.l.b16 %v1446
    %v1582 = vunpack.c.l.b16 %v1447
    %v1583 = vunpack.c.l.b16 %v1448
    %v1584 = vunpack.c.l.b16 %v1449
    %v1585 = vunpack.c.l.b16 %v1450
    %v1586 = vunpack.c.l.b16 %v1451
    %v1587 = vunpack.c.l.b16 %v1452
    %v1588 = vunpack.c.l.b16 %v1453
    %v1589 = vunpack.c.l.b16 %v1454
    %v1590 = vunpack.c.l.b16 %v1455
    %v1591 = vunpack.c.l.b16 %v1456
    %v1592 = vunpack.c.l.b16 %v1457
    %v1593 = vunpack.c.l.b16 %v1458
    %v1594 = vunpack.c.l.b16 %v1459
    %v1595 = vunpack.c.l.b16 %v1460
    %v1596 = vunpack.c.l.b16 %v1461
    %v1597 = vunpack.c.l.b16 %v1462
    %v1598 = vunpack.c.l.b16 %v1463
    %v1599 = vunpack.c.l.b16 %v1464
    %v1600 = vunpack.c.l.b16 %v1465
    %v1601 = vunpack.c.l.b16 %v1466
    %v1602 = vpack.c.b16 %v1539, %v1538
    %v1603 = vpack.c.b16 %v1541, %v1540
    %v1604 = vpack.c.b16 %v1543, %v1542
    %v1605 = vpack.c.b16 %v1545, %v1544
    %v1606 = vpack.c.b16 %v1547, %v1546
    %v1607 = vpack.c.b16 %v1549, %v1548
    %v1608 = vpack.c.b16 %v1551, %v1550
    %v1609 = vpack.c.b16 %v1553, %v1552
    %v1610 = vpack.c.b16 %v1555, %v1554
    %v1611 = vpack.c.b16 %v1557, %v1556
    %v1612 = vpack.c.b16 %v1559, %v1558
    %v1613 = vpack.c.b16 %v1561, %v1560
    %v1614 = vpack.c.b16 %v1563, %v1562
    %v1615 = vpack.c.b16 %v1565, %v1564
    %v1616 = vpack.c.b16 %v1567, %v1566
    %v1617 = vpack.c.b16 %v1569, %v1568
    %v1618 = vpack.c.b16 %v1571, %v1570
    %v1619 = vpack.c.b16 %v1573, %v1572
    %v1620 = vpack.c.b16 %v1575, %v1574
    %v1621 = vpack.c.b16 %v1577, %v1576
    %v1622 = vpack.c.b16 %v1579, %v1578
    %v1623 = vpack.c.b16 %v1581, %v1580
    %v1624 = vpack.c.b16 %v1583, %v1582
    %v1625 = vpack.c.b16 %v1585, %v1584
    %v1626 = vpack.c.b16 %v1587, %v1586
    %v1627 = vpack.c.b16 %v1589, %v1588
    %v1628 = vpack.c.b16 %v1591, %v1590
    %v1629 = vpack.c.b16 %v1593, %v1592
    %v1630 = vpack.c.b16 %v1595, %v1594
    %v1631 = vpack.c.b16 %v1597, %v1596
    %v1632 = vpack.c.b16 %v1599, %v1598
    %v1633 = vpack.c.b16 %v1601, %v1600
    %1666 = vmatprep.subr.bf16.mxu0 0
    %1667 = vmatpush1.bf16.msra.mxu0 %v1602
    %1668 = vmatprep.subr.bf16.mxu0 0
    %1669 = vmatpush1.bf16.msra.mxu0 %v1603
    %1670 = vmatprep.subr.bf16.mxu0 0
    %1671 = vmatpush1.bf16.msra.mxu0 %v1604
    %1672 = vmatprep.subr.bf16.mxu0 0
    %1673 = vmatpush1.bf16.msra.mxu0 %v1605
    %1674 = vmatprep.subr.bf16.mxu0 0
    %1675 = vmatpush1.bf16.msra.mxu0 %v1606
    %1676 = vmatprep.subr.bf16.mxu0 0
    %1677 = vmatpush1.bf16.msra.mxu0 %v1607
    %1678 = vmatprep.subr.bf16.mxu0 0
    %1679 = vmatpush1.bf16.msra.mxu0 %v1608
    %1680 = vmatprep.subr.bf16.mxu0 0
    %1681 = vmatpush1.bf16.msra.mxu0 %v1609
    %1682 = vmatprep.subr.bf16.mxu0 0
    %1683 = vmatpush1.bf16.msra.mxu0 %v1610
    %1684 = vmatprep.subr.bf16.mxu0 0
    %1685 = vmatpush1.bf16.msra.mxu0 %v1611
    %1686 = vmatprep.subr.bf16.mxu0 0
    %1687 = vmatpush1.bf16.msra.mxu0 %v1612
    %1688 = vmatprep.subr.bf16.mxu0 0
    %1689 = vmatpush1.bf16.msra.mxu0 %v1613
    %1690 = vmatprep.subr.bf16.mxu0 0
    %1691 = vmatpush1.bf16.msra.mxu0 %v1614
    %1692 = vmatprep.subr.bf16.mxu0 0
    %1693 = vmatpush1.bf16.msra.mxu0 %v1615
    %1694 = vmatprep.subr.bf16.mxu0 0
    %1695 = vmatpush1.bf16.msra.mxu0 %v1616
    %1696 = vmatprep.subr.bf16.mxu0 0
    %1697 = vmatpush1.bf16.msra.mxu0 %v1617
    %1698 = vmatprep.mubr.bf16.mxu0 %v1400
    %1699 = vmatmul.mubr.bf16.gmra.mrb[0].mxu0 %v1399
    %v1700 = vpop.f32.mrb[0].mxu0
    %v1701 = vadd.f32 %v1472, %v1700
    %v1702 = vpop.f32.mrb[0].mxu0
    %v1703 = vpop.f32.mrb[0].mxu0
    %v1704 = vadd.f32 %v1472, %v1703
    %v1705 = vpop.f32.mrb[0].mxu0
    %1706 = vdwg.mxu0
    %1707 = vmatprep.subr.bf16.mxu0 0
    %1708 = vmatpush1.bf16.msra.mxu0 %v1618
    %1709 = vmatprep.subr.bf16.mxu0 0
    %1710 = vmatpush1.bf16.msra.mxu0 %v1619
    %1711 = vmatprep.subr.bf16.mxu0 0
    %1712 = vmatpush1.bf16.msra.mxu0 %v1620
    %1713 = vmatprep.subr.bf16.mxu0 0
    %1714 = vmatpush1.bf16.msra.mxu0 %v1621
    %1715 = vmatprep.subr.bf16.mxu0 0
    %1716 = vmatpush1.bf16.msra.mxu0 %v1622
    %1717 = vmatprep.subr.bf16.mxu0 0
    %1718 = vmatpush1.bf16.msra.mxu0 %v1623
    %1719 = vmatprep.subr.bf16.mxu0 0
    %1720 = vmatpush1.bf16.msra.mxu0 %v1624
    %1721 = vmatprep.subr.bf16.mxu0 0
    %1722 = vmatpush1.bf16.msra.mxu0 %v1625
    %1723 = vmatprep.subr.bf16.mxu0 0
    %1724 = vmatpush1.bf16.msra.mxu0 %v1626
    %1725 = vmatprep.subr.bf16.mxu0 0
    %1726 = vmatpush1.bf16.msra.mxu0 %v1627
    %1727 = vmatprep.subr.bf16.mxu0 0
    %1728 = vmatpush1.bf16.msra.mxu0 %v1628
    %1729 = vmatprep.subr.bf16.mxu0 0
    %1730 = vmatpush1.bf16.msra.mxu0 %v1629
    %1731 = vmatprep.subr.bf16.mxu0 0
    %1732 = vmatpush1.bf16.msra.mxu0 %v1630
    %1733 = vmatprep.subr.bf16.mxu0 0
    %1734 = vmatpush1.bf16.msra.mxu0 %v1631
    %1735 = vmatprep.subr.bf16.mxu0 0
    %1736 = vmatpush1.bf16.msra.mxu0 %v1632
    %1737 = vmatprep.subr.bf16.mxu0 0
    %1738 = vmatpush1.bf16.msra.mxu0 %v1633
    %1739 = vmatprep.mubr.bf16.mxu0 %v1402
    %1740 = vmatmul.mubr.bf16.gmra.mrb[0].mxu0 %v1401
    %v1741 = vpop.f32.mrb[0].mxu0
    %v1742 = vadd.f32 %v1701, %v1741
    %v1743 = vpop.f32.mrb[0].mxu0
    %v1744 = vpop.f32.mrb[0].mxu0
    %v1745 = vadd.f32 %v1704, %v1744
    %v1746 = vpop.f32.mrb[0].mxu0
    %1747 = vdwg.mxu0
    %v1748 = vxor.u32 %v1742, 2147483648
    %v1749 = vxor.u32 %v1745, 2147483648
    %v1750 = vmul.f32 %v1748, 1.442695
    %v1751 = vpow.pop %v1750
    %v1752 = vmul.f32 %v1749, 1.442695
    %v1753 = vpow.pop %v1752
    %v1754 = vadd.f32 %v1751, 1.0
    %v1755 = vadd.f32 %v1753, 1.0
    %v1756 = vrcp.pop %v1754
    %v1757 = vmul.f32 1.0, %v1756
    %v1758 = vrcp.pop %v1755
    %v1759 = vmul.f32 1.0, %v1758
    %1760 = vst [vmem:[#allocation11] sm:$0xff] %v1757
    %1761 = vst [vmem:[#allocation11 + $0x8] sm:$0xff] %v1759
    // Predicated region
    $region58: #{autoencoder_forward_pallas.1} parent=1 // pred_check
      _
    $region59: #{autoencoder_forward_pallas.1} parent=1 // pred_check_branch
      %1763 = sbr.rel (0) target = $region61
    $region60: #{autoencoder_forward_pallas.1} parent=1 // pred_region
      %s1765 = ssub.s32 256, 256
      %1766 = vsyncadd [#allocation4], %s1765
      %s1767 = sshll.u32 [#allocation11], 4
      %s1768 = int_to_ptr.vmem [resolvable:$true] %s1767
      %1773 = dma.vmem_to_hbm [thread:$0]  %s1768, 256, %s9, [#allocation4], 128, 128, 8
    $region61: #{autoencoder_forward_pallas.1} parent=1 // pred_fallthru
      _
    // Predicated region
    $region62: #{autoencoder_forward_pallas.1} parent=1 // pred_check
      _
    $region63: #{autoencoder_forward_pallas.1} parent=1 // pred_check_branch
      %1775 = sbr.rel (0) target = $region65
    $region64: #{autoencoder_forward_pallas.1} parent=1 // pred_region
      %1776 = dma.done [#allocation4], 256
    $region65: #{autoencoder_forward_pallas.1} parent=1 // pred_fallthru
      _
    %1777 = vsyncpa [#allocation3], 1
    %1778 = vsyncpa [#allocation6], 1
    %1779 = vsyncpa [#allocation9], 1
    %1780 = vsyncpa [#allocation4], 1

// kernel: autoencoder_forward_pallas.1
$region0: #{autoencoder_forward_pallas.1}
  #allocation0 [shape = 'u32[]', space=smem, size = 0x4, offset = 0x4, fixed_abs, tag = 'smem constant byte address 0x4 - core index']
  #allocation1 [shape = 'u32[144,128]{1,0:T(1,128)}', space=vmem, size = 0x12000, scoped, tag = 'internal scratch']
  %s0 = inlined_call_operand.vmem [shape: f32[16,128], index: 0, kind: input, shape index: {}]
  %s1 = inlined_call_operand.hbm [shape: bf16[128,512], index: 1, kind: input, shape index: {}]
  %s2 = inlined_call_operand.hbm [shape: f32[1,512], index: 2, kind: input, shape index: {}]
  %s3 = inlined_call_operand.hbm [shape: bf16[512,256], index: 3, kind: input, shape index: {}]
  %s4 = inlined_call_operand.vmem [shape: f32[1,256], index: 4, kind: input, shape index: {}]
  %s5 = inlined_call_operand.hbm [shape: bf16[256,512], index: 5, kind: input, shape index: {}]
  %s6 = inlined_call_operand.vmem [shape: f32[1,512], index: 6, kind: input, shape index: {}]
  %s7 = inlined_call_operand.hbm [shape: bf16[512,128], index: 7, kind: input, shape index: {}]
  %s8 = inlined_call_operand.vmem [shape: f32[1,128], index: 8, kind: input, shape index: {}]
  %s9 = inlined_call_operand.hbm [shape: f32[16,128], index: 9, kind: output, shape index: {}]
  %s10 = sld [smem:[#allocation0]]
  $region66: #{autoencoder_forward_pallas.1} parent=0
    _
  %s12 = ssub.s32 1, %s10
  %s13 = scalar_select 0, %s12, %s10
  $region1: #{autoencoder_forward_pallas.1} parent=0
    #allocation2 [shape = 'u8[131072]{0}', space=vmem, size = 0x20000, scoped, tag = 'input window, operand 1, single buffered']
    #allocation3 [shape = 's32[1]{0}', space=sflag, size = 0x4, scoped, tag = 'scoped memory for autoencoder_forward_pallas.1']
    #allocation4 [shape = 's32[1]{0}', space=sflag, size = 0x4, scoped, tag = 'scoped memory for autoencoder_forward_pallas.1']
    #allocation5 [shape = 'u8[2048]{0}', space=vmem, size = 0x800, scoped, tag = 'input window, operand 2, single buffered']
    #allocation6 [shape = 's32[1]{0}', space=sflag, size = 0x4, scoped, tag = 'scoped memory for autoencoder_forward_pallas.1']
    #allocation7 [shape = 'u8[262144]{0}', space=vmem, size = 0x40000, scoped, tag = 'input window, operand 3, single buffered']
    #allocation8 [shape = 'u8[262144]{0}', space=vmem, size = 0x40000, scoped, tag = 'input window, operand 5, single buffered']
    #allocation9 [shape = 's32[1]{0}', space=sflag, size = 0x4, scoped, tag = 'scoped memory for autoencoder_forward_pallas.1']
    #allocation10 [shape = 'u8[131072]{0}', space=vmem, size = 0x20000, scoped, tag = 'input window, operand 7, single buffered']
    #allocation11 [shape = 'u8[8192]{0}', space=vmem, size = 0x2000, scoped, tag = 'output window, operand 0, single buffered']
    %14 = vsyncpa [#allocation3], 0
    %15 = vsyncpa [#allocation6], 0
    %16 = vsyncpa [#allocation9], 0
    %17 = vsyncpa [#allocation4], 0
    // Predicated region
    $region2: #{autoencoder_forward_pallas.1} parent=1 // pred_check
      _
    $region3: #{autoencoder_forward_pallas.1} parent=1 // pred_check_branch
      %19 = sbr.rel (0) target = $region5
    $region4: #{autoencoder_forward_pallas.1} parent=1 // pred_region
      _
    $region5: #{autoencoder_forward_pallas.1} parent=1 // pred_fallthru
      _
    // Predicated region
    $region6: #{autoencoder_forward_pallas.1} parent=1 // pred_check
      _
    $region7: #{autoencoder_forward_pallas.1} parent=1 // pred_check_branch
      %21 = sbr.rel (0) target = $region9
    $region8: #{autoencoder_forward_pallas.1} parent=1 // pred_region
      %s23 = ssub.s32 4096, 4096
      %24 = vsyncadd [#allocation3], %s23
      %s25 = sshll.u32 [#allocation2], 4
      %s26 = int_to_ptr.vmem [resolvable:$true] %s25
      %31 = dma.hbm_to_vmem [thread:$0]  %s1, 4096, %s26, [#allocation3], 256, 256, 16
    $region9: #{autoencoder_forward_pallas.1} parent=1 // pred_fallthru
      _
    // Predicated region
    $region10: #{autoencoder_forward_pallas.1} parent=1 // pred_check
      _
    $region11: #{autoencoder_forward_pallas.1} parent=1 // pred_check_branch
      %33 = sbr.rel (0) target = $region13
    $region12: #{autoencoder_forward_pallas.1} parent=1 // pred_region
      %s35 = ssub.s32 64, 64
      %36 = vsyncadd [#allocation6], %s35
      %s38 = sshll.u32 [#allocation5], 4
      %s39 = int_to_ptr.vmem [resolvable:$true] %s38
      %41 = dma.hbm_to_vmem [thread:$0]  %s2, 64, %s39, [#allocation6]
    $region13: #{autoencoder_forward_pallas.1} parent=1 // pred_fallthru
      _
    // Predicated region
    $region14: #{autoencoder_forward_pallas.1} parent=1 // pred_check
      _
    $region15: #{autoencoder_forward_pallas.1} parent=1 // pred_check_branch
      %43 = sbr.rel (0) target = $region17
    $region16: #{autoencoder_forward_pallas.1} parent=1 // pred_region
      %s45 = ssub.s32 8192, 8192
      %46 = vsyncadd [#allocation6], %s45
      %s47 = sshll.u32 [#allocation7], 4
      %s48 = int_to_ptr.vmem [resolvable:$true] %s47
      %53 = dma.hbm_to_vmem [thread:$0]  %s3, 8192, %s48, [#allocation6], 128, 128, 8
    $region17: #{autoencoder_forward_pallas.1} parent=1 // pred_fallthru
      _
    // Predicated region
    $region18: #{autoencoder_forward_pallas.1} parent=1 // pred_check
      _
    $region19: #{autoencoder_forward_pallas.1} parent=1 // pred_check_branch
      %55 = sbr.rel (0) target = $region21
    $region20: #{autoencoder_forward_pallas.1} parent=1 // pred_region
      _
    $region21: #{autoencoder_forward_pallas.1} parent=1 // pred_fallthru
      _
    // Predicated region
    $region22: #{autoencoder_forward_pallas.1} parent=1 // pred_check
      _
    $region23: #{autoencoder_forward_pallas.1} parent=1 // pred_check_branch
      %57 = sbr.rel (0) target = $region25
    $region24: #{autoencoder_forward_pallas.1} parent=1 // pred_region
      %s59 = ssub.s32 8192, 8192
      %60 = vsyncadd [#allocation9], %s59
      %s61 = sshll.u32 [#allocation8], 4
      %s62 = int_to_ptr.vmem [resolvable:$true] %s61
      %67 = dma.hbm_to_vmem [thread:$0]  %s5, 8192, %s62, [#allocation9], 256, 256, 16
    $region25: #{autoencoder_forward_pallas.1} parent=1 // pred_fallthru
      _
    // Predicated region
    $region26: #{autoencoder_forward_pallas.1} parent=1 // pred_check
      _
    $region27: #{autoencoder_forward_pallas.1} parent=1 // pred_check_branch
      %69 = sbr.rel (0) target = $region29
    $region28: #{autoencoder_forward_pallas.1} parent=1 // pred_region
      _
    $region29: #{autoencoder_forward_pallas.1} parent=1 // pred_fallthru
      _
    // Predicated region
    $region30: #{autoencoder_forward_pallas.1} parent=1 // pred_check
      _
    $region31: #{autoencoder_forward_pallas.1} parent=1 // pred_check_branch
      %71 = sbr.rel (0) target = $region33
    $region32: #{autoencoder_forward_pallas.1} parent=1 // pred_region
      %s73 = ssub.s32 4096, 4096
      %74 = vsyncadd [#allocation9], %s73
      %s75 = sshll.u32 [#allocation10], 4
      %s76 = int_to_ptr.vmem [resolvable:$true] %s75
      %81 = dma.hbm_to_vmem [thread:$0]  %s7, 4096, %s76, [#allocation9], 64, 64, 4
    $region33: #{autoencoder_forward_pallas.1} parent=1 // pred_fallthru
      _
    // Predicated region
    $region34: #{autoencoder_forward_pallas.1} parent=1 // pred_check
      _
    $region35: #{autoencoder_forward_pallas.1} parent=1 // pred_check_branch
      %83 = sbr.rel (0) target = $region37
    $region36: #{autoencoder_forward_pallas.1} parent=1 // pred_region
      _
    $region37: #{autoencoder_forward_pallas.1} parent=1 // pred_fallthru
      _
    // Predicated region
    $region38: #{autoencoder_forward_pallas.1} parent=1 // pred_check
      _
    $region39: #{autoencoder_forward_pallas.1} parent=1 // pred_check_branch
      %85 = sbr.rel (0) target = $region41
    $region40: #{autoencoder_forward_pallas.1} parent=1 // pred_region
      %86 = dma.done [#allocation3], 4096
    $region41: #{autoencoder_forward_pallas.1} parent=1 // pred_fallthru
      _
    // Predicated region
    $region42: #{autoencoder_forward_pallas.1} parent=1 // pred_check
      _
    $region43: #{autoencoder_forward_pallas.1} parent=1 // pred_check_branch
      %88 = sbr.rel (0) target = $region45
    $region44: #{autoencoder_forward_pallas.1} parent=1 // pred_region
      %89 = dma.done [#allocation6], 64
    $region45: #{autoencoder_forward_pallas.1} parent=1 // pred_fallthru
      _
    // Predicated region
    $region46: #{autoencoder_forward_pallas.1} parent=1 // pred_check
      _
    $region47: #{autoencoder_forward_pallas.1} parent=1 // pred_check_branch
      %91 = sbr.rel (0) target = $region49
    $region48: #{autoencoder_forward_pallas.1} parent=1 // pred_region
      %92 = dma.done [#allocation6], 8192
    $region49: #{autoencoder_forward_pallas.1} parent=1 // pred_fallthru
      _
    // Predicated region
    $region50: #{autoencoder_forward_pallas.1} parent=1 // pred_check
      _
    $region51: #{autoencoder_forward_pallas.1} parent=1 // pred_check_branch
      %94 = sbr.rel (0) target = $region53
    $region52: #{autoencoder_forward_pallas.1} parent=1 // pred_region
      %95 = dma.done [#allocation9], 8192
    $region53: #{autoencoder_forward_pallas.1} parent=1 // pred_fallthru
      _
    // Predicated region
    $region54: #{autoencoder_forward_pallas.1} parent=1 // pred_check
      _
    $region55: #{autoencoder_forward_pallas.1} parent=1 // pred_check_branch
      %97 = sbr.rel (0) target = $region57
    $region56: #{autoencoder_forward_pallas.1} parent=1 // pred_region
      %98 = dma.done [#allocation9], 4096
    $region57: #{autoencoder_forward_pallas.1} parent=1 // pred_fallthru
      _
    %v100 = vld [vmem:[%s0] sm:$0xff]
    %v101 = vld [vmem:[%s0 + $0x8] sm:$0xff]
    %v102 = vpack.c.bf16 %v101, %v100
    %v103 = vld [vmem:[#allocation2] sm:$0xff]
    %v104 = vld [vmem:[#allocation2 + $0x8] sm:$0xff]
    %v105 = vld [vmem:[#allocation2 + $0x10] sm:$0xff]
    %v106 = vld [vmem:[#allocation2 + $0x18] sm:$0xff]
    %v107 = vld [vmem:[#allocation2 + $0x20] sm:$0xff]
    %v108 = vld [vmem:[#allocation2 + $0x28] sm:$0xff]
    %v109 = vld [vmem:[#allocation2 + $0x30] sm:$0xff]
    %v110 = vld [vmem:[#allocation2 + $0x38] sm:$0xff]
    %v111 = vld [vmem:[#allocation2 + $0x40] sm:$0xff]
    %v112 = vld [vmem:[#allocation2 + $0x48] sm:$0xff]
    %v113 = vld [vmem:[#allocation2 + $0x50] sm:$0xff]
    %v114 = vld [vmem:[#allocation2 + $0x58] sm:$0xff]
    %v115 = vld [vmem:[#allocation2 + $0x60] sm:$0xff]
    %v116 = vld [vmem:[#allocation2 + $0x68] sm:$0xff]
    %v117 = vld [vmem:[#allocation2 + $0x70] sm:$0xff]
    %v118 = vld [vmem:[#allocation2 + $0x78] sm:$0xff]
    %v119 = vld [vmem:[#allocation2 + $0x80] sm:$0xff]
    %v120 = vld [vmem:[#allocation2 + $0x88] sm:$0xff]
    %v121 = vld [vmem:[#allocation2 + $0x90] sm:$0xff]
    %v122 = vld [vmem:[#allocation2 + $0x98] sm:$0xff]
    %v123 = vld [vmem:[#allocation2 + $0xa0] sm:$0xff]
    %v124 = vld [vmem:[#allocation2 + $0xa8] sm:$0xff]
    %v125 = vld [vmem:[#allocation2 + $0xb0] sm:$0xff]
    %v126 = vld [vmem:[#allocation2 + $0xb8] sm:$0xff]
    %v127 = vld [vmem:[#allocation2 + $0xc0] sm:$0xff]
    %v128 = vld [vmem:[#allocation2 + $0xc8] sm:$0xff]
    %v129 = vld [vmem:[#allocation2 + $0xd0] sm:$0xff]
    %v130 = vld [vmem:[#allocation2 + $0xd8] sm:$0xff]
    %v131 = vld [vmem:[#allocation2 + $0xe0] sm:$0xff]
    %v132 = vld [vmem:[#allocation2 + $0xe8] sm:$0xff]
    %v133 = vld [vmem:[#allocation2 + $0xf0] sm:$0xff]
    %v134 = vld [vmem:[#allocation2 + $0xf8] sm:$0xff]
    %v135 = vld [vmem:[#allocation5] sm:$0xf]
    %v137 = vlaneseq
    %v138 = vshrl.u32 %v137, 7
    %v139 = vsub.s32 0, %v138
    %v140 = vrot.slane %v135, %v139
    %v141 = vlaneseq
    %v142 = vshrl.u32 %v141, 7
    %v143 = vsub.s32 1, %v142
    %v144 = vrot.slane %v135, %v143
    %v145 = vlaneseq
    %v146 = vshrl.u32 %v145, 7
    %v147 = vsub.s32 2, %v146
    %v148 = vrot.slane %v135, %v147
    %v149 = vlaneseq
    %v150 = vshrl.u32 %v149, 7
    %v151 = vsub.s32 3, %v150
    %v152 = vrot.slane %v135, %v151
    %v189 = vunpack.c.l.b16 %v103
    %v190 = vunpack.c.h.b16 %v103
    %v191 = vunpack.c.l.b16 %v104
    %v192 = vunpack.c.h.b16 %v104
    %v193 = vunpack.c.l.b16 %v105
    %v194 = vunpack.c.h.b16 %v105
    %v195 = vunpack.c.l.b16 %v106
    %v196 = vunpack.c.h.b16 %v106
    %v197 = vunpack.c.l.b16 %v107
    %v198 = vunpack.c.h.b16 %v107
    %v199 = vunpack.c.l.b16 %v108
    %v200 = vunpack.c.h.b16 %v108
    %v201 = vunpack.c.l.b16 %v109
    %v202 = vunpack.c.h.b16 %v109
    %v203 = vunpack.c.l.b16 %v110
    %v204 = vunpack.c.h.b16 %v110
    %v205 = vunpack.c.l.b16 %v111
    %v206 = vunpack.c.h.b16 %v111
    %v207 = vunpack.c.l.b16 %v112
    %v208 = vunpack.c.h.b16 %v112
    %v209 = vunpack.c.l.b16 %v113
    %v210 = vunpack.c.h.b16 %v113
    %v211 = vunpack.c.l.b16 %v114
    %v212 = vunpack.c.h.b16 %v114
    %v213 = vunpack.c.l.b16 %v115
    %v214 = vunpack.c.h.b16 %v115
    %v215 = vunpack.c.l.b16 %v116
    %v216 = vunpack.c.h.b16 %v116
    %v217 = vunpack.c.l.b16 %v117
    %v218 = vunpack.c.h.b16 %v117
    %v219 = vunpack.c.l.b16 %v118
    %v220 = vunpack.c.h.b16 %v118
    %v221 = vunpack.c.l.b16 %v119
    %v222 = vunpack.c.h.b16 %v119
    %v223 = vunpack.c.l.b16 %v120
    %v224 = vunpack.c.h.b16 %v120
    %v225 = vunpack.c.l.b16 %v121
    %v226 = vunpack.c.h.b16 %v121
    %v227 = vunpack.c.l.b16 %v122
    %v228 = vunpack.c.h.b16 %v122
    %v229 = vunpack.c.l.b16 %v123
    %v230 = vunpack.c.h.b16 %v123
    %v231 = vunpack.c.l.b16 %v124
    %v232 = vunpack.c.h.b16 %v124
    %v233 = vunpack.c.l.b16 %v125
    %v234 = vunpack.c.h.b16 %v125
    %v235 = vunpack.c.l.b16 %v126
    %v236 = vunpack.c.h.b16 %v126
    %v237 = vunpack.c.l.b16 %v127
    %v238 = vunpack.c.h.b16 %v127
    %v239 = vunpack.c.l.b16 %v128
    %v240 = vunpack.c.h.b16 %v128
    %v241 = vunpack.c.l.b16 %v129
    %v242 = vunpack.c.h.b16 %v129
    %v243 = vunpack.c.l.b16 %v130
    %v244 = vunpack.c.h.b16 %v130
    %v245 = vunpack.c.l.b16 %v131
    %v246 = vunpack.c.h.b16 %v131
    %v247 = vunpack.c.l.b16 %v132
    %v248 = vunpack.c.h.b16 %v132
    %v249 = vunpack.c.l.b16 %v133
    %v250 = vunpack.c.h.b16 %v133
    %v251 = vunpack.c.l.b16 %v134
    %v252 = vunpack.c.h.b16 %v134
    %v253 = vpack.c.b16 %v193, %v189
    %v254 = vpack.c.b16 %v194, %v190
    %v255 = vpack.c.b16 %v195, %v191
    %v256 = vpack.c.b16 %v196, %v192
    %v257 = vpack.c.b16 %v201, %v197
    %v258 = vpack.c.b16 %v202, %v198
    %v259 = vpack.c.b16 %v203, %v199
    %v260 = vpack.c.b16 %v204, %v200
    %v261 = vpack.c.b16 %v209, %v205
    %v262 = vpack.c.b16 %v210, %v206
    %v263 = vpack.c.b16 %v211, %v207
    %v264 = vpack.c.b16 %v212, %v208
    %v265 = vpack.c.b16 %v217, %v213
    %v266 = vpack.c.b16 %v218, %v214
    %v267 = vpack.c.b16 %v219, %v215
    %v268 = vpack.c.b16 %v220, %v216
    %v269 = vpack.c.b16 %v225, %v221
    %v270 = vpack.c.b16 %v226, %v222
    %v271 = vpack.c.b16 %v227, %v223
    %v272 = vpack.c.b16 %v228, %v224
    %v273 = vpack.c.b16 %v233, %v229
    %v274 = vpack.c.b16 %v234, %v230
    %v275 = vpack.c.b16 %v235, %v231
    %v276 = vpack.c.b16 %v236, %v232
    %v277 = vpack.c.b16 %v241, %v237
    %v278 = vpack.c.b16 %v242, %v238
    %v279 = vpack.c.b16 %v243, %v239
    %v280 = vpack.c.b16 %v244, %v240
    %v281 = vpack.c.b16 %v249, %v245
    %v282 = vpack.c.b16 %v250, %v246
    %v283 = vpack.c.b16 %v251, %v247
    %v284 = vpack.c.b16 %v252, %v248
    %317 = vmatprep.subr.bf16.mxu0 %v254
    %318 = vmatpush1.bf16.msra.mxu0 %v253
    %319 = vmatprep.subr.bf16.mxu0 %v258
    %320 = vmatpush1.bf16.msra.mxu0 %v257
    %321 = vmatprep.subr.bf16.mxu0 %v262
    %322 = vmatpush1.bf16.msra.mxu0 %v261
    %323 = vmatprep.subr.bf16.mxu0 %v266
    %324 = vmatpush1.bf16.msra.mxu0 %v265
    %325 = vmatprep.subr.bf16.mxu0 %v270
    %326 = vmatpush1.bf16.msra.mxu0 %v269
    %327 = vmatprep.subr.bf16.mxu0 %v274
    %328 = vmatpush1.bf16.msra.mxu0 %v273
    %329 = vmatprep.subr.bf16.mxu0 %v278
    %330 = vmatpush1.bf16.msra.mxu0 %v277
    %331 = vmatprep.subr.bf16.mxu0 %v282
    %332 = vmatpush1.bf16.msra.mxu0 %v281
    %333 = vmatprep.subr.bf16.mxu0 0
    %334 = vmatpush1.bf16.msra.mxu0 0
    %335 = vmatprep.subr.bf16.mxu0 0
    %336 = vmatpush1.bf16.msra.mxu0 0
    %337 = vmatprep.subr.bf16.mxu0 0
    %338 = vmatpush1.bf16.msra.mxu0 0
    %339 = vmatprep.subr.bf16.mxu0 0
    %340 = vmatpush1.bf16.msra.mxu0 0
    %341 = vmatprep.subr.bf16.mxu0 0
    %342 = vmatpush1.bf16.msra.mxu0 0
    %343 = vmatprep.subr.bf16.mxu0 0
    %344 = vmatpush1.bf16.msra.mxu0 0
    %345 = vmatprep.subr.bf16.mxu0 0
    %346 = vmatpush1.bf16.msra.mxu0 0
    %347 = vmatprep.subr.bf16.mxu0 0
    %348 = vmatpush1.bf16.msra.mxu0 0
    %349 = vmatprep.mubr.bf16.mxu0 0
    %350 = vmatmul.mubr.bf16.gmra.mrb[0].mxu0 %v102
    %v351 = vpop.f32.mrb[0].mxu0
    %v352 = vadd.f32 %v140, %v351
    %v353 = vpop.f32.mrb[0].mxu0
    %v354 = vadd.f32 %v144, %v353
    %v355 = vpop.f32.mrb[0].mxu0
    %v356 = vadd.f32 %v140, %v355
    %v357 = vpop.f32.mrb[0].mxu0
    %v358 = vadd.f32 %v144, %v357
    %359 = vdwg.mxu0
    %360 = vmatprep.subr.bf16.mxu0 %v256
    %361 = vmatpush1.bf16.msra.mxu0 %v255
    %362 = vmatprep.subr.bf16.mxu0 %v260
    %363 = vmatpush1.bf16.msra.mxu0 %v259
    %364 = vmatprep.subr.bf16.mxu0 %v264
    %365 = vmatpush1.bf16.msra.mxu0 %v263
    %366 = vmatprep.subr.bf16.mxu0 %v268
    %367 = vmatpush1.bf16.msra.mxu0 %v267
    %368 = vmatprep.subr.bf16.mxu0 %v272
    %369 = vmatpush1.bf16.msra.mxu0 %v271
    %370 = vmatprep.subr.bf16.mxu0 %v276
    %371 = vmatpush1.bf16.msra.mxu0 %v275
    %372 = vmatprep.subr.bf16.mxu0 %v280
    %373 = vmatpush1.bf16.msra.mxu0 %v279
    %374 = vmatprep.subr.bf16.mxu0 %v284
    %375 = vmatpush1.bf16.msra.mxu0 %v283
    %376 = vmatprep.subr.bf16.mxu0 0
    %377 = vmatpush1.bf16.msra.mxu0 0
    %378 = vmatprep.subr.bf16.mxu0 0
    %379 = vmatpush1.bf16.msra.mxu0 0
    %380 = vmatprep.subr.bf16.mxu0 0
    %381 = vmatpush1.bf16.msra.mxu0 0
    %382 = vmatprep.subr.bf16.mxu0 0
    %383 = vmatpush1.bf16.msra.mxu0 0
    %384 = vmatprep.subr.bf16.mxu0 0
    %385 = vmatpush1.bf16.msra.mxu0 0
    %386 = vmatprep.subr.bf16.mxu0 0
    %387 = vmatpush1.bf16.msra.mxu0 0
    %388 = vmatprep.subr.bf16.mxu0 0
    %389 = vmatpush1.bf16.msra.mxu0 0
    %390 = vmatprep.subr.bf16.mxu0 0
    %391 = vmatpush1.bf16.msra.mxu0 0
    %392 = vmatprep.mubr.bf16.mxu0 0
    %393 = vmatmul.mubr.bf16.gmra.mrb[0].mxu0 %v102
    %v394 = vpop.f32.mrb[0].mxu0
    %v395 = vadd.f32 %v148, %v394
    %v396 = vpop.f32.mrb[0].mxu0
    %v397 = vadd.f32 %v152, %v396
    %v398 = vpop.f32.mrb[0].mxu0
    %v399 = vadd.f32 %v148, %v398
    %v400 = vpop.f32.mrb[0].mxu0
    %v401 = vadd.f32 %v152, %v400
    %402 = vdwg.mxu0
    %v403 = vmax.f32 %v352, 0.0
    %v404 = vmax.f32 %v354, 0.0
    %v405 = vmax.f32 %v395, 0.0
    %v406 = vmax.f32 %v397, 0.0
    %v407 = vmax.f32 %v356, 0.0
    %v408 = vmax.f32 %v358, 0.0
    %v409 = vmax.f32 %v399, 0.0
    %v410 = vmax.f32 %v401, 0.0
    %v411 = vpack.c.bf16 %v407, %v403
    %v412 = vpack.c.bf16 %v408, %v404
    %v413 = vpack.c.bf16 %v409, %v405
    %v414 = vpack.c.bf16 %v410, %v406
    %v415 = vld [vmem:[#allocation7] sm:$0xff]
    %v416 = vld [vmem:[#allocation7 + $0x8] sm:$0xff]
    %v417 = vld [vmem:[#allocation7 + $0x10] sm:$0xff]
    %v418 = vld [vmem:[#allocation7 + $0x18] sm:$0xff]
    %v419 = vld [vmem:[#allocation7 + $0x20] sm:$0xff]
    %v420 = vld [vmem:[#allocation7 + $0x28] sm:$0xff]
    %v421 = vld [vmem:[#allocation7 + $0x30] sm:$0xff]
    %v422 = vld [vmem:[#allocation7 + $0x38] sm:$0xff]
    %v423 = vld [vmem:[#allocation7 + $0x40] sm:$0xff]
    %v424 = vld [vmem:[#allocation7 + $0x48] sm:$0xff]
    %v425 = vld [vmem:[#allocation7 + $0x50] sm:$0xff]
    %v426 = vld [vmem:[#allocation7 + $0x58] sm:$0xff]
    %v427 = vld [vmem:[#allocation7 + $0x60] sm:$0xff]
    %v428 = vld [vmem:[#allocation7 + $0x68] sm:$0xff]
    %v429 = vld [vmem:[#allocation7 + $0x70] sm:$0xff]
    %v430 = vld [vmem:[#allocation7 + $0x78] sm:$0xff]
    %v431 = vld [vmem:[#allocation7 + $0x80] sm:$0xff]
    %v432 = vld [vmem:[#allocation7 + $0x88] sm:$0xff]
    %v433 = vld [vmem:[#allocation7 + $0x90] sm:$0xff]
    %v434 = vld [vmem:[#allocation7 + $0x98] sm:$0xff]
    %v435 = vld [vmem:[#allocation7 + $0xa0] sm:$0xff]
    %v436 = vld [vmem:[#allocation7 + $0xa8] sm:$0xff]
    %v437 = vld [vmem:[#allocation7 + $0xb0] sm:$0xff]
    %v438 = vld [vmem:[#allocation7 + $0xb8] sm:$0xff]
    %v439 = vld [vmem:[#allocation7 + $0xc0] sm:$0xff]
    %v440 = vld [vmem:[#allocation7 + $0xc8] sm:$0xff]
    %v441 = vld [vmem:[#allocation7 + $0xd0] sm:$0xff]
    %v442 = vld [vmem:[#allocation7 + $0xd8] sm:$0xff]
    %v443 = vld [vmem:[#allocation7 + $0xe0] sm:$0xff]
    %v444 = vld [vmem:[#allocation7 + $0xe8] sm:$0xff]
    %v445 = vld [vmem:[#allocation7 + $0xf0] sm:$0xff]
    %v446 = vld [vmem:[#allocation7 + $0xf8] sm:$0xff]
    %v447 = vld [vmem:[#allocation7 + $0x100] sm:$0xff]
    %v448 = vld [vmem:[#allocation7 + $0x108] sm:$0xff]
    %v449 = vld [vmem:[#allocation7 + $0x110] sm:$0xff]
    %v450 = vld [vmem:[#allocation7 + $0x118] sm:$0xff]
    %v451 = vld [vmem:[#allocation7 + $0x120] sm:$0xff]
    %v452 = vld [vmem:[#allocation7 + $0x128] sm:$0xff]
    %v453 = vld [vmem:[#allocation7 + $0x130] sm:$0xff]
    %v454 = vld [vmem:[#allocation7 + $0x138] sm:$0xff]
    %v455 = vld [vmem:[#allocation7 + $0x140] sm:$0xff]
    %v456 = vld [vmem:[#allocation7 + $0x148] sm:$0xff]
    %v457 = vld [vmem:[#allocation7 + $0x150] sm:$0xff]
    %v458 = vld [vmem:[#allocation7 + $0x158] sm:$0xff]
    %v459 = vld [vmem:[#allocation7 + $0x160] sm:$0xff]
    %v460 = vld [vmem:[#allocation7 + $0x168] sm:$0xff]
    %v461 = vld [vmem:[#allocation7 + $0x170] sm:$0xff]
    %v462 = vld [vmem:[#allocation7 + $0x178] sm:$0xff]
    %v463 = vld [vmem:[#allocation7 + $0x180] sm:$0xff]
    %v464 = vld [vmem:[#allocation7 + $0x188] sm:$0xff]
    %v465 = vld [vmem:[#allocation7 + $0x190] sm:$0xff]
    %v466 = vld [vmem:[#allocation7 + $0x198] sm:$0xff]
    %v467 = vld [vmem:[#allocation7 + $0x1a0] sm:$0xff]
    %v468 = vld [vmem:[#allocation7 + $0x1a8] sm:$0xff]
    %v469 = vld [vmem:[#allocation7 + $0x1b0] sm:$0xff]
    %v470 = vld [vmem:[#allocation7 + $0x1b8] sm:$0xff]
    %v471 = vld [vmem:[#allocation7 + $0x1c0] sm:$0xff]
    %v472 = vld [vmem:[#allocation7 + $0x1c8] sm:$0xff]
    %v473 = vld [vmem:[#allocation7 + $0x1d0] sm:$0xff]
    %v474 = vld [vmem:[#allocation7 + $0x1d8] sm:$0xff]
    %v475 = vld [vmem:[#allocation7 + $0x1e0] sm:$0xff]
    %v476 = vld [vmem:[#allocation7 + $0x1e8] sm:$0xff]
    %v477 = vld [vmem:[#allocation7 + $0x1f0] sm:$0xff]
    %v478 = vld [vmem:[#allocation7 + $0x1f8] sm:$0xff]
    %v479 = vld [vmem:[%s4] sm:$0x3]
    %v481 = vlaneseq
    %v482 = vshrl.u32 %v481, 7
    %v483 = vsub.s32 0, %v482
    %v484 = vrot.slane %v479, %v483
    %v485 = vlaneseq
    %v486 = vshrl.u32 %v485, 7
    %v487 = vsub.s32 1, %v486
    %v488 = vrot.slane %v479, %v487
    %v555 = vunpack.c.l.b16 %v415
    %v556 = vunpack.c.h.b16 %v415
    %v557 = vunpack.c.l.b16 %v416
    %v558 = vunpack.c.h.b16 %v416
    %v559 = vunpack.c.l.b16 %v417
    %v560 = vunpack.c.h.b16 %v417
    %v561 = vunpack.c.l.b16 %v418
    %v562 = vunpack.c.h.b16 %v418
    %v563 = vunpack.c.l.b16 %v419
    %v564 = vunpack.c.h.b16 %v419
    %v565 = vunpack.c.l.b16 %v420
    %v566 = vunpack.c.h.b16 %v420
    %v567 = vunpack.c.l.b16 %v421
    %v568 = vunpack.c.h.b16 %v421
    %v569 = vunpack.c.l.b16 %v422
    %v570 = vunpack.c.h.b16 %v422
    %v571 = vunpack.c.l.b16 %v423
    %v572 = vunpack.c.h.b16 %v423
    %v573 = vunpack.c.l.b16 %v424
    %v574 = vunpack.c.h.b16 %v424
    %v575 = vunpack.c.l.b16 %v425
    %v576 = vunpack.c.h.b16 %v425
    %v577 = vunpack.c.l.b16 %v426
    %v578 = vunpack.c.h.b16 %v426
    %v579 = vunpack.c.l.b16 %v427
    %v580 = vunpack.c.h.b16 %v427
    %v581 = vunpack.c.l.b16 %v428
    %v582 = vunpack.c.h.b16 %v428
    %v583 = vunpack.c.l.b16 %v429
    %v584 = vunpack.c.h.b16 %v429
    %v585 = vunpack.c.l.b16 %v430
    %v586 = vunpack.c.h.b16 %v430
    %v587 = vunpack.c.l.b16 %v431
    %v588 = vunpack.c.h.b16 %v431
    %v589 = vunpack.c.l.b16 %v432
    %v590 = vunpack.c.h.b16 %v432
    %v591 = vunpack.c.l.b16 %v433
    %v592 = vunpack.c.h.b16 %v433
    %v593 = vunpack.c.l.b16 %v434
    %v594 = vunpack.c.h.b16 %v434
    %v595 = vunpack.c.l.b16 %v435
    %v596 = vunpack.c.h.b16 %v435
    %v597 = vunpack.c.l.b16 %v436
    %v598 = vunpack.c.h.b16 %v436
    %v599 = vunpack.c.l.b16 %v437
    %v600 = vunpack.c.h.b16 %v437
    %v601 = vunpack.c.l.b16 %v438
    %v602 = vunpack.c.h.b16 %v438
    %v603 = vunpack.c.l.b16 %v439
    %v604 = vunpack.c.h.b16 %v439
    %v605 = vunpack.c.l.b16 %v440
    %v606 = vunpack.c.h.b16 %v440
    %v607 = vunpack.c.l.b16 %v441
    %v608 = vunpack.c.h.b16 %v441
    %v609 = vunpack.c.l.b16 %v442
    %v610 = vunpack.c.h.b16 %v442
    %v611 = vunpack.c.l.b16 %v443
    %v612 = vunpack.c.h.b16 %v443
    %v613 = vunpack.c.l.b16 %v444
    %v614 = vunpack.c.h.b16 %v444
    %v615 = vunpack.c.l.b16 %v445
    %v616 = vunpack.c.h.b16 %v445
    %v617 = vunpack.c.l.b16 %v446
    %v618 = vunpack.c.h.b16 %v446
    %v619 = vunpack.c.l.b16 %v447
    %v620 = vunpack.c.h.b16 %v447
    %v621 = vunpack.c.l.b16 %v448
    %v622 = vunpack.c.h.b16 %v448
    %v623 = vunpack.c.l.b16 %v449
    %v624 = vunpack.c.h.b16 %v449
    %v625 = vunpack.c.l.b16 %v450
    %v626 = vunpack.c.h.b16 %v450
    %v627 = vunpack.c.l.b16 %v451
    %v628 = vunpack.c.h.b16 %v451
    %v629 = vunpack.c.l.b16 %v452
    %v630 = vunpack.c.h.b16 %v452
    %v631 = vunpack.c.l.b16 %v453
    %v632 = vunpack.c.h.b16 %v453
    %v633 = vunpack.c.l.b16 %v454
    %v634 = vunpack.c.h.b16 %v454
    %v635 = vunpack.c.l.b16 %v455
    %v636 = vunpack.c.h.b16 %v455
    %v637 = vunpack.c.l.b16 %v456
    %v638 = vunpack.c.h.b16 %v456
    %v639 = vunpack.c.l.b16 %v457
    %v640 = vunpack.c.h.b16 %v457
    %v641 = vunpack.c.l.b16 %v458
    %v642 = vunpack.c.h.b16 %v458
    %v643 = vunpack.c.l.b16 %v459
    %v644 = vunpack.c.h.b16 %v459
    %v645 = vunpack.c.l.b16 %v460
    %v646 = vunpack.c.h.b16 %v460
    %v647 = vunpack.c.l.b16 %v461
    %v648 = vunpack.c.h.b16 %v461
    %v649 = vunpack.c.l.b16 %v462
    %v650 = vunpack.c.h.b16 %v462
    %v651 = vunpack.c.l.b16 %v463
    %v652 = vunpack.c.h.b16 %v463
    %v653 = vunpack.c.l.b16 %v464
    %v654 = vunpack.c.h.b16 %v464
    %v655 = vunpack.c.l.b16 %v465
    %v656 = vunpack.c.h.b16 %v465
    %v657 = vunpack.c.l.b16 %v466
    %v658 = vunpack.c.h.b16 %v466
    %v659 = vunpack.c.l.b16 %v467
    %v660 = vunpack.c.h.b16 %v467
    %v661 = vunpack.c.l.b16 %v468
    %v662 = vunpack.c.h.b16 %v468
    %v663 = vunpack.c.l.b16 %v469
    %v664 = vunpack.c.h.b16 %v469
    %v665 = vunpack.c.l.b16 %v470
    %v666 = vunpack.c.h.b16 %v470
    %v667 = vunpack.c.l.b16 %v471
    %v668 = vunpack.c.h.b16 %v471
    %v669 = vunpack.c.l.b16 %v472
    %v670 = vunpack.c.h.b16 %v472
    %v671 = vunpack.c.l.b16 %v473
    %v672 = vunpack.c.h.b16 %v473
    %v673 = vunpack.c.l.b16 %v474
    %v674 = vunpack.c.h.b16 %v474
    %v675 = vunpack.c.l.b16 %v475
    %v676 = vunpack.c.h.b16 %v475
    %v677 = vunpack.c.l.b16 %v476
    %v678 = vunpack.c.h.b16 %v476
    %v679 = vunpack.c.l.b16 %v477
    %v680 = vunpack.c.h.b16 %v477
    %v681 = vunpack.c.l.b16 %v478
    %v682 = vunpack.c.h.b16 %v478
    %v683 = vpack.c.b16 %v557, %v555
    %v684 = vpack.c.b16 %v558, %v556
    %v685 = vpack.c.b16 %v561, %v559
    %v686 = vpack.c.b16 %v562, %v560
    %v687 = vpack.c.b16 %v565, %v563
    %v688 = vpack.c.b16 %v566, %v564
    %v689 = vpack.c.b16 %v569, %v567
    %v690 = vpack.c.b16 %v570, %v568
    %v691 = vpack.c.b16 %v573, %v571
    %v692 = vpack.c.b16 %v574, %v572
    %v693 = vpack.c.b16 %v577, %v575
    %v694 = vpack.c.b16 %v578, %v576
    %v695 = vpack.c.b16 %v581, %v579
    %v696 = vpack.c.b16 %v582, %v580
    %v697 = vpack.c.b16 %v585, %v583
    %v698 = vpack.c.b16 %v586, %v584
    %v699 = vpack.c.b16 %v589, %v587
    %v700 = vpack.c.b16 %v590, %v588
    %v701 = vpack.c.b16 %v593, %v591
    %v702 = vpack.c.b16 %v594, %v592
    %v703 = vpack.c.b16 %v597, %v595
    %v704 = vpack.c.b16 %v598, %v596
    %v705 = vpack.c.b16 %v601, %v599
    %v706 = vpack.c.b16 %v602, %v600
    %v707 = vpack.c.b16 %v605, %v603
    %v708 = vpack.c.b16 %v606, %v604
    %v709 = vpack.c.b16 %v609, %v607
    %v710 = vpack.c.b16 %v610, %v608
    %v711 = vpack.c.b16 %v613, %v611
    %v712 = vpack.c.b16 %v614, %v612
    %v713 = vpack.c.b16 %v617, %v615
    %v714 = vpack.c.b16 %v618, %v616
    %v715 = vpack.c.b16 %v621, %v619
    %v716 = vpack.c.b16 %v622, %v620
    %v717 = vpack.c.b16 %v625, %v623
    %v718 = vpack.c.b16 %v626, %v624
    %v719 = vpack.c.b16 %v629, %v627
    %v720 = vpack.c.b16 %v630, %v628
    %v721 = vpack.c.b16 %v633, %v631
    %v722 = vpack.c.b16 %v634, %v632
    %v723 = vpack.c.b16 %v637, %v635
    %v724 = vpack.c.b16 %v638, %v636
    %v725 = vpack.c.b16 %v641, %v639
    %v726 = vpack.c.b16 %v642, %v640
    %v727 = vpack.c.b16 %v645, %v643
    %v728 = vpack.c.b16 %v646, %v644
    %v729 = vpack.c.b16 %v649, %v647
    %v730 = vpack.c.b16 %v650, %v648
    %v731 = vpack.c.b16 %v653, %v651
    %v732 = vpack.c.b16 %v654, %v652
    %v733 = vpack.c.b16 %v657, %v655
    %v734 = vpack.c.b16 %v658, %v656
    %v735 = vpack.c.b16 %v661, %v659
    %v736 = vpack.c.b16 %v662, %v660
    %v737 = vpack.c.b16 %v665, %v663
    %v738 = vpack.c.b16 %v666, %v664
    %v739 = vpack.c.b16 %v669, %v667
    %v740 = vpack.c.b16 %v670, %v668
    %v741 = vpack.c.b16 %v673, %v671
    %v742 = vpack.c.b16 %v674, %v672
    %v743 = vpack.c.b16 %v677, %v675
    %v744 = vpack.c.b16 %v678, %v676
    %v745 = vpack.c.b16 %v681, %v679
    %v746 = vpack.c.b16 %v682, %v680
    %811 = vmatprep.subr.bf16.mxu0 %v684
    %812 = vmatpush1.bf16.msra.mxu0 %v683
    %813 = vmatprep.subr.bf16.mxu0 %v686
    %814 = vmatpush1.bf16.msra.mxu0 %v685
    %815 = vmatprep.subr.bf16.mxu0 %v688
    %816 = vmatpush1.bf16.msra.mxu0 %v687
    %817 = vmatprep.subr.bf16.mxu0 %v690
    %818 = vmatpush1.bf16.msra.mxu0 %v689
    %819 = vmatprep.subr.bf16.mxu0 %v692
    %820 = vmatpush1.bf16.msra.mxu0 %v691
    %821 = vmatprep.subr.bf16.mxu0 %v694
    %822 = vmatpush1.bf16.msra.mxu0 %v693
    %823 = vmatprep.subr.bf16.mxu0 %v696
    %824 = vmatpush1.bf16.msra.mxu0 %v695
    %825 = vmatprep.subr.bf16.mxu0 %v698
    %826 = vmatpush1.bf16.msra.mxu0 %v697
    %827 = vmatprep.subr.bf16.mxu0 %v700
    %828 = vmatpush1.bf16.msra.mxu0 %v699
    %829 = vmatprep.subr.bf16.mxu0 %v702
    %830 = vmatpush1.bf16.msra.mxu0 %v701
    %831 = vmatprep.subr.bf16.mxu0 %v704
    %832 = vmatpush1.bf16.msra.mxu0 %v703
    %833 = vmatprep.subr.bf16.mxu0 %v706
    %834 = vmatpush1.bf16.msra.mxu0 %v705
    %835 = vmatprep.subr.bf16.mxu0 %v708
    %836 = vmatpush1.bf16.msra.mxu0 %v707
    %837 = vmatprep.subr.bf16.mxu0 %v710
    %838 = vmatpush1.bf16.msra.mxu0 %v709
    %839 = vmatprep.subr.bf16.mxu0 %v712
    %840 = vmatpush1.bf16.msra.mxu0 %v711
    %841 = vmatprep.subr.bf16.mxu0 %v714
    %842 = vmatpush1.bf16.msra.mxu0 %v713
    %843 = vmatprep.mubr.bf16.mxu0 %v412
    %844 = vmatmul.mubr.bf16.gmra.mrb[0].mxu0 %v411
    %v845 = vpop.f32.mrb[0].mxu0
    %v846 = vadd.f32 %v484, %v845
    %v847 = vpop.f32.mrb[0].mxu0
    %v848 = vadd.f32 %v488, %v847
    %v849 = vpop.f32.mrb[0].mxu0
    %v850 = vadd.f32 %v484, %v849
    %v851 = vpop.f32.mrb[0].mxu0
    %v852 = vadd.f32 %v488, %v851
    %853 = vdwg.mxu0
    %854 = vmatprep.subr.bf16.mxu0 %v716
    %855 = vmatpush1.bf16.msra.mxu0 %v715
    %856 = vmatprep.subr.bf16.mxu0 %v718
    %857 = vmatpush1.bf16.msra.mxu0 %v717
    %858 = vmatprep.subr.bf16.mxu0 %v720
    %859 = vmatpush1.bf16.msra.mxu0 %v719
    %860 = vmatprep.subr.bf16.mxu0 %v722
    %861 = vmatpush1.bf16.msra.mxu0 %v721
    %862 = vmatprep.subr.bf16.mxu0 %v724
    %863 = vmatpush1.bf16.msra.mxu0 %v723
    %864 = vmatprep.subr.bf16.mxu0 %v726
    %865 = vmatpush1.bf16.msra.mxu0 %v725
    %866 = vmatprep.subr.bf16.mxu0 %v728
    %867 = vmatpush1.bf16.msra.mxu0 %v727
    %868 = vmatprep.subr.bf16.mxu0 %v730
    %869 = vmatpush1.bf16.msra.mxu0 %v729
    %870 = vmatprep.subr.bf16.mxu0 %v732
    %871 = vmatpush1.bf16.msra.mxu0 %v731
    %872 = vmatprep.subr.bf16.mxu0 %v734
    %873 = vmatpush1.bf16.msra.mxu0 %v733
    %874 = vmatprep.subr.bf16.mxu0 %v736
    %875 = vmatpush1.bf16.msra.mxu0 %v735
    %876 = vmatprep.subr.bf16.mxu0 %v738
    %877 = vmatpush1.bf16.msra.mxu0 %v737
    %878 = vmatprep.subr.bf16.mxu0 %v740
    %879 = vmatpush1.bf16.msra.mxu0 %v739
    %880 = vmatprep.subr.bf16.mxu0 %v742
    %881 = vmatpush1.bf16.msra.mxu0 %v741
    %882 = vmatprep.subr.bf16.mxu0 %v744
    %883 = vmatpush1.bf16.msra.mxu0 %v743
    %884 = vmatprep.subr.bf16.mxu0 %v746
    %885 = vmatpush1.bf16.msra.mxu0 %v745
    %886 = vmatprep.mubr.bf16.mxu0 %v414
    %887 = vmatmul.mubr.bf16.gmra.mrb[0].mxu0 %v413
    %v888 = vpop.f32.mrb[0].mxu0
    %v889 = vadd.f32 %v846, %v888
    %v890 = vpop.f32.mrb[0].mxu0
    %v891 = vadd.f32 %v848, %v890
    %v892 = vpop.f32.mrb[0].mxu0
    %v893 = vadd.f32 %v850, %v892
    %v894 = vpop.f32.mrb[0].mxu0
    %v895 = vadd.f32 %v852, %v894
    %896 = vdwg.mxu0
    %v897 = vpack.c.bf16 %v893, %v889
    %v898 = vpack.c.bf16 %v895, %v891
    %v899 = vld [vmem:[#allocation8] sm:$0xff]
    %v900 = vld [vmem:[#allocation8 + $0x8] sm:$0xff]
    %v901 = vld [vmem:[#allocation8 + $0x10] sm:$0xff]
    %v902 = vld [vmem:[#allocation8 + $0x18] sm:$0xff]
    %v903 = vld [vmem:[#allocation8 + $0x20] sm:$0xff]
    %v904 = vld [vmem:[#allocation8 + $0x28] sm:$0xff]
    %v905 = vld [vmem:[#allocation8 + $0x30] sm:$0xff]
    %v906 = vld [vmem:[#allocation8 + $0x38] sm:$0xff]
    %v907 = vld [vmem:[#allocation8 + $0x40] sm:$0xff]
    %v908 = vld [vmem:[#allocation8 + $0x48] sm:$0xff]
    %v909 = vld [vmem:[#allocation8 + $0x50] sm:$0xff]
    %v910 = vld [vmem:[#allocation8 + $0x58] sm:$0xff]
    %v911 = vld [vmem:[#allocation8 + $0x60] sm:$0xff]
    %v912 = vld [vmem:[#allocation8 + $0x68] sm:$0xff]
    %v913 = vld [vmem:[#allocation8 + $0x70] sm:$0xff]
    %v914 = vld [vmem:[#allocation8 + $0x78] sm:$0xff]
    %v915 = vld [vmem:[#allocation8 + $0x80] sm:$0xff]
    %v916 = vld [vmem:[#allocation8 + $0x88] sm:$0xff]
    %v917 = vld [vmem:[#allocation8 + $0x90] sm:$0xff]
    %v918 = vld [vmem:[#allocation8 + $0x98] sm:$0xff]
    %v919 = vld [vmem:[#allocation8 + $0xa0] sm:$0xff]
    %v920 = vld [vmem:[#allocation8 + $0xa8] sm:$0xff]
    %v921 = vld [vmem:[#allocation8 + $0xb0] sm:$0xff]
    %v922 = vld [vmem:[#allocation8 + $0xb8] sm:$0xff]
    %v923 = vld [vmem:[#allocation8 + $0xc0] sm:$0xff]
    %v924 = vld [vmem:[#allocation8 + $0xc8] sm:$0xff]
    %v925 = vld [vmem:[#allocation8 + $0xd0] sm:$0xff]
    %v926 = vld [vmem:[#allocation8 + $0xd8] sm:$0xff]
    %v927 = vld [vmem:[#allocation8 + $0xe0] sm:$0xff]
    %v928 = vld [vmem:[#allocation8 + $0xe8] sm:$0xff]
    %v929 = vld [vmem:[#allocation8 + $0xf0] sm:$0xff]
    %v930 = vld [vmem:[#allocation8 + $0xf8] sm:$0xff]
    %v931 = vld [vmem:[#allocation8 + $0x100] sm:$0xff]
    %v932 = vld [vmem:[#allocation8 + $0x108] sm:$0xff]
    %v933 = vld [vmem:[#allocation8 + $0x110] sm:$0xff]
    %v934 = vld [vmem:[#allocation8 + $0x118] sm:$0xff]
    %v935 = vld [vmem:[#allocation8 + $0x120] sm:$0xff]
    %v936 = vld [vmem:[#allocation8 + $0x128] sm:$0xff]
    %v937 = vld [vmem:[#allocation8 + $0x130] sm:$0xff]
    %v938 = vld [vmem:[#allocation8 + $0x138] sm:$0xff]
    %v939 = vld [vmem:[#allocation8 + $0x140] sm:$0xff]
    %v940 = vld [vmem:[#allocation8 + $0x148] sm:$0xff]
    %v941 = vld [vmem:[#allocation8 + $0x150] sm:$0xff]
    %v942 = vld [vmem:[#allocation8 + $0x158] sm:$0xff]
    %v943 = vld [vmem:[#allocation8 + $0x160] sm:$0xff]
    %v944 = vld [vmem:[#allocation8 + $0x168] sm:$0xff]
    %v945 = vld [vmem:[#allocation8 + $0x170] sm:$0xff]
    %v946 = vld [vmem:[#allocation8 + $0x178] sm:$0xff]
    %v947 = vld [vmem:[#allocation8 + $0x180] sm:$0xff]
    %v948 = vld [vmem:[#allocation8 + $0x188] sm:$0xff]
    %v949 = vld [vmem:[#allocation8 + $0x190] sm:$0xff]
    %v950 = vld [vmem:[#allocation8 + $0x198] sm:$0xff]
    %v951 = vld [vmem:[#allocation8 + $0x1a0] sm:$0xff]
    %v952 = vld [vmem:[#allocation8 + $0x1a8] sm:$0xff]
    %v953 = vld [vmem:[#allocation8 + $0x1b0] sm:$0xff]
    %v954 = vld [vmem:[#allocation8 + $0x1b8] sm:$0xff]
    %v955 = vld [vmem:[#allocation8 + $0x1c0] sm:$0xff]
    %v956 = vld [vmem:[#allocation8 + $0x1c8] sm:$0xff]
    %v957 = vld [vmem:[#allocation8 + $0x1d0] sm:$0xff]
    %v958 = vld [vmem:[#allocation8 + $0x1d8] sm:$0xff]
    %v959 = vld [vmem:[#allocation8 + $0x1e0] sm:$0xff]
    %v960 = vld [vmem:[#allocation8 + $0x1e8] sm:$0xff]
    %v961 = vld [vmem:[#allocation8 + $0x1f0] sm:$0xff]
    %v962 = vld [vmem:[#allocation8 + $0x1f8] sm:$0xff]
    %v963 = vld [vmem:[%s6] sm:$0xf]
    %v965 = vlaneseq
    %v966 = vshrl.u32 %v965, 7
    %v967 = vsub.s32 0, %v966
    %v968 = vrot.slane %v963, %v967
    %v969 = vlaneseq
    %v970 = vshrl.u32 %v969, 7
    %v971 = vsub.s32 1, %v970
    %v972 = vrot.slane %v963, %v971
    %v973 = vlaneseq
    %v974 = vshrl.u32 %v973, 7
    %v975 = vsub.s32 2, %v974
    %v976 = vrot.slane %v963, %v975
    %v977 = vlaneseq
    %v978 = vshrl.u32 %v977, 7
    %v979 = vsub.s32 3, %v978
    %v980 = vrot.slane %v963, %v979
    %v1049 = vunpack.c.l.b16 %v899
    %v1050 = vunpack.c.h.b16 %v899
    %v1051 = vunpack.c.l.b16 %v900
    %v1052 = vunpack.c.h.b16 %v900
    %v1053 = vunpack.c.l.b16 %v901
    %v1054 = vunpack.c.h.b16 %v901
    %v1055 = vunpack.c.l.b16 %v902
    %v1056 = vunpack.c.h.b16 %v902
    %v1057 = vunpack.c.l.b16 %v903
    %v1058 = vunpack.c.h.b16 %v903
    %v1059 = vunpack.c.l.b16 %v904
    %v1060 = vunpack.c.h.b16 %v904
    %v1061 = vunpack.c.l.b16 %v905
    %v1062 = vunpack.c.h.b16 %v905
    %v1063 = vunpack.c.l.b16 %v906
    %v1064 = vunpack.c.h.b16 %v906
    %v1065 = vunpack.c.l.b16 %v907
    %v1066 = vunpack.c.h.b16 %v907
    %v1067 = vunpack.c.l.b16 %v908
    %v1068 = vunpack.c.h.b16 %v908
    %v1069 = vunpack.c.l.b16 %v909
    %v1070 = vunpack.c.h.b16 %v909
    %v1071 = vunpack.c.l.b16 %v910
    %v1072 = vunpack.c.h.b16 %v910
    %v1073 = vunpack.c.l.b16 %v911
    %v1074 = vunpack.c.h.b16 %v911
    %v1075 = vunpack.c.l.b16 %v912
    %v1076 = vunpack.c.h.b16 %v912
    %v1077 = vunpack.c.l.b16 %v913
    %v1078 = vunpack.c.h.b16 %v913
    %v1079 = vunpack.c.l.b16 %v914
    %v1080 = vunpack.c.h.b16 %v914
    %v1081 = vunpack.c.l.b16 %v915
    %v1082 = vunpack.c.h.b16 %v915
    %v1083 = vunpack.c.l.b16 %v916
    %v1084 = vunpack.c.h.b16 %v916
    %v1085 = vunpack.c.l.b16 %v917
    %v1086 = vunpack.c.h.b16 %v917
    %v1087 = vunpack.c.l.b16 %v918
    %v1088 = vunpack.c.h.b16 %v918
    %v1089 = vunpack.c.l.b16 %v919
    %v1090 = vunpack.c.h.b16 %v919
    %v1091 = vunpack.c.l.b16 %v920
    %v1092 = vunpack.c.h.b16 %v920
    %v1093 = vunpack.c.l.b16 %v921
    %v1094 = vunpack.c.h.b16 %v921
    %v1095 = vunpack.c.l.b16 %v922
    %v1096 = vunpack.c.h.b16 %v922
    %v1097 = vunpack.c.l.b16 %v923
    %v1098 = vunpack.c.h.b16 %v923
    %v1099 = vunpack.c.l.b16 %v924
    %v1100 = vunpack.c.h.b16 %v924
    %v1101 = vunpack.c.l.b16 %v925
    %v1102 = vunpack.c.h.b16 %v925
    %v1103 = vunpack.c.l.b16 %v926
    %v1104 = vunpack.c.h.b16 %v926
    %v1105 = vunpack.c.l.b16 %v927
    %v1106 = vunpack.c.h.b16 %v927
    %v1107 = vunpack.c.l.b16 %v928
    %v1108 = vunpack.c.h.b16 %v928
    %v1109 = vunpack.c.l.b16 %v929
    %v1110 = vunpack.c.h.b16 %v929
    %v1111 = vunpack.c.l.b16 %v930
    %v1112 = vunpack.c.h.b16 %v930
    %v1113 = vunpack.c.l.b16 %v931
    %v1114 = vunpack.c.h.b16 %v931
    %v1115 = vunpack.c.l.b16 %v932
    %v1116 = vunpack.c.h.b16 %v932
    %v1117 = vunpack.c.l.b16 %v933
    %v1118 = vunpack.c.h.b16 %v933
    %v1119 = vunpack.c.l.b16 %v934
    %v1120 = vunpack.c.h.b16 %v934
    %v1121 = vunpack.c.l.b16 %v935
    %v1122 = vunpack.c.h.b16 %v935
    %v1123 = vunpack.c.l.b16 %v936
    %v1124 = vunpack.c.h.b16 %v936
    %v1125 = vunpack.c.l.b16 %v937
    %v1126 = vunpack.c.h.b16 %v937
    %v1127 = vunpack.c.l.b16 %v938
    %v1128 = vunpack.c.h.b16 %v938
    %v1129 = vunpack.c.l.b16 %v939
    %v1130 = vunpack.c.h.b16 %v939
    %v1131 = vunpack.c.l.b16 %v940
    %v1132 = vunpack.c.h.b16 %v940
    %v1133 = vunpack.c.l.b16 %v941
    %v1134 = vunpack.c.h.b16 %v941
    %v1135 = vunpack.c.l.b16 %v942
    %v1136 = vunpack.c.h.b16 %v942
    %v1137 = vunpack.c.l.b16 %v943
    %v1138 = vunpack.c.h.b16 %v943
    %v1139 = vunpack.c.l.b16 %v944
    %v1140 = vunpack.c.h.b16 %v944
    %v1141 = vunpack.c.l.b16 %v945
    %v1142 = vunpack.c.h.b16 %v945
    %v1143 = vunpack.c.l.b16 %v946
    %v1144 = vunpack.c.h.b16 %v946
    %v1145 = vunpack.c.l.b16 %v947
    %v1146 = vunpack.c.h.b16 %v947
    %v1147 = vunpack.c.l.b16 %v948
    %v1148 = vunpack.c.h.b16 %v948
    %v1149 = vunpack.c.l.b16 %v949
    %v1150 = vunpack.c.h.b16 %v949
    %v1151 = vunpack.c.l.b16 %v950
    %v1152 = vunpack.c.h.b16 %v950
    %v1153 = vunpack.c.l.b16 %v951
    %v1154 = vunpack.c.h.b16 %v951
    %v1155 = vunpack.c.l.b16 %v952
    %v1156 = vunpack.c.h.b16 %v952
    %v1157 = vunpack.c.l.b16 %v953
    %v1158 = vunpack.c.h.b16 %v953
    %v1159 = vunpack.c.l.b16 %v954
    %v1160 = vunpack.c.h.b16 %v954
    %v1161 = vunpack.c.l.b16 %v955
    %v1162 = vunpack.c.h.b16 %v955
    %v1163 = vunpack.c.l.b16 %v956
    %v1164 = vunpack.c.h.b16 %v956
    %v1165 = vunpack.c.l.b16 %v957
    %v1166 = vunpack.c.h.b16 %v957
    %v1167 = vunpack.c.l.b16 %v958
    %v1168 = vunpack.c.h.b16 %v958
    %v1169 = vunpack.c.l.b16 %v959
    %v1170 = vunpack.c.h.b16 %v959
    %v1171 = vunpack.c.l.b16 %v960
    %v1172 = vunpack.c.h.b16 %v960
    %v1173 = vunpack.c.l.b16 %v961
    %v1174 = vunpack.c.h.b16 %v961
    %v1175 = vunpack.c.l.b16 %v962
    %v1176 = vunpack.c.h.b16 %v962
    %v1177 = vpack.c.b16 %v1053, %v1049
    %v1178 = vpack.c.b16 %v1054, %v1050
    %v1179 = vpack.c.b16 %v1055, %v1051
    %v1180 = vpack.c.b16 %v1056, %v1052
    %v1181 = vpack.c.b16 %v1061, %v1057
    %v1182 = vpack.c.b16 %v1062, %v1058
    %v1183 = vpack.c.b16 %v1063, %v1059
    %v1184 = vpack.c.b16 %v1064, %v1060
    %v1185 = vpack.c.b16 %v1069, %v1065
    %v1186 = vpack.c.b16 %v1070, %v1066
    %v1187 = vpack.c.b16 %v1071, %v1067
    %v1188 = vpack.c.b16 %v1072, %v1068
    %v1189 = vpack.c.b16 %v1077, %v1073
    %v1190 = vpack.c.b16 %v1078, %v1074
    %v1191 = vpack.c.b16 %v1079, %v1075
    %v1192 = vpack.c.b16 %v1080, %v1076
    %v1193 = vpack.c.b16 %v1085, %v1081
    %v1194 = vpack.c.b16 %v1086, %v1082
    %v1195 = vpack.c.b16 %v1087, %v1083
    %v1196 = vpack.c.b16 %v1088, %v1084
    %v1197 = vpack.c.b16 %v1093, %v1089
    %v1198 = vpack.c.b16 %v1094, %v1090
    %v1199 = vpack.c.b16 %v1095, %v1091
    %v1200 = vpack.c.b16 %v1096, %v1092
    %v1201 = vpack.c.b16 %v1101, %v1097
    %v1202 = vpack.c.b16 %v1102, %v1098
    %v1203 = vpack.c.b16 %v1103, %v1099
    %v1204 = vpack.c.b16 %v1104, %v1100
    %v1205 = vpack.c.b16 %v1109, %v1105
    %v1206 = vpack.c.b16 %v1110, %v1106
    %v1207 = vpack.c.b16 %v1111, %v1107
    %v1208 = vpack.c.b16 %v1112, %v1108
    %v1209 = vpack.c.b16 %v1117, %v1113
    %v1210 = vpack.c.b16 %v1118, %v1114
    %v1211 = vpack.c.b16 %v1119, %v1115
    %v1212 = vpack.c.b16 %v1120, %v1116
    %v1213 = vpack.c.b16 %v1125, %v1121
    %v1214 = vpack.c.b16 %v1126, %v1122
    %v1215 = vpack.c.b16 %v1127, %v1123
    %v1216 = vpack.c.b16 %v1128, %v1124
    %v1217 = vpack.c.b16 %v1133, %v1129
    %v1218 = vpack.c.b16 %v1134, %v1130
    %v1219 = vpack.c.b16 %v1135, %v1131
    %v1220 = vpack.c.b16 %v1136, %v1132
    %v1221 = vpack.c.b16 %v1141, %v1137
    %v1222 = vpack.c.b16 %v1142, %v1138
    %v1223 = vpack.c.b16 %v1143, %v1139
    %v1224 = vpack.c.b16 %v1144, %v1140
    %v1225 = vpack.c.b16 %v1149, %v1145
    %v1226 = vpack.c.b16 %v1150, %v1146
    %v1227 = vpack.c.b16 %v1151, %v1147
    %v1228 = vpack.c.b16 %v1152, %v1148
    %v1229 = vpack.c.b16 %v1157, %v1153
    %v1230 = vpack.c.b16 %v1158, %v1154
    %v1231 = vpack.c.b16 %v1159, %v1155
    %v1232 = vpack.c.b16 %v1160, %v1156
    %v1233 = vpack.c.b16 %v1165, %v1161
    %v1234 = vpack.c.b16 %v1166, %v1162
    %v1235 = vpack.c.b16 %v1167, %v1163
    %v1236 = vpack.c.b16 %v1168, %v1164
    %v1237 = vpack.c.b16 %v1173, %v1169
    %v1238 = vpack.c.b16 %v1174, %v1170
    %v1239 = vpack.c.b16 %v1175, %v1171
    %v1240 = vpack.c.b16 %v1176, %v1172
    %1305 = vmatprep.subr.bf16.mxu0 %v1178
    %1306 = vmatpush1.bf16.msra.mxu0 %v1177
    %1307 = vmatprep.subr.bf16.mxu0 %v1182
    %1308 = vmatpush1.bf16.msra.mxu0 %v1181
    %1309 = vmatprep.subr.bf16.mxu0 %v1186
    %1310 = vmatpush1.bf16.msra.mxu0 %v1185
    %1311 = vmatprep.subr.bf16.mxu0 %v1190
    %1312 = vmatpush1.bf16.msra.mxu0 %v1189
    %1313 = vmatprep.subr.bf16.mxu0 %v1194
    %1314 = vmatpush1.bf16.msra.mxu0 %v1193
    %1315 = vmatprep.subr.bf16.mxu0 %v1198
    %1316 = vmatpush1.bf16.msra.mxu0 %v1197
    %1317 = vmatprep.subr.bf16.mxu0 %v1202
    %1318 = vmatpush1.bf16.msra.mxu0 %v1201
    %1319 = vmatprep.subr.bf16.mxu0 %v1206
    %1320 = vmatpush1.bf16.msra.mxu0 %v1205
    %1321 = vmatprep.subr.bf16.mxu0 %v1210
    %1322 = vmatpush1.bf16.msra.mxu0 %v1209
    %1323 = vmatprep.subr.bf16.mxu0 %v1214
    %1324 = vmatpush1.bf16.msra.mxu0 %v1213
    %1325 = vmatprep.subr.bf16.mxu0 %v1218
    %1326 = vmatpush1.bf16.msra.mxu0 %v1217
    %1327 = vmatprep.subr.bf16.mxu0 %v1222
    %1328 = vmatpush1.bf16.msra.mxu0 %v1221
    %1329 = vmatprep.subr.bf16.mxu0 %v1226
    %1330 = vmatpush1.bf16.msra.mxu0 %v1225
    %1331 = vmatprep.subr.bf16.mxu0 %v1230
    %1332 = vmatpush1.bf16.msra.mxu0 %v1229
    %1333 = vmatprep.subr.bf16.mxu0 %v1234
    %1334 = vmatpush1.bf16.msra.mxu0 %v1233
    %1335 = vmatprep.subr.bf16.mxu0 %v1238
    %1336 = vmatpush1.bf16.msra.mxu0 %v1237
    %1337 = vmatprep.mubr.bf16.mxu0 %v898
    %1338 = vmatmul.mubr.bf16.gmra.mrb[0].mxu0 %v897
    %v1339 = vpop.f32.mrb[0].mxu0
    %v1340 = vadd.f32 %v968, %v1339
    %v1341 = vpop.f32.mrb[0].mxu0
    %v1342 = vadd.f32 %v972, %v1341
    %v1343 = vpop.f32.mrb[0].mxu0
    %v1344 = vadd.f32 %v968, %v1343
    %v1345 = vpop.f32.mrb[0].mxu0
    %v1346 = vadd.f32 %v972, %v1345
    %1347 = vdwg.mxu0
    %1348 = vmatprep.subr.bf16.mxu0 %v1180
    %1349 = vmatpush1.bf16.msra.mxu0 %v1179
    %1350 = vmatprep.subr.bf16.mxu0 %v1184
    %1351 = vmatpush1.bf16.msra.mxu0 %v1183
    %1352 = vmatprep.subr.bf16.mxu0 %v1188
    %1353 = vmatpush1.bf16.msra.mxu0 %v1187
    %1354 = vmatprep.subr.bf16.mxu0 %v1192
    %1355 = vmatpush1.bf16.msra.mxu0 %v1191
    %1356 = vmatprep.subr.bf16.mxu0 %v1196
    %1357 = vmatpush1.bf16.msra.mxu0 %v1195
    %1358 = vmatprep.subr.bf16.mxu0 %v1200
    %1359 = vmatpush1.bf16.msra.mxu0 %v1199
    %1360 = vmatprep.subr.bf16.mxu0 %v1204
    %1361 = vmatpush1.bf16.msra.mxu0 %v1203
    %1362 = vmatprep.subr.bf16.mxu0 %v1208
    %1363 = vmatpush1.bf16.msra.mxu0 %v1207
    %1364 = vmatprep.subr.bf16.mxu0 %v1212
    %1365 = vmatpush1.bf16.msra.mxu0 %v1211
    %1366 = vmatprep.subr.bf16.mxu0 %v1216
    %1367 = vmatpush1.bf16.msra.mxu0 %v1215
    %1368 = vmatprep.subr.bf16.mxu0 %v1220
    %1369 = vmatpush1.bf16.msra.mxu0 %v1219
    %1370 = vmatprep.subr.bf16.mxu0 %v1224
    %1371 = vmatpush1.bf16.msra.mxu0 %v1223
    %1372 = vmatprep.subr.bf16.mxu0 %v1228
    %1373 = vmatpush1.bf16.msra.mxu0 %v1227
    %1374 = vmatprep.subr.bf16.mxu0 %v1232
    %1375 = vmatpush1.bf16.msra.mxu0 %v1231
    %1376 = vmatprep.subr.bf16.mxu0 %v1236
    %1377 = vmatpush1.bf16.msra.mxu0 %v1235
    %1378 = vmatprep.subr.bf16.mxu0 %v1240
    %1379 = vmatpush1.bf16.msra.mxu0 %v1239
    %1380 = vmatprep.mubr.bf16.mxu0 %v898
    %1381 = vmatmul.mubr.bf16.gmra.mrb[0].mxu0 %v897
    %v1382 = vpop.f32.mrb[0].mxu0
    %v1383 = vadd.f32 %v976, %v1382
    %v1384 = vpop.f32.mrb[0].mxu0
    %v1385 = vadd.f32 %v980, %v1384
    %v1386 = vpop.f32.mrb[0].mxu0
    %v1387 = vadd.f32 %v976, %v1386
    %v1388 = vpop.f32.mrb[0].mxu0
    %v1389 = vadd.f32 %v980, %v1388
    %1390 = vdwg.mxu0
    %v1391 = vmax.f32 %v1340, 0.0
    %v1392 = vmax.f32 %v1342, 0.0
    %v1393 = vmax.f32 %v1383, 0.0
    %v1394 = vmax.f32 %v1385, 0.0
    %v1395 = vmax.f32 %v1344, 0.0
    %v1396 = vmax.f32 %v1346, 0.0
    %v1397 = vmax.f32 %v1387, 0.0
    %v1398 = vmax.f32 %v1389, 0.0
    %v1399 = vpack.c.bf16 %v1395, %v1391
    %v1400 = vpack.c.bf16 %v1396, %v1392
    %v1401 = vpack.c.bf16 %v1397, %v1393
    %v1402 = vpack.c.bf16 %v1398, %v1394
    %v1403 = vld [vmem:[#allocation10] sm:$0xf]
    %v1404 = vld [vmem:[#allocation10 + $0x4] sm:$0xf]
    %v1405 = vld [vmem:[#allocation10 + $0x8] sm:$0xf]
    %v1406 = vld [vmem:[#allocation10 + $0xc] sm:$0xf]
    %v1407 = vld [vmem:[#allocation10 + $0x10] sm:$0xf]
    %v1408 = vld [vmem:[#allocation10 + $0x14] sm:$0xf]
    %v1409 = vld [vmem:[#allocation10 + $0x18] sm:$0xf]
    %v1410 = vld [vmem:[#allocation10 + $0x1c] sm:$0xf]
    %v1411 = vld [vmem:[#allocation10 + $0x20] sm:$0xf]
    %v1412 = vld [vmem:[#allocation10 + $0x24] sm:$0xf]
    %v1413 = vld [vmem:[#allocation10 + $0x28] sm:$0xf]
    %v1414 = vld [vmem:[#allocation10 + $0x2c] sm:$0xf]
    %v1415 = vld [vmem:[#allocation10 + $0x30] sm:$0xf]
    %v1416 = vld [vmem:[#allocation10 + $0x34] sm:$0xf]
    %v1417 = vld [vmem:[#allocation10 + $0x38] sm:$0xf]
    %v1418 = vld [vmem:[#allocation10 + $0x3c] sm:$0xf]
    %v1419 = vld [vmem:[#allocation10 + $0x40] sm:$0xf]
    %v1420 = vld [vmem:[#allocation10 + $0x44] sm:$0xf]
    %v1421 = vld [vmem:[#allocation10 + $0x48] sm:$0xf]
    %v1422 = vld [vmem:[#allocation10 + $0x4c] sm:$0xf]
    %v1423 = vld [vmem:[#allocation10 + $0x50] sm:$0xf]
    %v1424 = vld [vmem:[#allocation10 + $0x54] sm:$0xf]
    %v1425 = vld [vmem:[#allocation10 + $0x58] sm:$0xf]
    %v1426 = vld [vmem:[#allocation10 + $0x5c] sm:$0xf]
    %v1427 = vld [vmem:[#allocation10 + $0x60] sm:$0xf]
    %v1428 = vld [vmem:[#allocation10 + $0x64] sm:$0xf]
    %v1429 = vld [vmem:[#allocation10 + $0x68] sm:$0xf]
    %v1430 = vld [vmem:[#allocation10 + $0x6c] sm:$0xf]
    %v1431 = vld [vmem:[#allocation10 + $0x70] sm:$0xf]
    %v1432 = vld [vmem:[#allocation10 + $0x74] sm:$0xf]
    %v1433 = vld [vmem:[#allocation10 + $0x78] sm:$0xf]
    %v1434 = vld [vmem:[#allocation10 + $0x7c] sm:$0xf]
    %v1435 = vld [vmem:[#allocation10 + $0x80] sm:$0xf]
    %v1436 = vld [vmem:[#allocation10 + $0x84] sm:$0xf]
    %v1437 = vld [vmem:[#allocation10 + $0x88] sm:$0xf]
    %v1438 = vld [vmem:[#allocation10 + $0x8c] sm:$0xf]
    %v1439 = vld [vmem:[#allocation10 + $0x90] sm:$0xf]
    %v1440 = vld [vmem:[#allocation10 + $0x94] sm:$0xf]
    %v1441 = vld [vmem:[#allocation10 + $0x98] sm:$0xf]
    %v1442 = vld [vmem:[#allocation10 + $0x9c] sm:$0xf]
    %v1443 = vld [vmem:[#allocation10 + $0xa0] sm:$0xf]
    %v1444 = vld [vmem:[#allocation10 + $0xa4] sm:$0xf]
    %v1445 = vld [vmem:[#allocation10 + $0xa8] sm:$0xf]
    %v1446 = vld [vmem:[#allocation10 + $0xac] sm:$0xf]
    %v1447 = vld [vmem:[#allocation10 + $0xb0] sm:$0xf]
    %v1448 = vld [vmem:[#allocation10 + $0xb4] sm:$0xf]
    %v1449 = vld [vmem:[#allocation10 + $0xb8] sm:$0xf]
    %v1450 = vld [vmem:[#allocation10 + $0xbc] sm:$0xf]
    %v1451 = vld [vmem:[#allocation10 + $0xc0] sm:$0xf]
    %v1452 = vld [vmem:[#allocation10 + $0xc4] sm:$0xf]
    %v1453 = vld [vmem:[#allocation10 + $0xc8] sm:$0xf]
    %v1454 = vld [vmem:[#allocation10 + $0xcc] sm:$0xf]
    %v1455 = vld [vmem:[#allocation10 + $0xd0] sm:$0xf]
    %v1456 = vld [vmem:[#allocation10 + $0xd4] sm:$0xf]
    %v1457 = vld [vmem:[#allocation10 + $0xd8] sm:$0xf]
    %v1458 = vld [vmem:[#allocation10 + $0xdc] sm:$0xf]
    %v1459 = vld [vmem:[#allocation10 + $0xe0] sm:$0xf]
    %v1460 = vld [vmem:[#allocation10 + $0xe4] sm:$0xf]
    %v1461 = vld [vmem:[#allocation10 + $0xe8] sm:$0xf]
    %v1462 = vld [vmem:[#allocation10 + $0xec] sm:$0xf]
    %v1463 = vld [vmem:[#allocation10 + $0xf0] sm:$0xf]
    %v1464 = vld [vmem:[#allocation10 + $0xf4] sm:$0xf]
    %v1465 = vld [vmem:[#allocation10 + $0xf8] sm:$0xf]
    %v1466 = vld [vmem:[#allocation10 + $0xfc] sm:$0xf]
    %v1467 = vld [vmem:[%s8] sm:$0x1]
    %v1469 = vlaneseq
    %v1470 = vshrl.u32 %v1469, 7
    %v1471 = vsub.s32 0, %v1470
    %v1472 = vrot.slane %v1467, %v1471
    %v1538 = vunpack.c.l.b16 %v1403
    %v1539 = vunpack.c.l.b16 %v1404
    %v1540 = vunpack.c.l.b16 %v1405
    %v1541 = vunpack.c.l.b16 %v1406
    %v1542 = vunpack.c.l.b16 %v1407
    %v1543 = vunpack.c.l.b16 %v1408
    %v1544 = vunpack.c.l.b16 %v1409
    %v1545 = vunpack.c.l.b16 %v1410
    %v1546 = vunpack.c.l.b16 %v1411
    %v1547 = vunpack.c.l.b16 %v1412
    %v1548 = vunpack.c.l.b16 %v1413
    %v1549 = vunpack.c.l.b16 %v1414
    %v1550 = vunpack.c.l.b16 %v1415
    %v1551 = vunpack.c.l.b16 %v1416
    %v1552 = vunpack.c.l.b16 %v1417
    %v1553 = vunpack.c.l.b16 %v1418
    %v1554 = vunpack.c.l.b16 %v1419
    %v1555 = vunpack.c.l.b16 %v1420
    %v1556 = vunpack.c.l.b16 %v1421
    %v1557 = vunpack.c.l.b16 %v1422
    %v1558 = vunpack.c.l.b16 %v1423
    %v1559 = vunpack.c.l.b16 %v1424
    %v1560 = vunpack.c.l.b16 %v1425
    %v1561 = vunpack.c.l.b16 %v1426
    %v1562 = vunpack.c.l.b16 %v1427
    %v1563 = vunpack.c.l.b16 %v1428
    %v1564 = vunpack.c.l.b16 %v1429
    %v1565 = vunpack.c.l.b16 %v1430
    %v1566 = vunpack.c.l.b16 %v1431
    %v1567 = vunpack.c.l.b16 %v1432
    %v1568 = vunpack.c.l.b16 %v1433
    %v1569 = vunpack.c.l.b16 %v1434
    %v1570 = vunpack.c.l.b16 %v1435
    %v1571 = vunpack.c.l.b16 %v1436
    %v1572 = vunpack.c.l.b16 %v1437
    %v1573 = vunpack.c.l.b16 %v1438
    %v1574 = vunpack.c.l.b16 %v1439
    %v1575 = vunpack.c.l.b16 %v1440
    %v1576 = vunpack.c.l.b16 %v1441
    %v1577 = vunpack.c.l.b16 %v1442
    %v1578 = vunpack.c.l.b16 %v1443
    %v1579 = vunpack.c.l.b16 %v1444
    %v1580 = vunpack.c.l.b16 %v1445
    %v1581 = vunpack.c.l.b16 %v1446
    %v1582 = vunpack.c.l.b16 %v1447
    %v1583 = vunpack.c.l.b16 %v1448
    %v1584 = vunpack.c.l.b16 %v1449
    %v1585 = vunpack.c.l.b16 %v1450
    %v1586 = vunpack.c.l.b16 %v1451
    %v1587 = vunpack.c.l.b16 %v1452
    %v1588 = vunpack.c.l.b16 %v1453
    %v1589 = vunpack.c.l.b16 %v1454
    %v1590 = vunpack.c.l.b16 %v1455
    %v1591 = vunpack.c.l.b16 %v1456
    %v1592 = vunpack.c.l.b16 %v1457
    %v1593 = vunpack.c.l.b16 %v1458
    %v1594 = vunpack.c.l.b16 %v1459
    %v1595 = vunpack.c.l.b16 %v1460
    %v1596 = vunpack.c.l.b16 %v1461
    %v1597 = vunpack.c.l.b16 %v1462
    %v1598 = vunpack.c.l.b16 %v1463
    %v1599 = vunpack.c.l.b16 %v1464
    %v1600 = vunpack.c.l.b16 %v1465
    %v1601 = vunpack.c.l.b16 %v1466
    %v1602 = vpack.c.b16 %v1539, %v1538
    %v1603 = vpack.c.b16 %v1541, %v1540
    %v1604 = vpack.c.b16 %v1543, %v1542
    %v1605 = vpack.c.b16 %v1545, %v1544
    %v1606 = vpack.c.b16 %v1547, %v1546
    %v1607 = vpack.c.b16 %v1549, %v1548
    %v1608 = vpack.c.b16 %v1551, %v1550
    %v1609 = vpack.c.b16 %v1553, %v1552
    %v1610 = vpack.c.b16 %v1555, %v1554
    %v1611 = vpack.c.b16 %v1557, %v1556
    %v1612 = vpack.c.b16 %v1559, %v1558
    %v1613 = vpack.c.b16 %v1561, %v1560
    %v1614 = vpack.c.b16 %v1563, %v1562
    %v1615 = vpack.c.b16 %v1565, %v1564
    %v1616 = vpack.c.b16 %v1567, %v1566
    %v1617 = vpack.c.b16 %v1569, %v1568
    %v1618 = vpack.c.b16 %v1571, %v1570
    %v1619 = vpack.c.b16 %v1573, %v1572
    %v1620 = vpack.c.b16 %v1575, %v1574
    %v1621 = vpack.c.b16 %v1577, %v1576
    %v1622 = vpack.c.b16 %v1579, %v1578
    %v1623 = vpack.c.b16 %v1581, %v1580
    %v1624 = vpack.c.b16 %v1583, %v1582
    %v1625 = vpack.c.b16 %v1585, %v1584
    %v1626 = vpack.c.b16 %v1587, %v1586
    %v1627 = vpack.c.b16 %v1589, %v1588
    %v1628 = vpack.c.b16 %v1591, %v1590
    %v1629 = vpack.c.b16 %v1593, %v1592
    %v1630 = vpack.c.b16 %v1595, %v1594
    %v1631 = vpack.c.b16 %v1597, %v1596
    %v1632 = vpack.c.b16 %v1599, %v1598
    %v1633 = vpack.c.b16 %v1601, %v1600
    %1666 = vmatprep.subr.bf16.mxu0 0
    %1667 = vmatpush1.bf16.msra.mxu0 %v1602
    %1668 = vmatprep.subr.bf16.mxu0 0
    %1669 = vmatpush1.bf16.msra.mxu0 %v1603
    %1670 = vmatprep.subr.bf16.mxu0 0
    %1671 = vmatpush1.bf16.msra.mxu0 %v1604
    %1672 = vmatprep.subr.bf16.mxu0 0
    %1673 = vmatpush1.bf16.msra.mxu0 %v1605
    %1674 = vmatprep.subr.bf16.mxu0 0
    %1675 = vmatpush1.bf16.msra.mxu0 %v1606
    %1676 = vmatprep.subr.bf16.mxu0 0
    %1677 = vmatpush1.bf16.msra.mxu0 %v1607
    %1678 = vmatprep.subr.bf16.mxu0 0
    %1679 = vmatpush1.bf16.msra.mxu0 %v1608
    %1680 = vmatprep.subr.bf16.mxu0 0
    %1681 = vmatpush1.bf16.msra.mxu0 %v1609
    %1682 = vmatprep.subr.bf16.mxu0 0
    %1683 = vmatpush1.bf16.msra.mxu0 %v1610
    %1684 = vmatprep.subr.bf16.mxu0 0
    %1685 = vmatpush1.bf16.msra.mxu0 %v1611
    %1686 = vmatprep.subr.bf16.mxu0 0
    %1687 = vmatpush1.bf16.msra.mxu0 %v1612
    %1688 = vmatprep.subr.bf16.mxu0 0
    %1689 = vmatpush1.bf16.msra.mxu0 %v1613
    %1690 = vmatprep.subr.bf16.mxu0 0
    %1691 = vmatpush1.bf16.msra.mxu0 %v1614
    %1692 = vmatprep.subr.bf16.mxu0 0
    %1693 = vmatpush1.bf16.msra.mxu0 %v1615
    %1694 = vmatprep.subr.bf16.mxu0 0
    %1695 = vmatpush1.bf16.msra.mxu0 %v1616
    %1696 = vmatprep.subr.bf16.mxu0 0
    %1697 = vmatpush1.bf16.msra.mxu0 %v1617
    %1698 = vmatprep.mubr.bf16.mxu0 %v1400
    %1699 = vmatmul.mubr.bf16.gmra.mrb[0].mxu0 %v1399
    %v1700 = vpop.f32.mrb[0].mxu0
    %v1701 = vadd.f32 %v1472, %v1700
    %v1702 = vpop.f32.mrb[0].mxu0
    %v1703 = vpop.f32.mrb[0].mxu0
    %v1704 = vadd.f32 %v1472, %v1703
    %v1705 = vpop.f32.mrb[0].mxu0
    %1706 = vdwg.mxu0
    %1707 = vmatprep.subr.bf16.mxu0 0
    %1708 = vmatpush1.bf16.msra.mxu0 %v1618
    %1709 = vmatprep.subr.bf16.mxu0 0
    %1710 = vmatpush1.bf16.msra.mxu0 %v1619
    %1711 = vmatprep.subr.bf16.mxu0 0
    %1712 = vmatpush1.bf16.msra.mxu0 %v1620
    %1713 = vmatprep.subr.bf16.mxu0 0
    %1714 = vmatpush1.bf16.msra.mxu0 %v1621
    %1715 = vmatprep.subr.bf16.mxu0 0
    %1716 = vmatpush1.bf16.msra.mxu0 %v1622
    %1717 = vmatprep.subr.bf16.mxu0 0
    %1718 = vmatpush1.bf16.msra.mxu0 %v1623
    %1719 = vmatprep.subr.bf16.mxu0 0
    %1720 = vmatpush1.bf16.msra.mxu0 %v1624
    %1721 = vmatprep.subr.bf16.mxu0 0
    %1722 = vmatpush1.bf16.msra.mxu0 %v1625
    %1723 = vmatprep.subr.bf16.mxu0 0
    %1724 = vmatpush1.bf16.msra.mxu0 %v1626
    %1725 = vmatprep.subr.bf16.mxu0 0
    %1726 = vmatpush1.bf16.msra.mxu0 %v1627
    %1727 = vmatprep.subr.bf16.mxu0 0
    %1728 = vmatpush1.bf16.msra.mxu0 %v1628
    %1729 = vmatprep.subr.bf16.mxu0 0
    %1730 = vmatpush1.bf16.msra.mxu0 %v1629
    %1731 = vmatprep.subr.bf16.mxu0 0
    %1732 = vmatpush1.bf16.msra.mxu0 %v1630
    %1733 = vmatprep.subr.bf16.mxu0 0
    %1734 = vmatpush1.bf16.msra.mxu0 %v1631
    %1735 = vmatprep.subr.bf16.mxu0 0
    %1736 = vmatpush1.bf16.msra.mxu0 %v1632
    %1737 = vmatprep.subr.bf16.mxu0 0
    %1738 = vmatpush1.bf16.msra.mxu0 %v1633
    %1739 = vmatprep.mubr.bf16.mxu0 %v1402
    %1740 = vmatmul.mubr.bf16.gmra.mrb[0].mxu0 %v1401
    %v1741 = vpop.f32.mrb[0].mxu0
    %v1742 = vadd.f32 %v1701, %v1741
    %v1743 = vpop.f32.mrb[0].mxu0
    %v1744 = vpop.f32.mrb[0].mxu0
    %v1745 = vadd.f32 %v1704, %v1744
    %v1746 = vpop.f32.mrb[0].mxu0
    %1747 = vdwg.mxu0
    %v1748 = vxor.u32 %v1742, 2147483648
    %v1749 = vxor.u32 %v1745, 2147483648
    %v1750 = vmul.f32 %v1748, 1.442695
    %v1751 = vpow.pop %v1750
    %v1752 = vmul.f32 %v1749, 1.442695
    %v1753 = vpow.pop %v1752
    %v1754 = vadd.f32 %v1751, 1.0
    %v1755 = vadd.f32 %v1753, 1.0
    %v1756 = vrcp.pop %v1754
    %v1757 = vmul.f32 1.0, %v1756
    %v1758 = vrcp.pop %v1755
    %v1759 = vmul.f32 1.0, %v1758
    %1760 = vst [vmem:[#allocation11] sm:$0xff] %v1757
    %1761 = vst [vmem:[#allocation11 + $0x8] sm:$0xff] %v1759
    // Predicated region
    $region58: #{autoencoder_forward_pallas.1} parent=1 // pred_check
      _
    $region59: #{autoencoder_forward_pallas.1} parent=1 // pred_check_branch
      %1763 = sbr.rel (0) target = $region61
    $region60: #{autoencoder_forward_pallas.1} parent=1 // pred_region
      %s1765 = ssub.s32 256, 256
      %1766 = vsyncadd [#allocation4], %s1765
      %s1767 = sshll.u32 [#allocation11], 4
      %s1768 = int_to_ptr.vmem [resolvable:$true] %s1767
      %1773 = dma.vmem_to_hbm [thread:$0]  %s1768, 256, %s9, [#allocation4], 128, 128, 8
    $region61: #{autoencoder_forward_pallas.1} parent=1 // pred_fallthru
      _
    // Predicated region
    $region62: #{autoencoder_forward_pallas.1} parent=1 // pred_check
      _
    $region63: #{autoencoder_forward_pallas.1} parent=1 // pred_check_branch
      %1775 = sbr.rel (0) target = $region65
    $region64: #{autoencoder_forward_pallas.1} parent=1 // pred_region
      %1776 = dma.done [#allocation4], 256
    $region65: #{autoencoder_forward_pallas.1} parent=1 // pred_fallthru
      _
    %1777 = vsyncpa [#allocation3], 1
    %1778 = vsyncpa [#allocation6], 1
    %1779 = vsyncpa [#allocation9], 1
    %1780 = vsyncpa [#allocation4], 1

</llo_original>
